<compile_context>
chip_gen: v7x
topology: tpu7x:2x2x1
jax: 0.10.0
libtpu: 0.0.40
codegen_flags: <defaults>
</compile_context>

<pallas_src>
import numpy as np
import jax
import jax.numpy as jnp
from jax.experimental import pallas as pl
from jax.experimental.pallas import tpu as pltpu


# ---------------------------------------------------------------------------
# Host-side constant builders
# ---------------------------------------------------------------------------

def _conv_toeplitz(w_oihw, w_in):
    """T[kh, (w0+kw)*Cin + cin, w0*Cout + cout] = w[cout, cin, kh, kw].

    For activations laid out as rows=(n,h), cols=(w,cin):
      conv(x) == sum_kh (rows shifted by kh) @ T[kh]."""
    cout, cin, k, _ = w_oihw.shape
    wo = w_in - k + 1
    t = np.zeros((k, w_in * cin, wo * cout), np.float32)
    for kh in range(k):
        wt = w_oihw[:, :, kh, :]                       # (cout, cin, kw)
        for w0 in range(wo):
            for kw in range(k):
                t[kh, (w0 + kw) * cin:(w0 + kw + 1) * cin,
                  w0 * cout:(w0 + 1) * cout] = wt[:, :, kw].T
    return t


def _pool1_rows(n, h_in, h_valid, parity):
    """(n*h_valid//2, n*h_in-4): fused conv-validity selection + 2x2 row pool.

    Picks row b*h_in + 2*i + parity of the full conv1 row space; output is
    b-major (row b*(h_valid//2) + i) so conv2 can slice contiguous h taps."""
    ho = h_valid // 2
    r_full = n * h_in - 4
    m = np.zeros((n * ho, r_full), np.float32)
    for b in range(n):
        for i in range(ho):
            m[b * ho + i, b * h_in + 2 * i + parity] = 1.0
    return m


def _pool2_rows(n, h_in, h_valid, parity):
    """(h_valid//2 * 8, n*h_in-4): same fusion, but output is h-major with each
    spatial row padded to 8 batch slots so the MLP stage runs at M=8."""
    ho = h_valid // 2
    r_full = n * h_in - 4
    m = np.zeros((ho * 8, r_full), np.float32)
    for i in range(ho):
        for b in range(n):
            m[i * 8 + b, b * h_in + 2 * i + parity] = 1.0
    return m


def _pool_cols(w, c, parity):
    """(W*C, W/2*C) 0/1 matrix selecting even/odd w-columns per channel."""
    wo = w // 2
    s = np.zeros((w * c, wo * c), np.float32)
    eye = np.eye(c, dtype=np.float32)
    for i in range(wo):
        s[(2 * i + parity) * c:(2 * i + parity + 1) * c, i * c:(i + 1) * c] = eye
    return s


def _group_mean(w, c, count):
    """(W*C, C): sums the W column-copies of each channel, divides by count."""
    g = np.zeros((w * c, c), np.float32)
    eye = np.eye(c, dtype=np.float32)
    for i in range(w):
        g[i * c:(i + 1) * c, :] = eye
    return g / float(count)


def _chan_expand(vec, w):
    """(C, W*C): broadcasts a per-channel vector back to (w, c) columns."""
    c = vec.shape[0]
    g = np.zeros((c, w * c), np.float32)
    for i in range(w):
        g[:, i * c:(i + 1) * c] = np.diag(vec)
    return g


def _fc1_slices(fc1_w, c, hh, ww):
    """W1[h, w*C+ch, j] = fc1_w[j, ch*hh*ww + h*ww + w]  (folds NCHW flatten)."""
    out_dim = fc1_w.shape[0]
    w1 = np.zeros((hh, ww * c, out_dim), np.float32)
    for h in range(hh):
        for w in range(ww):
            for ch in range(c):
                w1[h, w * c + ch, :] = fc1_w[:, ch * hh * ww + h * ww + w]
    return w1


class _Slab:
    """Packs many small constants into one tile-aligned 2-D slab (one DMA).

    Every entry is zero-padded to the slab lane width and to a multiple of 8
    rows, so it can be carved back inside the kernel with a cheap static ref
    slice at an 8-aligned row offset."""

    def __init__(self, width, dtype):
        self.width, self.dtype = width, dtype
        self.blocks, self.layout, self.row = [], {}, 0

    def add(self, name, mat):
        mat = np.asarray(mat, np.float32)
        r, c = mat.shape
        assert c <= self.width, (name, c, self.width)
        rp = -(-r // 8) * 8
        blk = np.zeros((rp, self.width), np.float32)
        blk[:r, :c] = mat
        self.blocks.append(blk)
        self.layout[name] = (self.row, r, c)
        self.row += rp

    def build(self):
        return jnp.asarray(np.concatenate(self.blocks, axis=0), self.dtype)


def init_params(key, batch):
    """Deterministic synthetic weights in PyTorch shapes, re-laid out into 4
    packed constant slabs.  Returns (slabs, layouts, raw_pytorch_params).

    NOTE: the selection matrices are baked for this batch size; a different
    batch needs new slabs and a retrace."""
    assert batch <= 8, "MLP stage packs the batch into 8 sublane slots"
    ks = jax.random.split(key, 10)
    s = 0.1
    conv1_w = np.asarray(s * jax.random.normal(ks[0], (6, 3, 5, 5), jnp.float32))
    conv1_b = np.asarray(s * jax.random.normal(ks[1], (6,), jnp.float32))
    conv2_w = np.asarray(s * jax.random.normal(ks[2], (16, 6, 5, 5), jnp.float32))
    conv2_b = np.asarray(s * jax.random.normal(ks[3], (16,), jnp.float32))
    fc1_w = np.asarray(s * jax.random.normal(ks[4], (120, 400), jnp.float32))
    fc1_b = np.asarray(s * jax.random.normal(ks[5], (120,), jnp.float32))
    fc2_w = np.asarray(s * jax.random.normal(ks[6], (84, 120), jnp.float32))
    fc2_b = np.asarray(s * jax.random.normal(ks[7], (84,), jnp.float32))
    fc3_w = np.asarray(s * jax.random.normal(ks[8], (1024, 84), jnp.float32))
    fc3_b = np.asarray(s * jax.random.normal(ks[9], (1024,), jnp.float32))
    # BatchNorm2d default init: gamma=1, beta=0
    bn1_g = np.ones((6,), np.float32)
    bn1_b = np.zeros((6,), np.float32)
    bn2_g = np.ones((16,), np.float32)
    bn2_b = np.zeros((16,), np.float32)

    n = batch

    # --- conv slab (f32, 168 lanes): block-Toeplitz weights + conv biases ----
    # Normalize((0.5,)*3,(0.5,)*3) == x*2-1 folded into conv1:
    #   conv1(2x-1) = (2*W) conv x + (b - sum(W))
    conv = _Slab(168, jnp.float32)
    t1 = 2.0 * _conv_toeplitz(conv1_w, 32)                       # (5, 96, 168)
    for kh in range(5):
        conv.add(f"t1_{kh}", t1[kh])
    conv.add("b1c", np.tile(conv1_b - conv1_w.sum(axis=(1, 2, 3)), 28)[None, :])
    t2 = _conv_toeplitz(conv2_w, 14)                             # (5, 84, 160)
    for kh in range(5):
        conv.add(f"t2_{kh}", t2[kh])
    conv.add("b2c", np.tile(conv2_b, 10)[None, :])

    # --- small slab (f32, 128 lanes): pool selections, BN helpers, fc biases -
    small = _Slab(128, jnp.float32)
    small.add("p1e", _pool1_rows(n, 32, 28, 0))                  # (n*14, n*32-4)
    small.add("p1o", _pool1_rows(n, 32, 28, 1))
    small.add("ce1", _pool_cols(28, 6, 0))                       # (168, 84)
    small.add("co1", _pool_cols(28, 6, 1))
    small.add("g1m", _group_mean(14, 6, n * 14 * 14))            # (84, 6)
    small.add("g1g", _chan_expand(bn1_g, 14))                    # (6, 84)
    small.add("beta1", np.tile(bn1_b, 14)[None, :])              # (1, 84)
    small.add("p2e", _pool2_rows(n, 14, 10, 0))                  # (40, n*14-4)
    small.add("p2o", _pool2_rows(n, 14, 10, 1))
    small.add("ce2", _pool_cols(10, 16, 0))                      # (160, 80)
    small.add("co2", _pool_cols(10, 16, 1))
    small.add("g2m", _group_mean(5, 16, n * 5 * 5))              # (80, 16)
    small.add("g2g", _chan_expand(bn2_g, 5))                     # (16, 80)
    small.add("beta2", np.tile(bn2_b, 5)[None, :])               # (1, 80)
    small.add("b1fc", np.pad(fc1_b, (0, 8))[None, :])            # 120 -> 128
    small.add("b2fc", np.pad(fc2_b, (0, 44))[None, :])           # 84  -> 128

    # --- MLP slab (bf16, 128 lanes): fc1 (flatten folded, out 120->128) + fc2 -
    mlp = _Slab(128, jnp.bfloat16)
    fc1_wp = np.pad(fc1_w, ((0, 8), (0, 0)))                     # (128, 400)
    w1h = _fc1_slices(fc1_wp, 16, 5, 5)                          # (5, 80, 128)
    for h in range(5):
        mlp.add(f"w1_{h}", w1h[h])
    w2 = np.zeros((128, 128), np.float32)
    w2[:120, :84] = fc2_w.T
    mlp.add("w2", w2)

    # --- fc3 slab (bf16, 1024 lanes) -----------------------------------------
    last = _Slab(1024, jnp.bfloat16)
    w3 = np.zeros((128, 1024), np.float32)
    w3[:84, :] = fc3_w.T
    last.add("w3", w3)
    last.add("b3", fc3_b[None, :])

    slabs = dict(conv=conv.build(), small=small.build(),
                 mlp=mlp.build(), last=last.build())
    layouts = dict(conv=conv.layout, small=small.layout,
                   mlp=mlp.layout, last=last.layout)

    raw = dict(conv1_w=conv1_w, conv1_b=conv1_b, conv2_w=conv2_w, conv2_b=conv2_b,
               fc1_w=fc1_w, fc1_b=fc1_b, fc2_w=fc2_w, fc2_b=fc2_b,
               fc3_w=fc3_w, fc3_b=fc3_b,
               bn1_g=bn1_g, bn1_b=bn1_b, bn2_g=bn2_g, bn2_b=bn2_b)
    return slabs, layouts, raw


# ---------------------------------------------------------------------------
# Fused forward kernel + pallas_call wrapper (factory bakes batch + layouts)
# ---------------------------------------------------------------------------

def make_forward(n, layouts):
    r1 = n * 32 - 4          # conv1-valid row space, rows = (sample, h)
    r2 = n * 14 - 4          # conv2-valid row space

    lc, ls = layouts["conv"], layouts["small"]
    lm, ll = layouts["mlp"], layouts["last"]

    def cut(ref, layout, name):
        off, r, c = layout[name]
        return ref[off:off + r, 0:c]          # static slice -> cheap carve

    def _mm(a, b):
        return jnp.dot(a, b, preferred_element_type=jnp.float32)

    def kernel(x_ref, conv_ref, small_ref, mlp_ref, last_ref, o_ref, a2_ref):
        # ---- conv1 (Normalize folded): 5 shifted-row GEMMs on the input ref --
        c1 = _mm(x_ref[pl.ds(0, r1), :], cut(conv_ref, lc, "t1_0"))
        for kh in range(1, 5):
            c1 = c1 + _mm(x_ref[pl.ds(kh, r1), :], cut(conv_ref, lc, f"t1_{kh}"))
        c1 = jnp.maximum(c1 + cut(conv_ref, lc, "b1c"), 0.0)      # (n*32-4, 168)

        # ---- maxpool1: fused validity+row-pool compaction, then column pool --
        hp1 = jnp.maximum(_mm(cut(small_ref, ls, "p1e"), c1),
                          _mm(cut(small_ref, ls, "p1o"), c1))     # (n*14, 168)
        p1 = jnp.maximum(_mm(hp1, cut(small_ref, ls, "ce1")),
                         _mm(hp1, cut(small_ref, ls, "co1")))     # (n*14, 84)

        # ---- BatchNorm2d(6), training-mode biased batch statistics -----------
        s1 = jnp.sum(p1, axis=0, keepdims=True)
        q1 = jnp.sum(p1 * p1, axis=0, keepdims=True)
        g1m = cut(small_ref, ls, "g1m")
        mean1 = _mm(s1, g1m)                                      # (1, 6)
        var1 = _mm(q1, g1m) - mean1 * mean1
        inv1 = jax.lax.rsqrt(var1 + 1e-5)
        g1g = cut(small_ref, ls, "g1g")
        scale1 = _mm(inv1, g1g)                                   # (1, 84)
        shift1 = cut(small_ref, ls, "beta1") - _mm(mean1 * inv1, g1g)
        a2_ref[...] = p1 * scale1 + shift1                        # (n*14, 84)

        # ---- conv2: 5 shifted-row GEMMs on the VMEM scratch ref --------------
        c2 = _mm(a2_ref[pl.ds(0, r2), :], cut(conv_ref, lc, "t2_0"))
        for kh in range(1, 5):
            c2 = c2 + _mm(a2_ref[pl.ds(kh, r2), :], cut(conv_ref, lc, f"t2_{kh}"))
        c2 = jnp.maximum(c2 + cut(conv_ref, lc, "b2c"), 0.0)      # (n*14-4, 160)

        # ---- maxpool2 (output h-major, batch padded to 8 sublanes) -----------
        hp2 = jnp.maximum(_mm(cut(small_ref, ls, "p2e"), c2),
                          _mm(cut(small_ref, ls, "p2o"), c2))     # (40, 160)
        p2 = jnp.maximum(_mm(hp2, cut(small_ref, ls, "ce2")),
                         _mm(hp2, cut(small_ref, ls, "co2")))     # (40, 80)

        # ---- BatchNorm2d(16); zero-padded batch rows don't change the stats --
        s2 = jnp.sum(p2, axis=0, keepdims=True)
        q2 = jnp.sum(p2 * p2, axis=0, keepdims=True)
        g2m = cut(small_ref, ls, "g2m")
        mean2 = _mm(s2, g2m)                                      # (1, 16)
        var2 = _mm(q2, g2m) - mean2 * mean2
        inv2 = jax.lax.rsqrt(var2 + 1e-5)
        g2g = cut(small_ref, ls, "g2g")
        scale2 = _mm(inv2, g2g)                                   # (1, 80)
        shift2 = cut(small_ref, ls, "beta2") - _mm(mean2 * inv2, g2g)
        bn2 = p2 * scale2 + shift2                                # (40, 80)

        # ---- fc1 (NCHW flatten folded into per-spatial-row weight slices),
        #      bf16 MXU inputs with f32 accumulation; biases stay f32 ----------
        h1 = _mm(bn2[0:8, :].astype(jnp.bfloat16), cut(mlp_ref, lm, "w1_0"))
        for h in range(1, 5):
            h1 = h1 + _mm(bn2[h * 8:(h + 1) * 8, :].astype(jnp.bfloat16),
                          cut(mlp_ref, lm, f"w1_{h}"))
        h1 = jnp.maximum(h1 + cut(small_ref, ls, "b1fc"), 0.0)    # (8, 128)

        # ---- fc2 + relu, fc3 (widths padded to 128 lanes with zero weights) --
        h2 = jnp.maximum(
            _mm(h1.astype(jnp.bfloat16), cut(mlp_ref, lm, "w2"))
            + cut(small_ref, ls, "b2fc"), 0.0)                    # (8, 128)
        out = _mm(h2.astype(jnp.bfloat16), cut(last_ref, ll, "w3")) \
            + cut(last_ref, ll, "b3")                             # (8, 1024)

        # full lane-dense, unmasked 8-row store; wrapper slices off pad rows
        o_ref[...] = out

    vmem = pl.BlockSpec(memory_space=pltpu.MemorySpace.VMEM)

    @jax.jit
    def forward(x_nchw, slabs):
        # one layout-plumbing transpose: NCHW -> rows=(n,h), cols=(w,cin)
        x2d = jnp.transpose(x_nchw.astype(jnp.float32), (0, 2, 3, 1)).reshape(
            n * 32, 32 * 3)
        out8 = pl.pallas_call(
            kernel,
            out_shape=jax.ShapeDtypeStruct((8, 1024), jnp.float32),
            in_specs=[vmem] * 5,
            out_specs=vmem,
            scratch_shapes=[pltpu.VMEM((n * 14, 84), jnp.float32)],
        )(x2d, slabs["conv"], slabs["small"], slabs["mlp"], slabs["last"])
        return out8[:n]

    return forward


# ---------------------------------------------------------------------------
# Plain-JAX reference of the PyTorch forward (for an in-script cross-check)
# ---------------------------------------------------------------------------

def reference_forward(x_nchw, raw):
    x = x_nchw.astype(jnp.float32) * 2.0 - 1.0

    def conv(h, w, b):
        y = jax.lax.conv_general_dilated(
            h, jnp.asarray(w), window_strides=(1, 1), padding="VALID",
            dimension_numbers=("NCHW", "OIHW", "NCHW"))
        return y + jnp.asarray(b)[None, :, None, None]

    def pool(h):
        n, c, hh, ww = h.shape
        return h.reshape(n, c, hh // 2, 2, ww // 2, 2).max(axis=(3, 5))

    def bn(h, g, b):
        mean = jnp.mean(h, axis=(0, 2, 3), keepdims=True)
        var = jnp.mean((h - mean) ** 2, axis=(0, 2, 3), keepdims=True)
        return ((h - mean) * jax.lax.rsqrt(var + 1e-5)
                * jnp.asarray(g)[None, :, None, None]
                + jnp.asarray(b)[None, :, None, None])

    h = bn(pool(jax.nn.relu(conv(x, raw["conv1_w"], raw["conv1_b"]))),
           raw["bn1_g"], raw["bn1_b"])
    h = bn(pool(jax.nn.relu(conv(h, raw["conv2_w"], raw["conv2_b"]))),
           raw["bn2_g"], raw["bn2_b"])
    h = h.reshape(h.shape[0], -1)                        # torch.flatten(x, 1)
    h = jax.nn.relu(h @ jnp.asarray(raw["fc1_w"]).T + jnp.asarray(raw["fc1_b"]))
    h = jax.nn.relu(h @ jnp.asarray(raw["fc2_w"]).T + jnp.asarray(raw["fc2_b"]))
    return h @ jnp.asarray(raw["fc3_w"]).T + jnp.asarray(raw["fc3_b"])


if __name__ == "__main__":
    key = jax.random.PRNGKey(0)
    k_x, k_p = jax.random.split(key)
    batch = 2
    x = jax.random.uniform(k_x, (batch, 3, 32, 32), jnp.float32)   # NCHW
    slabs, layouts, raw = init_params(k_p, batch)
    forward = make_forward(batch, layouts)

    out = forward(x, slabs)
    out = jax.block_until_ready(out)

    assert out.shape == (batch, 1024), out.shape
    assert bool(jnp.all(jnp.isfinite(out)))

    # cross-check against the plain-JAX reference of the PyTorch forward
    ref = reference_forward(x, raw)
    np.testing.assert_allclose(np.asarray(out), np.asarray(ref),
                               rtol=5e-2, atol=5e-2)

    print("KERNEL_OK")
</pallas_src>

<mosaic_0001>
module attributes {stable_mosaic.version = 11 : i64} {
  func.func @kernel(%arg0: memref<64x96xf32, #tpu.memory_space<vmem>>, %arg1: memref<936x168xf32, #tpu.memory_space<vmem>>, %arg2: memref<1024x128xf32, #tpu.memory_space<vmem>>, %arg3: memref<528x128xbf16, #tpu.memory_space<vmem>>, %arg4: memref<136x1024xbf16, #tpu.memory_space<vmem>>, %arg5: memref<8x1024xf32, #tpu.memory_space<vmem>>, %arg6: memref<28x84xf32, #tpu.memory_space<vmem>>) attributes {dimension_semantics = [], scalar_prefetch = 0 : i64, scratch_operands = 1 : i64, tpu.core_type = #tpu.core_type<tc>} {
    %c0 = arith.constant 0 : index
    %c0_0 = arith.constant 0 : index
    %0 = vector.load %arg0[%c0, %c0_0] : memref<64x96xf32, #tpu.memory_space<vmem>>, vector<60x96xf32>
    %c0_1 = arith.constant 0 : index
    %c0_2 = arith.constant 0 : index
    %1 = vector.load %arg1[%c0_1, %c0_2] : memref<936x168xf32, #tpu.memory_space<vmem>>, vector<96x168xf32>
    %cst = arith.constant dense<0.000000e+00> : vector<60x168xf32>
    %2 = tpu.matmul %0, %1, %cst {dimension_numbers = #tpu.dot_dimension_numbers<[1], [0], [0], [1], [0, 0, 1, 1], [], []>} : vector<60x96xf32>, vector<96x168xf32>, vector<60x168xf32> -> vector<60x168xf32>
    %c1 = arith.constant 1 : index
    %c0_3 = arith.constant 0 : index
    %3 = vector.load %arg0[%c1, %c0_3] : memref<64x96xf32, #tpu.memory_space<vmem>>, vector<60x96xf32>
    %c96 = arith.constant 96 : index
    %c0_4 = arith.constant 0 : index
    %4 = vector.load %arg1[%c96, %c0_4] : memref<936x168xf32, #tpu.memory_space<vmem>>, vector<96x168xf32>
    %cst_5 = arith.constant dense<0.000000e+00> : vector<60x168xf32>
    %5 = tpu.matmul %3, %4, %cst_5 {dimension_numbers = #tpu.dot_dimension_numbers<[1], [0], [0], [1], [0, 0, 1, 1], [], []>} : vector<60x96xf32>, vector<96x168xf32>, vector<60x168xf32> -> vector<60x168xf32>
    %6 = arith.addf %2, %5 : vector<60x168xf32>
    %c2 = arith.constant 2 : index
    %c0_6 = arith.constant 0 : index
    %7 = vector.load %arg0[%c2, %c0_6] : memref<64x96xf32, #tpu.memory_space<vmem>>, vector<60x96xf32>
    %c192 = arith.constant 192 : index
    %c0_7 = arith.constant 0 : index
    %8 = vector.load %arg1[%c192, %c0_7] : memref<936x168xf32, #tpu.memory_space<vmem>>, vector<96x168xf32>
    %cst_8 = arith.constant dense<0.000000e+00> : vector<60x168xf32>
    %9 = tpu.matmul %7, %8, %cst_8 {dimension_numbers = #tpu.dot_dimension_numbers<[1], [0], [0], [1], [0, 0, 1, 1], [], []>} : vector<60x96xf32>, vector<96x168xf32>, vector<60x168xf32> -> vector<60x168xf32>
    %10 = arith.addf %6, %9 : vector<60x168xf32>
    %c3 = arith.constant 3 : index
    %c0_9 = arith.constant 0 : index
    %11 = vector.load %arg0[%c3, %c0_9] : memref<64x96xf32, #tpu.memory_space<vmem>>, vector<60x96xf32>
    %c288 = arith.constant 288 : index
    %c0_10 = arith.constant 0 : index
    %12 = vector.load %arg1[%c288, %c0_10] : memref<936x168xf32, #tpu.memory_space<vmem>>, vector<96x168xf32>
    %cst_11 = arith.constant dense<0.000000e+00> : vector<60x168xf32>
    %13 = tpu.matmul %11, %12, %cst_11 {dimension_numbers = #tpu.dot_dimension_numbers<[1], [0], [0], [1], [0, 0, 1, 1], [], []>} : vector<60x96xf32>, vector<96x168xf32>, vector<60x168xf32> -> vector<60x168xf32>
    %14 = arith.addf %10, %13 : vector<60x168xf32>
    %c4 = arith.constant 4 : index
    %c0_12 = arith.constant 0 : index
    %15 = vector.load %arg0[%c4, %c0_12] : memref<64x96xf32, #tpu.memory_space<vmem>>, vector<60x96xf32>
    %c384 = arith.constant 384 : index
    %c0_13 = arith.constant 0 : index
    %16 = vector.load %arg1[%c384, %c0_13] : memref<936x168xf32, #tpu.memory_space<vmem>>, vector<96x168xf32>
    %cst_14 = arith.constant dense<0.000000e+00> : vector<60x168xf32>
    %17 = tpu.matmul %15, %16, %cst_14 {dimension_numbers = #tpu.dot_dimension_numbers<[1], [0], [0], [1], [0, 0, 1, 1], [], []>} : vector<60x96xf32>, vector<96x168xf32>, vector<60x168xf32> -> vector<60x168xf32>
    %18 = arith.addf %14, %17 : vector<60x168xf32>
    %c480 = arith.constant 480 : index
    %c0_15 = arith.constant 0 : index
    %19 = vector.load %arg1[%c480, %c0_15] : memref<936x168xf32, #tpu.memory_space<vmem>>, vector<1x168xf32>
    %20 = vector.broadcast %19 : vector<1x168xf32> to vector<60x168xf32>
    %21 = arith.addf %18, %20 : vector<60x168xf32>
    %cst_16 = arith.constant 0.000000e+00 : f32
    %22 = vector.broadcast %cst_16 : f32 to vector<60x168xf32>
    %23 = arith.maximumf %21, %22 : vector<60x168xf32>
    %c0_17 = arith.constant 0 : index
    %c0_18 = arith.constant 0 : index
    %24 = vector.load %arg2[%c0_17, %c0_18] : memref<1024x128xf32, #tpu.memory_space<vmem>>, vector<28x60xf32>
    %cst_19 = arith.constant dense<0.000000e+00> : vector<28x168xf32>
    %25 = tpu.matmul %24, %23, %cst_19 {dimension_numbers = #tpu.dot_dimension_numbers<[1], [0], [0], [1], [0, 0, 1, 1], [], []>} : vector<28x60xf32>, vector<60x168xf32>, vector<28x168xf32> -> vector<28x168xf32>
    %c32 = arith.constant 32 : index
    %c0_20 = arith.constant 0 : index
    %26 = vector.load %arg2[%c32, %c0_20] : memref<1024x128xf32, #tpu.memory_space<vmem>>, vector<28x60xf32>
    %cst_21 = arith.constant dense<0.000000e+00> : vector<28x168xf32>
    %27 = tpu.matmul %26, %23, %cst_21 {dimension_numbers = #tpu.dot_dimension_numbers<[1], [0], [0], [1], [0, 0, 1, 1], [], []>} : vector<28x60xf32>, vector<60x168xf32>, vector<28x168xf32> -> vector<28x168xf32>
    %28 = arith.maximumf %25, %27 : vector<28x168xf32>
    %c64 = arith.constant 64 : index
    %c0_22 = arith.constant 0 : index
    %29 = vector.load %arg2[%c64, %c0_22] : memref<1024x128xf32, #tpu.memory_space<vmem>>, vector<168x84xf32>
    %cst_23 = arith.constant dense<0.000000e+00> : vector<28x84xf32>
    %30 = tpu.matmul %28, %29, %cst_23 {dimension_numbers = #tpu.dot_dimension_numbers<[1], [0], [0], [1], [0, 0, 1, 1], [], []>} : vector<28x168xf32>, vector<168x84xf32>, vector<28x84xf32> -> vector<28x84xf32>
    %c232 = arith.constant 232 : index
    %c0_24 = arith.constant 0 : index
    %31 = vector.load %arg2[%c232, %c0_24] : memref<1024x128xf32, #tpu.memory_space<vmem>>, vector<168x84xf32>
    %cst_25 = arith.constant dense<0.000000e+00> : vector<28x84xf32>
    %32 = tpu.matmul %28, %31, %cst_25 {dimension_numbers = #tpu.dot_dimension_numbers<[1], [0], [0], [1], [0, 0, 1, 1], [], []>} : vector<28x168xf32>, vector<168x84xf32>, vector<28x84xf32> -> vector<28x84xf32>
    %33 = arith.maximumf %30, %32 : vector<28x84xf32>
    %cst_26 = arith.constant dense<0.000000e+00> : vector<84xf32>
    %34 = vector.multi_reduction <add>, %33, %cst_26 [0] : vector<28x84xf32> to vector<84xf32>
    %35 = vector.shape_cast %34 : vector<84xf32> to vector<1x84xf32>
    %36 = arith.mulf %33, %33 : vector<28x84xf32>
    %cst_27 = arith.constant dense<0.000000e+00> : vector<84xf32>
    %37 = vector.multi_reduction <add>, %36, %cst_27 [0] : vector<28x84xf32> to vector<84xf32>
    %38 = vector.shape_cast %37 : vector<84xf32> to vector<1x84xf32>
    %c400 = arith.constant 400 : index
    %c0_28 = arith.constant 0 : index
    %39 = vector.load %arg2[%c400, %c0_28] : memref<1024x128xf32, #tpu.memory_space<vmem>>, vector<84x6xf32>
    %cst_29 = arith.constant dense<0.000000e+00> : vector<1x6xf32>
    %40 = tpu.matmul %35, %39, %cst_29 {dimension_numbers = #tpu.dot_dimension_numbers<[1], [0], [0], [1], [0, 0, 1, 1], [], []>} : vector<1x84xf32>, vector<84x6xf32>, vector<1x6xf32> -> vector<1x6xf32>
    %cst_30 = arith.constant dense<0.000000e+00> : vector<1x6xf32>
    %41 = tpu.matmul %38, %39, %cst_30 {dimension_numbers = #tpu.dot_dimension_numbers<[1], [0], [0], [1], [0, 0, 1, 1], [], []>} : vector<1x84xf32>, vector<84x6xf32>, vector<1x6xf32> -> vector<1x6xf32>
    %42 = arith.mulf %40, %40 : vector<1x6xf32>
    %43 = arith.subf %41, %42 : vector<1x6xf32>
    %cst_31 = arith.constant 9.99999974E-6 : f32
    %44 = vector.broadcast %cst_31 : f32 to vector<1x6xf32>
    %45 = arith.addf %43, %44 : vector<1x6xf32>
    %46 = math.rsqrt %45 : vector<1x6xf32>
    %c488 = arith.constant 488 : index
    %c0_32 = arith.constant 0 : index
    %47 = vector.load %arg2[%c488, %c0_32] : memref<1024x128xf32, #tpu.memory_space<vmem>>, vector<6x84xf32>
    %cst_33 = arith.constant dense<0.000000e+00> : vector<1x84xf32>
    %48 = tpu.matmul %46, %47, %cst_33 {dimension_numbers = #tpu.dot_dimension_numbers<[1], [0], [0], [1], [0, 0, 1, 1], [], []>} : vector<1x6xf32>, vector<6x84xf32>, vector<1x84xf32> -> vector<1x84xf32>
    %c496 = arith.constant 496 : index
    %c0_34 = arith.constant 0 : index
    %49 = vector.load %arg2[%c496, %c0_34] : memref<1024x128xf32, #tpu.memory_space<vmem>>, vector<1x84xf32>
    %50 = arith.mulf %40, %46 : vector<1x6xf32>
    %cst_35 = arith.constant dense<0.000000e+00> : vector<1x84xf32>
    %51 = tpu.matmul %50, %47, %cst_35 {dimension_numbers = #tpu.dot_dimension_numbers<[1], [0], [0], [1], [0, 0, 1, 1], [], []>} : vector<1x6xf32>, vector<6x84xf32>, vector<1x84xf32> -> vector<1x84xf32>
    %52 = arith.subf %49, %51 : vector<1x84xf32>
    %53 = vector.broadcast %48 : vector<1x84xf32> to vector<28x84xf32>
    %54 = arith.mulf %33, %53 : vector<28x84xf32>
    %55 = vector.broadcast %52 : vector<1x84xf32> to vector<28x84xf32>
    %56 = arith.addf %54, %55 : vector<28x84xf32>
    %c0_36 = arith.constant 0 : index
    %c0_37 = arith.constant 0 : index
    %57 = vector.load %arg6[%c0_36, %c0_37] : memref<28x84xf32, #tpu.memory_space<vmem>>, vector<28x84xf32>
    tpu.vector_store %arg6[%c0_36, %c0_37], %56 {strides = array<i32>} : memref<28x84xf32, #tpu.memory_space<vmem>>, vector<28x84xf32>,
    %c0_38 = arith.constant 0 : index
    %c0_39 = arith.constant 0 : index
    %58 = vector.load %arg6[%c0_38, %c0_39] : memref<28x84xf32, #tpu.memory_space<vmem>>, vector<24x84xf32>
    %c488_40 = arith.constant 488 : index
    %c0_41 = arith.constant 0 : index
    %59 = vector.load %arg1[%c488_40, %c0_41] : memref<936x168xf32, #tpu.memory_space<vmem>>, vector<84x160xf32>
    %cst_42 = arith.constant dense<0.000000e+00> : vector<24x160xf32>
    %60 = tpu.matmul %58, %59, %cst_42 {dimension_numbers = #tpu.dot_dimension_numbers<[1], [0], [0], [1], [0, 0, 1, 1], [], []>} : vector<24x84xf32>, vector<84x160xf32>, vector<24x160xf32> -> vector<24x160xf32>
    %c1_43 = arith.constant 1 : index
    %c0_44 = arith.constant 0 : index
    %61 = vector.load %arg6[%c1_43, %c0_44] : memref<28x84xf32, #tpu.memory_space<vmem>>, vector<24x84xf32>
    %c576 = arith.constant 576 : index
    %c0_45 = arith.constant 0 : index
    %62 = vector.load %arg1[%c576, %c0_45] : memref<936x168xf32, #tpu.memory_space<vmem>>, vector<84x160xf32>
    %cst_46 = arith.constant dense<0.000000e+00> : vector<24x160xf32>
    %63 = tpu.matmul %61, %62, %cst_46 {dimension_numbers = #tpu.dot_dimension_numbers<[1], [0], [0], [1], [0, 0, 1, 1], [], []>} : vector<24x84xf32>, vector<84x160xf32>, vector<24x160xf32> -> vector<24x160xf32>
    %64 = arith.addf %60, %63 : vector<24x160xf32>
    %c2_47 = arith.constant 2 : index
    %c0_48 = arith.constant 0 : index
    %65 = vector.load %arg6[%c2_47, %c0_48] : memref<28x84xf32, #tpu.memory_space<vmem>>, vector<24x84xf32>
    %c664 = arith.constant 664 : index
    %c0_49 = arith.constant 0 : index
    %66 = vector.load %arg1[%c664, %c0_49] : memref<936x168xf32, #tpu.memory_space<vmem>>, vector<84x160xf32>
    %cst_50 = arith.constant dense<0.000000e+00> : vector<24x160xf32>
    %67 = tpu.matmul %65, %66, %cst_50 {dimension_numbers = #tpu.dot_dimension_numbers<[1], [0], [0], [1], [0, 0, 1, 1], [], []>} : vector<24x84xf32>, vector<84x160xf32>, vector<24x160xf32> -> vector<24x160xf32>
    %68 = arith.addf %64, %67 : vector<24x160xf32>
    %c3_51 = arith.constant 3 : index
    %c0_52 = arith.constant 0 : index
    %69 = vector.load %arg6[%c3_51, %c0_52] : memref<28x84xf32, #tpu.memory_space<vmem>>, vector<24x84xf32>
    %c752 = arith.constant 752 : index
    %c0_53 = arith.constant 0 : index
    %70 = vector.load %arg1[%c752, %c0_53] : memref<936x168xf32, #tpu.memory_space<vmem>>, vector<84x160xf32>
    %cst_54 = arith.constant dense<0.000000e+00> : vector<24x160xf32>
    %71 = tpu.matmul %69, %70, %cst_54 {dimension_numbers = #tpu.dot_dimension_numbers<[1], [0], [0], [1], [0, 0, 1, 1], [], []>} : vector<24x84xf32>, vector<84x160xf32>, vector<24x160xf32> -> vector<24x160xf32>
    %72 = arith.addf %68, %71 : vector<24x160xf32>
    %c4_55 = arith.constant 4 : index
    %c0_56 = arith.constant 0 : index
    %73 = vector.load %arg6[%c4_55, %c0_56] : memref<28x84xf32, #tpu.memory_space<vmem>>, vector<24x84xf32>
    %c840 = arith.constant 840 : index
    %c0_57 = arith.constant 0 : index
    %74 = vector.load %arg1[%c840, %c0_57] : memref<936x168xf32, #tpu.memory_space<vmem>>, vector<84x160xf32>
    %cst_58 = arith.constant dense<0.000000e+00> : vector<24x160xf32>
    %75 = tpu.matmul %73, %74, %cst_58 {dimension_numbers = #tpu.dot_dimension_numbers<[1], [0], [0], [1], [0, 0, 1, 1], [], []>} : vector<24x84xf32>, vector<84x160xf32>, vector<24x160xf32> -> vector<24x160xf32>
    %76 = arith.addf %72, %75 : vector<24x160xf32>
    %c928 = arith.constant 928 : index
    %c0_59 = arith.constant 0 : index
    %77 = vector.load %arg1[%c928, %c0_59] : memref<936x168xf32, #tpu.memory_space<vmem>>, vector<1x160xf32>
    %78 = vector.broadcast %77 : vector<1x160xf32> to vector<24x160xf32>
    %79 = arith.addf %76, %78 : vector<24x160xf32>
    %cst_60 = arith.constant 0.000000e+00 : f32
    %80 = vector.broadcast %cst_60 : f32 to vector<24x160xf32>
    %81 = arith.maximumf %79, %80 : vector<24x160xf32>
    %c504 = arith.constant 504 : index
    %c0_61 = arith.constant 0 : index
    %82 = vector.load %arg2[%c504, %c0_61] : memref<1024x128xf32, #tpu.memory_space<vmem>>, vector<40x24xf32>
    %cst_62 = arith.constant dense<0.000000e+00> : vector<40x160xf32>
    %83 = tpu.matmul %82, %81, %cst_62 {dimension_numbers = #tpu.dot_dimension_numbers<[1], [0], [0], [1], [0, 0, 1, 1], [], []>} : vector<40x24xf32>, vector<24x160xf32>, vector<40x160xf32> -> vector<40x160xf32>
    %c544 = arith.constant 544 : index
    %c0_63 = arith.constant 0 : index
    %84 = vector.load %arg2[%c544, %c0_63] : memref<1024x128xf32, #tpu.memory_space<vmem>>, vector<40x24xf32>
    %cst_64 = arith.constant dense<0.000000e+00> : vector<40x160xf32>
    %85 = tpu.matmul %84, %81, %cst_64 {dimension_numbers = #tpu.dot_dimension_numbers<[1], [0], [0], [1], [0, 0, 1, 1], [], []>} : vector<40x24xf32>, vector<24x160xf32>, vector<40x160xf32> -> vector<40x160xf32>
    %86 = arith.maximumf %83, %85 : vector<40x160xf32>
    %c584 = arith.constant 584 : index
    %c0_65 = arith.constant 0 : index
    %87 = vector.load %arg2[%c584, %c0_65] : memref<1024x128xf32, #tpu.memory_space<vmem>>, vector<160x80xf32>
    %cst_66 = arith.constant dense<0.000000e+00> : vector<40x80xf32>
    %88 = tpu.matmul %86, %87, %cst_66 {dimension_numbers = #tpu.dot_dimension_numbers<[1], [0], [0], [1], [0, 0, 1, 1], [], []>} : vector<40x160xf32>, vector<160x80xf32>, vector<40x80xf32> -> vector<40x80xf32>
    %c744 = arith.constant 744 : index
    %c0_67 = arith.constant 0 : index
    %89 = vector.load %arg2[%c744, %c0_67] : memref<1024x128xf32, #tpu.memory_space<vmem>>, vector<160x80xf32>
    %cst_68 = arith.constant dense<0.000000e+00> : vector<40x80xf32>
    %90 = tpu.matmul %86, %89, %cst_68 {dimension_numbers = #tpu.dot_dimension_numbers<[1], [0], [0], [1], [0, 0, 1, 1], [], []>} : vector<40x160xf32>, vector<160x80xf32>, vector<40x80xf32> -> vector<40x80xf32>
    %91 = arith.maximumf %88, %90 : vector<40x80xf32>
    %cst_69 = arith.constant dense<0.000000e+00> : vector<80xf32>
    %92 = vector.multi_reduction <add>, %91, %cst_69 [0] : vector<40x80xf32> to vector<80xf32>
    %93 = vector.shape_cast %92 : vector<80xf32> to vector<1x80xf32>
    %94 = arith.mulf %91, %91 : vector<40x80xf32>
    %cst_70 = arith.constant dense<0.000000e+00> : vector<80xf32>
    %95 = vector.multi_reduction <add>, %94, %cst_70 [0] : vector<40x80xf32> to vector<80xf32>
    %96 = vector.shape_cast %95 : vector<80xf32> to vector<1x80xf32>
    %c904 = arith.constant 904 : index
    %c0_71 = arith.constant 0 : index
    %97 = vector.load %arg2[%c904, %c0_71] : memref<1024x128xf32, #tpu.memory_space<vmem>>, vector<80x16xf32>
    %cst_72 = arith.constant dense<0.000000e+00> : vector<1x16xf32>
    %98 = tpu.matmul %93, %97, %cst_72 {dimension_numbers = #tpu.dot_dimension_numbers<[1], [0], [0], [1], [0, 0, 1, 1], [], []>} : vector<1x80xf32>, vector<80x16xf32>, vector<1x16xf32> -> vector<1x16xf32>
    %cst_73 = arith.constant dense<0.000000e+00> : vector<1x16xf32>
    %99 = tpu.matmul %96, %97, %cst_73 {dimension_numbers = #tpu.dot_dimension_numbers<[1], [0], [0], [1], [0, 0, 1, 1], [], []>} : vector<1x80xf32>, vector<80x16xf32>, vector<1x16xf32> -> vector<1x16xf32>
    %100 = arith.mulf %98, %98 : vector<1x16xf32>
    %101 = arith.subf %99, %100 : vector<1x16xf32>
    %cst_74 = arith.constant 9.99999974E-6 : f32
    %102 = vector.broadcast %cst_74 : f32 to vector<1x16xf32>
    %103 = arith.addf %101, %102 : vector<1x16xf32>
    %104 = math.rsqrt %103 : vector<1x16xf32>
    %c984 = arith.constant 984 : index
    %c0_75 = arith.constant 0 : index
    %105 = vector.load %arg2[%c984, %c0_75] : memref<1024x128xf32, #tpu.memory_space<vmem>>, vector<16x80xf32>
    %cst_76 = arith.constant dense<0.000000e+00> : vector<1x80xf32>
    %106 = tpu.matmul %104, %105, %cst_76 {dimension_numbers = #tpu.dot_dimension_numbers<[1], [0], [0], [1], [0, 0, 1, 1], [], []>} : vector<1x16xf32>, vector<16x80xf32>, vector<1x80xf32> -> vector<1x80xf32>
    %c1000 = arith.constant 1000 : index
    %c0_77 = arith.constant 0 : index
    %107 = vector.load %arg2[%c1000, %c0_77] : memref<1024x128xf32, #tpu.memory_space<vmem>>, vector<1x80xf32>
    %108 = arith.mulf %98, %104 : vector<1x16xf32>
    %cst_78 = arith.constant dense<0.000000e+00> : vector<1x80xf32>
    %109 = tpu.matmul %108, %105, %cst_78 {dimension_numbers = #tpu.dot_dimension_numbers<[1], [0], [0], [1], [0, 0, 1, 1], [], []>} : vector<1x16xf32>, vector<16x80xf32>, vector<1x80xf32> -> vector<1x80xf32>
    %110 = arith.subf %107, %109 : vector<1x80xf32>
    %111 = vector.broadcast %106 : vector<1x80xf32> to vector<40x80xf32>
    %112 = arith.mulf %91, %111 : vector<40x80xf32>
    %113 = vector.broadcast %110 : vector<1x80xf32> to vector<40x80xf32>
    %114 = arith.addf %112, %113 : vector<40x80xf32>
    %115 = vector.extract_strided_slice %114 {offsets = [0, 0], sizes = [8, 80], strides = [1, 1]} : vector<40x80xf32> to vector<8x80xf32>
    %116 = arith.truncf %115 : vector<8x80xf32> to vector<8x80xbf16>
    %c0_79 = arith.constant 0 : index
    %c0_80 = arith.constant 0 : index
    %117 = vector.load %arg3[%c0_79, %c0_80] : memref<528x128xbf16, #tpu.memory_space<vmem>>, vector<80x128xbf16>
    %cst_81 = arith.constant dense<0.000000e+00> : vector<8x128xf32>
    %118 = tpu.matmul %116, %117, %cst_81 {dimension_numbers = #tpu.dot_dimension_numbers<[1], [0], [0], [1], [0, 0, 1, 1], [], []>} : vector<8x80xbf16>, vector<80x128xbf16>, vector<8x128xf32> -> vector<8x128xf32>
    %119 = vector.extract_strided_slice %114 {offsets = [8, 0], sizes = [8, 80], strides = [1, 1]} : vector<40x80xf32> to vector<8x80xf32>
    %120 = arith.truncf %119 : vector<8x80xf32> to vector<8x80xbf16>
    %c80 = arith.constant 80 : index
    %c0_82 = arith.constant 0 : index
    %121 = vector.load %arg3[%c80, %c0_82] : memref<528x128xbf16, #tpu.memory_space<vmem>>, vector<80x128xbf16>
    %cst_83 = arith.constant dense<0.000000e+00> : vector<8x128xf32>
    %122 = tpu.matmul %120, %121, %cst_83 {dimension_numbers = #tpu.dot_dimension_numbers<[1], [0], [0], [1], [0, 0, 1, 1], [], []>} : vector<8x80xbf16>, vector<80x128xbf16>, vector<8x128xf32> -> vector<8x128xf32>
    %123 = arith.addf %118, %122 : vector<8x128xf32>
    %124 = vector.extract_strided_slice %114 {offsets = [16, 0], sizes = [8, 80], strides = [1, 1]} : vector<40x80xf32> to vector<8x80xf32>
    %125 = arith.truncf %124 : vector<8x80xf32> to vector<8x80xbf16>
    %c160 = arith.constant 160 : index
    %c0_84 = arith.constant 0 : index
    %126 = vector.load %arg3[%c160, %c0_84] : memref<528x128xbf16, #tpu.memory_space<vmem>>, vector<80x128xbf16>
    %cst_85 = arith.constant dense<0.000000e+00> : vector<8x128xf32>
    %127 = tpu.matmul %125, %126, %cst_85 {dimension_numbers = #tpu.dot_dimension_numbers<[1], [0], [0], [1], [0, 0, 1, 1], [], []>} : vector<8x80xbf16>, vector<80x128xbf16>, vector<8x128xf32> -> vector<8x128xf32>
    %128 = arith.addf %123, %127 : vector<8x128xf32>
    %129 = vector.extract_strided_slice %114 {offsets = [24, 0], sizes = [8, 80], strides = [1, 1]} : vector<40x80xf32> to vector<8x80xf32>
    %130 = arith.truncf %129 : vector<8x80xf32> to vector<8x80xbf16>
    %c240 = arith.constant 240 : index
    %c0_86 = arith.constant 0 : index
    %131 = vector.load %arg3[%c240, %c0_86] : memref<528x128xbf16, #tpu.memory_space<vmem>>, vector<80x128xbf16>
    %cst_87 = arith.constant dense<0.000000e+00> : vector<8x128xf32>
    %132 = tpu.matmul %130, %131, %cst_87 {dimension_numbers = #tpu.dot_dimension_numbers<[1], [0], [0], [1], [0, 0, 1, 1], [], []>} : vector<8x80xbf16>, vector<80x128xbf16>, vector<8x128xf32> -> vector<8x128xf32>
    %133 = arith.addf %128, %132 : vector<8x128xf32>
    %134 = vector.extract_strided_slice %114 {offsets = [32, 0], sizes = [8, 80], strides = [1, 1]} : vector<40x80xf32> to vector<8x80xf32>
    %135 = arith.truncf %134 : vector<8x80xf32> to vector<8x80xbf16>
    %c320 = arith.constant 320 : index
    %c0_88 = arith.constant 0 : index
    %136 = vector.load %arg3[%c320, %c0_88] : memref<528x128xbf16, #tpu.memory_space<vmem>>, vector<80x128xbf16>
    %cst_89 = arith.constant dense<0.000000e+00> : vector<8x128xf32>
    %137 = tpu.matmul %135, %136, %cst_89 {dimension_numbers = #tpu.dot_dimension_numbers<[1], [0], [0], [1], [0, 0, 1, 1], [], []>} : vector<8x80xbf16>, vector<80x128xbf16>, vector<8x128xf32> -> vector<8x128xf32>
    %138 = arith.addf %133, %137 : vector<8x128xf32>
    %c1008 = arith.constant 1008 : index
    %c0_90 = arith.constant 0 : index
    %139 = vector.load %arg2[%c1008, %c0_90] : memref<1024x128xf32, #tpu.memory_space<vmem>>, vector<1x128xf32>
    %140 = vector.broadcast %139 : vector<1x128xf32> to vector<8x128xf32>
    %141 = arith.addf %138, %140 : vector<8x128xf32>
    %cst_91 = arith.constant 0.000000e+00 : f32
    %142 = vector.broadcast %cst_91 : f32 to vector<8x128xf32>
    %143 = arith.maximumf %141, %142 : vector<8x128xf32>
    %144 = arith.truncf %143 : vector<8x128xf32> to vector<8x128xbf16>
    %c400_92 = arith.constant 400 : index
    %c0_93 = arith.constant 0 : index
    %145 = vector.load %arg3[%c400_92, %c0_93] : memref<528x128xbf16, #tpu.memory_space<vmem>>, vector<128x128xbf16>
    %cst_94 = arith.constant dense<0.000000e+00> : vector<8x128xf32>
    %146 = tpu.matmul %144, %145, %cst_94 {dimension_numbers = #tpu.dot_dimension_numbers<[1], [0], [0], [1], [0, 0, 1, 1], [], []>} : vector<8x128xbf16>, vector<128x128xbf16>, vector<8x128xf32> -> vector<8x128xf32>
    %c1016 = arith.constant 1016 : index
    %c0_95 = arith.constant 0 : index
    %147 = vector.load %arg2[%c1016, %c0_95] : memref<1024x128xf32, #tpu.memory_space<vmem>>, vector<1x128xf32>
    %148 = vector.broadcast %147 : vector<1x128xf32> to vector<8x128xf32>
    %149 = arith.addf %146, %148 : vector<8x128xf32>
    %cst_96 = arith.constant 0.000000e+00 : f32
    %150 = vector.broadcast %cst_96 : f32 to vector<8x128xf32>
    %151 = arith.maximumf %149, %150 : vector<8x128xf32>
    %152 = arith.truncf %151 : vector<8x128xf32> to vector<8x128xbf16>
    %c0_97 = arith.constant 0 : index
    %c0_98 = arith.constant 0 : index
    %153 = vector.load %arg4[%c0_97, %c0_98] : memref<136x1024xbf16, #tpu.memory_space<vmem>>, vector<128x1024xbf16>
    %cst_99 = arith.constant dense<0.000000e+00> : vector<8x1024xf32>
    %154 = tpu.matmul %152, %153, %cst_99 {dimension_numbers = #tpu.dot_dimension_numbers<[1], [0], [0], [1], [0, 0, 1, 1], [], []>} : vector<8x128xbf16>, vector<128x1024xbf16>, vector<8x1024xf32> -> vector<8x1024xf32>
    %c128 = arith.constant 128 : index
    %c0_100 = arith.constant 0 : index
    %155 = vector.load %arg4[%c128, %c0_100] : memref<136x1024xbf16, #tpu.memory_space<vmem>>, vector<1x1024xbf16>
    %156 = arith.extf %155 : vector<1x1024xbf16> to vector<1x1024xf32>
    %157 = vector.broadcast %156 : vector<1x1024xf32> to vector<8x1024xf32>
    %158 = arith.addf %154, %157 : vector<8x1024xf32>
    %c0_101 = arith.constant 0 : index
    %c0_102 = arith.constant 0 : index
    %159 = vector.load %arg5[%c0_101, %c0_102] : memref<8x1024xf32, #tpu.memory_space<vmem>>, vector<8x1024xf32>
    tpu.vector_store %arg5[%c0_101, %c0_102], %158 {strides = array<i32>} : memref<8x1024xf32, #tpu.memory_space<vmem>>, vector<8x1024xf32>,
    return
  }
}

</mosaic_0001>

<llo_original>
// kernel: forward.1
$region0: #{forward.1}
  #allocation0 [shape = 'u32[]', space=smem, size = 0x4, offset = 0x4, fixed_abs, tag = 'smem constant byte address 0x4 - core index']
  #allocation1 [shape = 'u32[144,128]{1,0:T(1,128)}', space=vmem, size = 0x12000, scoped, tag = 'internal scratch']
  #allocation2 [shape = 'f32[28,84]{1,0:T(8,128)}', space=vmem, size = 0x4000, scoped, tag = 'scratch operand']
  %s0 = inlined_call_operand.vmem [shape: f32[64,96], index: 0, kind: input, shape index: {}]
  %s1 = inlined_call_operand.vmem [shape: f32[936,168], index: 1, kind: input, shape index: {}]
  %s2 = inlined_call_operand.vmem [shape: f32[1024,128], index: 2, kind: input, shape index: {}]
  %s3 = inlined_call_operand.vmem [shape: bf16[528,128], index: 3, kind: input, shape index: {}]
  %s4 = inlined_call_operand.vmem [shape: bf16[136,1024], index: 4, kind: input, shape index: {}]
  %s5 = inlined_call_operand.vmem [shape: f32[8,1024], index: 5, kind: output, shape index: {}]
  %s6 = sld [smem:[#allocation0]]
  $region30: #{forward.1} parent=0
    _
  %s8 = ssub.s32 1, %s6
  %s9 = scalar_select 0, %s8, %s6
  // Predicated region
  $region2: #{forward.1} parent=0 // pred_check
    _
  $region3: #{forward.1} parent=0 // pred_check_branch
    %11 = sbr.rel (0) target = $region5
  $region4: #{forward.1} parent=0 // pred_region
    _
  $region5: #{forward.1} parent=0 // pred_fallthru
    _
  // Predicated region
  $region6: #{forward.1} parent=0 // pred_check
    _
  $region7: #{forward.1} parent=0 // pred_check_branch
    %13 = sbr.rel (0) target = $region9
  $region8: #{forward.1} parent=0 // pred_region
    _
  $region9: #{forward.1} parent=0 // pred_fallthru
    _
  // Predicated region
  $region10: #{forward.1} parent=0 // pred_check
    _
  $region11: #{forward.1} parent=0 // pred_check_branch
    %15 = sbr.rel (0) target = $region13
  $region12: #{forward.1} parent=0 // pred_region
    _
  $region13: #{forward.1} parent=0 // pred_fallthru
    _
  // Predicated region
  $region14: #{forward.1} parent=0 // pred_check
    _
  $region15: #{forward.1} parent=0 // pred_check_branch
    %17 = sbr.rel (0) target = $region17
  $region16: #{forward.1} parent=0 // pred_region
    _
  $region17: #{forward.1} parent=0 // pred_fallthru
    _
  // Predicated region
  $region18: #{forward.1} parent=0 // pred_check
    _
  $region19: #{forward.1} parent=0 // pred_check_branch
    %19 = sbr.rel (0) target = $region21
  $region20: #{forward.1} parent=0 // pred_region
    _
  $region21: #{forward.1} parent=0 // pred_fallthru
    _
  %v21 = vld [vmem:[%s0] sm:$0xff]
  %v22 = vld [vmem:[%s0 + $0x8] sm:$0xff]
  %v23 = vld [vmem:[%s0 + $0x10] sm:$0xff]
  %v24 = vld [vmem:[%s0 + $0x18] sm:$0xff]
  %v25 = vld [vmem:[%s0 + $0x20] sm:$0xff]
  %v26 = vld [vmem:[%s0 + $0x28] sm:$0xff]
  %v27 = vld [vmem:[%s0 + $0x30] sm:$0xff]
  %v28 = vld [vmem:[%s0 + $0x38] sm:$0xf]
  %v29 = vld [vmem:[%s1] sm:$0xff]
  %v30 = vld [vmem:[%s1 + $0x8] sm:$0xff]
  %v31 = vld [vmem:[%s1 + $0x10] sm:$0xff]
  %v32 = vld [vmem:[%s1 + $0x18] sm:$0xff]
  %v33 = vld [vmem:[%s1 + $0x20] sm:$0xff]
  %v34 = vld [vmem:[%s1 + $0x28] sm:$0xff]
  %v35 = vld [vmem:[%s1 + $0x30] sm:$0xff]
  %v36 = vld [vmem:[%s1 + $0x38] sm:$0xff]
  %v37 = vld [vmem:[%s1 + $0x40] sm:$0xff]
  %v38 = vld [vmem:[%s1 + $0x48] sm:$0xff]
  %v39 = vld [vmem:[%s1 + $0x50] sm:$0xff]
  %v40 = vld [vmem:[%s1 + $0x58] sm:$0xff]
  %v41 = vld [vmem:[%s1 + $0x60] sm:$0xff]
  %v42 = vld [vmem:[%s1 + $0x68] sm:$0xff]
  %v43 = vld [vmem:[%s1 + $0x70] sm:$0xff]
  %v44 = vld [vmem:[%s1 + $0x78] sm:$0xff]
  %v45 = vld [vmem:[%s1 + $0x80] sm:$0xff]
  %v46 = vld [vmem:[%s1 + $0x88] sm:$0xff]
  %v47 = vld [vmem:[%s1 + $0x90] sm:$0xff]
  %v48 = vld [vmem:[%s1 + $0x98] sm:$0xff]
  %v49 = vld [vmem:[%s1 + $0xa0] sm:$0xff]
  %v50 = vld [vmem:[%s1 + $0xa8] sm:$0xff]
  %v51 = vld [vmem:[%s1 + $0xb0] sm:$0xff]
  %v52 = vld [vmem:[%s1 + $0xb8] sm:$0xff]
  %v53 = vld [vmem:[%s0 + $0x1] sm:$0xff]
  %v54 = vld [vmem:[%s0 + $0x9] sm:$0xff]
  %v55 = vld [vmem:[%s0 + $0x11] sm:$0xff]
  %v56 = vld [vmem:[%s0 + $0x19] sm:$0xff]
  %v57 = vld [vmem:[%s0 + $0x21] sm:$0xff]
  %v58 = vld [vmem:[%s0 + $0x29] sm:$0xff]
  %v59 = vld [vmem:[%s0 + $0x31] sm:$0xff]
  %v60 = vld [vmem:[%s0 + $0x39] sm:$0xf]
  %v61 = vld [vmem:[%s1 + $0xc0] sm:$0xff]
  %v62 = vld [vmem:[%s1 + $0xc8] sm:$0xff]
  %v63 = vld [vmem:[%s1 + $0xd0] sm:$0xff]
  %v64 = vld [vmem:[%s1 + $0xd8] sm:$0xff]
  %v65 = vld [vmem:[%s1 + $0xe0] sm:$0xff]
  %v66 = vld [vmem:[%s1 + $0xe8] sm:$0xff]
  %v67 = vld [vmem:[%s1 + $0xf0] sm:$0xff]
  %v68 = vld [vmem:[%s1 + $0xf8] sm:$0xff]
  %v69 = vld [vmem:[%s1 + $0x100] sm:$0xff]
  %v70 = vld [vmem:[%s1 + $0x108] sm:$0xff]
  %v71 = vld [vmem:[%s1 + $0x110] sm:$0xff]
  %v72 = vld [vmem:[%s1 + $0x118] sm:$0xff]
  %v73 = vld [vmem:[%s1 + $0x120] sm:$0xff]
  %v74 = vld [vmem:[%s1 + $0x128] sm:$0xff]
  %v75 = vld [vmem:[%s1 + $0x130] sm:$0xff]
  %v76 = vld [vmem:[%s1 + $0x138] sm:$0xff]
  %v77 = vld [vmem:[%s1 + $0x140] sm:$0xff]
  %v78 = vld [vmem:[%s1 + $0x148] sm:$0xff]
  %v79 = vld [vmem:[%s1 + $0x150] sm:$0xff]
  %v80 = vld [vmem:[%s1 + $0x158] sm:$0xff]
  %v81 = vld [vmem:[%s1 + $0x160] sm:$0xff]
  %v82 = vld [vmem:[%s1 + $0x168] sm:$0xff]
  %v83 = vld [vmem:[%s1 + $0x170] sm:$0xff]
  %v84 = vld [vmem:[%s1 + $0x178] sm:$0xff]
  %vm85 = vcmask 785408
  %v87 = vsel %vm85, %v53, 0
  %v90 = vsel %vm85, %v54, 0
  %v93 = vsel %vm85, %v55, 0
  %v96 = vsel %vm85, %v56, 0
  %v99 = vsel %vm85, %v57, 0
  %v102 = vsel %vm85, %v58, 0
  %v105 = vsel %vm85, %v59, 0
  %v108 = vsel %vm85, %v60, 0
  %110 = vmatprep.subr.mxu0 %v62
  %111 = vmatpush1.msra.mxu0 %v61
  %112 = vmatprep.subr.mxu0 %v64
  %113 = vmatpush1.msra.mxu0 %v63
  %114 = vmatprep.subr.mxu0 %v66
  %115 = vmatpush1.msra.mxu0 %v65
  %116 = vmatprep.subr.mxu0 %v68
  %117 = vmatpush1.msra.mxu0 %v67
  %118 = vmatprep.subr.mxu0 %v70
  %119 = vmatpush1.msra.mxu0 %v69
  %120 = vmatprep.subr.mxu0 %v72
  %121 = vmatpush1.msra.mxu0 %v71
  %122 = vmatprep.subr.mxu0 %v74
  %123 = vmatpush1.msra.mxu0 %v73
  %124 = vmatprep.subr.mxu0 %v76
  %125 = vmatpush1.msra.mxu0 %v75
  %126 = vmatprep.subr.mxu0 %v78
  %127 = vmatpush1.msra.mxu0 %v77
  %128 = vmatprep.subr.mxu0 %v80
  %129 = vmatpush1.msra.mxu0 %v79
  %130 = vmatprep.subr.mxu0 %v82
  %131 = vmatpush1.msra.mxu0 %v81
  %132 = vmatprep.subr.mxu0 %v84
  %133 = vmatpush1.msra.mxu0 %v83
  %134 = vmatprep.subr.mxu0 0.0
  %135 = vmatpush1.msra.mxu0 0.0
  %136 = vmatprep.subr.mxu0 0.0
  %137 = vmatpush1.msra.mxu0 0.0
  %138 = vmatprep.subr.mxu0 0.0
  %139 = vmatpush1.msra.mxu0 0.0
  %140 = vmatprep.subr.mxu0 0.0
  %141 = vmatpush1.msra.mxu0 0.0
  %142 = vmatprep.subr.mxu0 0.0
  %143 = vmatpush1.msra.mxu0 0.0
  %144 = vmatprep.subr.mxu0 0.0
  %145 = vmatpush1.msra.mxu0 0.0
  %146 = vmatprep.subr.mxu0 0.0
  %147 = vmatpush1.msra.mxu0 0.0
  %148 = vmatprep.subr.mxu0 0.0
  %149 = vmatpush1.msra.mxu0 0.0
  %150 = vmatprep.subr.mxu0 0.0
  %151 = vmatpush1.msra.mxu0 0.0
  %152 = vmatprep.subr.mxu0 0.0
  %153 = vmatpush1.msra.mxu0 0.0
  %154 = vmatprep.subr.mxu0 0.0
  %155 = vmatpush1.msra.mxu0 0.0
  %156 = vmatprep.subr.mxu0 0.0
  %157 = vmatpush1.msra.mxu0 0.0
  %158 = vmatprep.subr.mxu0 0.0
  %159 = vmatpush1.msra.mxu0 0.0
  %160 = vmatprep.subr.mxu0 0.0
  %161 = vmatpush1.msra.mxu0 0.0
  %162 = vmatprep.subr.mxu0 0.0
  %163 = vmatpush1.msra.mxu0 0.0
  %164 = vmatprep.subr.mxu0 0.0
  %165 = vmatpush1.msra.mxu0 0.0
  %166 = vmatprep.subr.mxu0 0.0
  %167 = vmatpush1.msra.mxu0 0.0
  %168 = vmatprep.subr.mxu0 0.0
  %169 = vmatpush1.msra.mxu0 0.0
  %170 = vmatprep.subr.mxu0 0.0
  %171 = vmatpush1.msra.mxu0 0.0
  %172 = vmatprep.subr.mxu0 0.0
  %173 = vmatpush1.msra.mxu0 0.0
  %174 = vmatprep.mubr.f32.mxu0 0.0
  %175 = vmatmul.mubr.f32.gmra.mrb[0].mxu0 %v87
  %v176 = vpop.f32.mrb[0].mxu0
  %v177 = vadd.f32 0.0, %v176
  %v178 = vpop.f32.mrb[0].mxu0
  %v179 = vadd.f32 0.0, %v178
  %180 = vmatprep.mubr.f32.mxu0 0.0
  %181 = vmatmul.mubr.f32.gmra.mrb[0].mxu0 %v90
  %v182 = vpop.f32.mrb[0].mxu0
  %v183 = vadd.f32 0.0, %v182
  %v184 = vpop.f32.mrb[0].mxu0
  %v185 = vadd.f32 0.0, %v184
  %186 = vmatprep.mubr.f32.mxu0 0.0
  %187 = vmatmul.mubr.f32.gmra.mrb[0].mxu0 %v93
  %v188 = vpop.f32.mrb[0].mxu0
  %v189 = vadd.f32 0.0, %v188
  %v190 = vpop.f32.mrb[0].mxu0
  %v191 = vadd.f32 0.0, %v190
  %192 = vmatprep.mubr.f32.mxu0 0.0
  %193 = vmatmul.mubr.f32.gmra.mrb[0].mxu0 %v96
  %v194 = vpop.f32.mrb[0].mxu0
  %v195 = vadd.f32 0.0, %v194
  %v196 = vpop.f32.mrb[0].mxu0
  %v197 = vadd.f32 0.0, %v196
  %198 = vmatprep.mubr.f32.mxu0 0.0
  %199 = vmatmul.mubr.f32.gmra.mrb[0].mxu0 %v99
  %v200 = vpop.f32.mrb[0].mxu0
  %v201 = vadd.f32 0.0, %v200
  %v202 = vpop.f32.mrb[0].mxu0
  %v203 = vadd.f32 0.0, %v202
  %204 = vmatprep.mubr.f32.mxu0 0.0
  %205 = vmatmul.mubr.f32.gmra.mrb[0].mxu0 %v102
  %v206 = vpop.f32.mrb[0].mxu0
  %v207 = vadd.f32 0.0, %v206
  %v208 = vpop.f32.mrb[0].mxu0
  %v209 = vadd.f32 0.0, %v208
  %210 = vmatprep.mubr.f32.mxu0 0.0
  %211 = vmatmul.mubr.f32.gmra.mrb[0].mxu0 %v105
  %v212 = vpop.f32.mrb[0].mxu0
  %v213 = vadd.f32 0.0, %v212
  %v214 = vpop.f32.mrb[0].mxu0
  %v215 = vadd.f32 0.0, %v214
  %216 = vmatprep.mubr.f32.mxu0 0.0
  %217 = vmatmul.mubr.f32.gmra.mrb[0].mxu0 %v108
  %v218 = vpop.f32.mrb[0].mxu0
  %v219 = vadd.f32 0.0, %v218
  %v220 = vpop.f32.mrb[0].mxu0
  %v221 = vadd.f32 0.0, %v220
  %222 = vdwg.mxu0
  %v224 = vsel %vm85, %v21, 0
  %v227 = vsel %vm85, %v22, 0
  %v230 = vsel %vm85, %v23, 0
  %v233 = vsel %vm85, %v24, 0
  %v236 = vsel %vm85, %v25, 0
  %v239 = vsel %vm85, %v26, 0
  %v242 = vsel %vm85, %v27, 0
  %v245 = vsel %vm85, %v28, 0
  %247 = vmatprep.subr.mxu0 %v30
  %248 = vmatpush1.msra.mxu0 %v29
  %249 = vmatprep.subr.mxu0 %v32
  %250 = vmatpush1.msra.mxu0 %v31
  %251 = vmatprep.subr.mxu0 %v34
  %252 = vmatpush1.msra.mxu0 %v33
  %253 = vmatprep.subr.mxu0 %v36
  %254 = vmatpush1.msra.mxu0 %v35
  %255 = vmatprep.subr.mxu0 %v38
  %256 = vmatpush1.msra.mxu0 %v37
  %257 = vmatprep.subr.mxu0 %v40
  %258 = vmatpush1.msra.mxu0 %v39
  %259 = vmatprep.subr.mxu0 %v42
  %260 = vmatpush1.msra.mxu0 %v41
  %261 = vmatprep.subr.mxu0 %v44
  %262 = vmatpush1.msra.mxu0 %v43
  %263 = vmatprep.subr.mxu0 %v46
  %264 = vmatpush1.msra.mxu0 %v45
  %265 = vmatprep.subr.mxu0 %v48
  %266 = vmatpush1.msra.mxu0 %v47
  %267 = vmatprep.subr.mxu0 %v50
  %268 = vmatpush1.msra.mxu0 %v49
  %269 = vmatprep.subr.mxu0 %v52
  %270 = vmatpush1.msra.mxu0 %v51
  %271 = vmatprep.subr.mxu0 0.0
  %272 = vmatpush1.msra.mxu0 0.0
  %273 = vmatprep.subr.mxu0 0.0
  %274 = vmatpush1.msra.mxu0 0.0
  %275 = vmatprep.subr.mxu0 0.0
  %276 = vmatpush1.msra.mxu0 0.0
  %277 = vmatprep.subr.mxu0 0.0
  %278 = vmatpush1.msra.mxu0 0.0
  %279 = vmatprep.subr.mxu0 0.0
  %280 = vmatpush1.msra.mxu0 0.0
  %281 = vmatprep.subr.mxu0 0.0
  %282 = vmatpush1.msra.mxu0 0.0
  %283 = vmatprep.subr.mxu0 0.0
  %284 = vmatpush1.msra.mxu0 0.0
  %285 = vmatprep.subr.mxu0 0.0
  %286 = vmatpush1.msra.mxu0 0.0
  %287 = vmatprep.subr.mxu0 0.0
  %288 = vmatpush1.msra.mxu0 0.0
  %289 = vmatprep.subr.mxu0 0.0
  %290 = vmatpush1.msra.mxu0 0.0
  %291 = vmatprep.subr.mxu0 0.0
  %292 = vmatpush1.msra.mxu0 0.0
  %293 = vmatprep.subr.mxu0 0.0
  %294 = vmatpush1.msra.mxu0 0.0
  %295 = vmatprep.subr.mxu0 0.0
  %296 = vmatpush1.msra.mxu0 0.0
  %297 = vmatprep.subr.mxu0 0.0
  %298 = vmatpush1.msra.mxu0 0.0
  %299 = vmatprep.subr.mxu0 0.0
  %300 = vmatpush1.msra.mxu0 0.0
  %301 = vmatprep.subr.mxu0 0.0
  %302 = vmatpush1.msra.mxu0 0.0
  %303 = vmatprep.subr.mxu0 0.0
  %304 = vmatpush1.msra.mxu0 0.0
  %305 = vmatprep.subr.mxu0 0.0
  %306 = vmatpush1.msra.mxu0 0.0
  %307 = vmatprep.subr.mxu0 0.0
  %308 = vmatpush1.msra.mxu0 0.0
  %309 = vmatprep.subr.mxu0 0.0
  %310 = vmatpush1.msra.mxu0 0.0
  %311 = vmatprep.mubr.f32.mxu0 0.0
  %312 = vmatmul.mubr.f32.gmra.mrb[0].mxu0 %v224
  %v313 = vpop.f32.mrb[0].mxu0
  %v314 = vadd.f32 %v177, %v313
  %v315 = vpop.f32.mrb[0].mxu0
  %v316 = vadd.f32 %v179, %v315
  %317 = vmatprep.mubr.f32.mxu0 0.0
  %318 = vmatmul.mubr.f32.gmra.mrb[0].mxu0 %v227
  %v319 = vpop.f32.mrb[0].mxu0
  %v320 = vadd.f32 %v183, %v319
  %v321 = vpop.f32.mrb[0].mxu0
  %v322 = vadd.f32 %v185, %v321
  %323 = vmatprep.mubr.f32.mxu0 0.0
  %324 = vmatmul.mubr.f32.gmra.mrb[0].mxu0 %v230
  %v325 = vpop.f32.mrb[0].mxu0
  %v326 = vadd.f32 %v189, %v325
  %v327 = vpop.f32.mrb[0].mxu0
  %v328 = vadd.f32 %v191, %v327
  %329 = vmatprep.mubr.f32.mxu0 0.0
  %330 = vmatmul.mubr.f32.gmra.mrb[0].mxu0 %v233
  %v331 = vpop.f32.mrb[0].mxu0
  %v332 = vadd.f32 %v195, %v331
  %v333 = vpop.f32.mrb[0].mxu0
  %v334 = vadd.f32 %v197, %v333
  %335 = vmatprep.mubr.f32.mxu0 0.0
  %336 = vmatmul.mubr.f32.gmra.mrb[0].mxu0 %v236
  %v337 = vpop.f32.mrb[0].mxu0
  %v338 = vadd.f32 %v201, %v337
  %v339 = vpop.f32.mrb[0].mxu0
  %v340 = vadd.f32 %v203, %v339
  %341 = vmatprep.mubr.f32.mxu0 0.0
  %342 = vmatmul.mubr.f32.gmra.mrb[0].mxu0 %v239
  %v343 = vpop.f32.mrb[0].mxu0
  %v344 = vadd.f32 %v207, %v343
  %v345 = vpop.f32.mrb[0].mxu0
  %v346 = vadd.f32 %v209, %v345
  %347 = vmatprep.mubr.f32.mxu0 0.0
  %348 = vmatmul.mubr.f32.gmra.mrb[0].mxu0 %v242
  %v349 = vpop.f32.mrb[0].mxu0
  %v350 = vadd.f32 %v213, %v349
  %v351 = vpop.f32.mrb[0].mxu0
  %v352 = vadd.f32 %v215, %v351
  %353 = vmatprep.mubr.f32.mxu0 0.0
  %354 = vmatmul.mubr.f32.gmra.mrb[0].mxu0 %v245
  %v355 = vpop.f32.mrb[0].mxu0
  %v356 = vadd.f32 %v219, %v355
  %v357 = vpop.f32.mrb[0].mxu0
  %v358 = vadd.f32 %v221, %v357
  %359 = vdwg.mxu0
  %v360 = vld [vmem:[%s0 + $0x2] sm:$0xff]
  %v361 = vld [vmem:[%s0 + $0xa] sm:$0xff]
  %v362 = vld [vmem:[%s0 + $0x12] sm:$0xff]
  %v363 = vld [vmem:[%s0 + $0x1a] sm:$0xff]
  %v364 = vld [vmem:[%s0 + $0x22] sm:$0xff]
  %v365 = vld [vmem:[%s0 + $0x2a] sm:$0xff]
  %v366 = vld [vmem:[%s0 + $0x32] sm:$0xff]
  %v367 = vld [vmem:[%s0 + $0x3a] sm:$0xf]
  %v368 = vld [vmem:[%s1 + $0x180] sm:$0xff]
  %v369 = vld [vmem:[%s1 + $0x188] sm:$0xff]
  %v370 = vld [vmem:[%s1 + $0x190] sm:$0xff]
  %v371 = vld [vmem:[%s1 + $0x198] sm:$0xff]
  %v372 = vld [vmem:[%s1 + $0x1a0] sm:$0xff]
  %v373 = vld [vmem:[%s1 + $0x1a8] sm:$0xff]
  %v374 = vld [vmem:[%s1 + $0x1b0] sm:$0xff]
  %v375 = vld [vmem:[%s1 + $0x1b8] sm:$0xff]
  %v376 = vld [vmem:[%s1 + $0x1c0] sm:$0xff]
  %v377 = vld [vmem:[%s1 + $0x1c8] sm:$0xff]
  %v378 = vld [vmem:[%s1 + $0x1d0] sm:$0xff]
  %v379 = vld [vmem:[%s1 + $0x1d8] sm:$0xff]
  %v380 = vld [vmem:[%s1 + $0x1e0] sm:$0xff]
  %v381 = vld [vmem:[%s1 + $0x1e8] sm:$0xff]
  %v382 = vld [vmem:[%s1 + $0x1f0] sm:$0xff]
  %v383 = vld [vmem:[%s1 + $0x1f8] sm:$0xff]
  %v384 = vld [vmem:[%s1 + $0x200] sm:$0xff]
  %v385 = vld [vmem:[%s1 + $0x208] sm:$0xff]
  %v386 = vld [vmem:[%s1 + $0x210] sm:$0xff]
  %v387 = vld [vmem:[%s1 + $0x218] sm:$0xff]
  %v388 = vld [vmem:[%s1 + $0x220] sm:$0xff]
  %v389 = vld [vmem:[%s1 + $0x228] sm:$0xff]
  %v390 = vld [vmem:[%s1 + $0x230] sm:$0xff]
  %v391 = vld [vmem:[%s1 + $0x238] sm:$0xff]
  %v393 = vsel %vm85, %v360, 0
  %v396 = vsel %vm85, %v361, 0
  %v399 = vsel %vm85, %v362, 0
  %v402 = vsel %vm85, %v363, 0
  %v405 = vsel %vm85, %v364, 0
  %v408 = vsel %vm85, %v365, 0
  %v411 = vsel %vm85, %v366, 0
  %v414 = vsel %vm85, %v367, 0
  %416 = vmatprep.subr.mxu0 %v369
  %417 = vmatpush1.msra.mxu0 %v368
  %418 = vmatprep.subr.mxu0 %v371
  %419 = vmatpush1.msra.mxu0 %v370
  %420 = vmatprep.subr.mxu0 %v373
  %421 = vmatpush1.msra.mxu0 %v372
  %422 = vmatprep.subr.mxu0 %v375
  %423 = vmatpush1.msra.mxu0 %v374
  %424 = vmatprep.subr.mxu0 %v377
  %425 = vmatpush1.msra.mxu0 %v376
  %426 = vmatprep.subr.mxu0 %v379
  %427 = vmatpush1.msra.mxu0 %v378
  %428 = vmatprep.subr.mxu0 %v381
  %429 = vmatpush1.msra.mxu0 %v380
  %430 = vmatprep.subr.mxu0 %v383
  %431 = vmatpush1.msra.mxu0 %v382
  %432 = vmatprep.subr.mxu0 %v385
  %433 = vmatpush1.msra.mxu0 %v384
  %434 = vmatprep.subr.mxu0 %v387
  %435 = vmatpush1.msra.mxu0 %v386
  %436 = vmatprep.subr.mxu0 %v389
  %437 = vmatpush1.msra.mxu0 %v388
  %438 = vmatprep.subr.mxu0 %v391
  %439 = vmatpush1.msra.mxu0 %v390
  %440 = vmatprep.subr.mxu0 0.0
  %441 = vmatpush1.msra.mxu0 0.0
  %442 = vmatprep.subr.mxu0 0.0
  %443 = vmatpush1.msra.mxu0 0.0
  %444 = vmatprep.subr.mxu0 0.0
  %445 = vmatpush1.msra.mxu0 0.0
  %446 = vmatprep.subr.mxu0 0.0
  %447 = vmatpush1.msra.mxu0 0.0
  %448 = vmatprep.subr.mxu0 0.0
  %449 = vmatpush1.msra.mxu0 0.0
  %450 = vmatprep.subr.mxu0 0.0
  %451 = vmatpush1.msra.mxu0 0.0
  %452 = vmatprep.subr.mxu0 0.0
  %453 = vmatpush1.msra.mxu0 0.0
  %454 = vmatprep.subr.mxu0 0.0
  %455 = vmatpush1.msra.mxu0 0.0
  %456 = vmatprep.subr.mxu0 0.0
  %457 = vmatpush1.msra.mxu0 0.0
  %458 = vmatprep.subr.mxu0 0.0
  %459 = vmatpush1.msra.mxu0 0.0
  %460 = vmatprep.subr.mxu0 0.0
  %461 = vmatpush1.msra.mxu0 0.0
  %462 = vmatprep.subr.mxu0 0.0
  %463 = vmatpush1.msra.mxu0 0.0
  %464 = vmatprep.subr.mxu0 0.0
  %465 = vmatpush1.msra.mxu0 0.0
  %466 = vmatprep.subr.mxu0 0.0
  %467 = vmatpush1.msra.mxu0 0.0
  %468 = vmatprep.subr.mxu0 0.0
  %469 = vmatpush1.msra.mxu0 0.0
  %470 = vmatprep.subr.mxu0 0.0
  %471 = vmatpush1.msra.mxu0 0.0
  %472 = vmatprep.subr.mxu0 0.0
  %473 = vmatpush1.msra.mxu0 0.0
  %474 = vmatprep.subr.mxu0 0.0
  %475 = vmatpush1.msra.mxu0 0.0
  %476 = vmatprep.subr.mxu0 0.0
  %477 = vmatpush1.msra.mxu0 0.0
  %478 = vmatprep.subr.mxu0 0.0
  %479 = vmatpush1.msra.mxu0 0.0
  %480 = vmatprep.mubr.f32.mxu0 0.0
  %481 = vmatmul.mubr.f32.gmra.mrb[0].mxu0 %v393
  %v482 = vpop.f32.mrb[0].mxu0
  %v483 = vadd.f32 0.0, %v482
  %v484 = vpop.f32.mrb[0].mxu0
  %v485 = vadd.f32 0.0, %v484
  %486 = vmatprep.mubr.f32.mxu0 0.0
  %487 = vmatmul.mubr.f32.gmra.mrb[0].mxu0 %v396
  %v488 = vpop.f32.mrb[0].mxu0
  %v489 = vadd.f32 0.0, %v488
  %v490 = vpop.f32.mrb[0].mxu0
  %v491 = vadd.f32 0.0, %v490
  %492 = vmatprep.mubr.f32.mxu0 0.0
  %493 = vmatmul.mubr.f32.gmra.mrb[0].mxu0 %v399
  %v494 = vpop.f32.mrb[0].mxu0
  %v495 = vadd.f32 0.0, %v494
  %v496 = vpop.f32.mrb[0].mxu0
  %v497 = vadd.f32 0.0, %v496
  %498 = vmatprep.mubr.f32.mxu0 0.0
  %499 = vmatmul.mubr.f32.gmra.mrb[0].mxu0 %v402
  %v500 = vpop.f32.mrb[0].mxu0
  %v501 = vadd.f32 0.0, %v500
  %v502 = vpop.f32.mrb[0].mxu0
  %v503 = vadd.f32 0.0, %v502
  %504 = vmatprep.mubr.f32.mxu0 0.0
  %505 = vmatmul.mubr.f32.gmra.mrb[0].mxu0 %v405
  %v506 = vpop.f32.mrb[0].mxu0
  %v507 = vadd.f32 0.0, %v506
  %v508 = vpop.f32.mrb[0].mxu0
  %v509 = vadd.f32 0.0, %v508
  %510 = vmatprep.mubr.f32.mxu0 0.0
  %511 = vmatmul.mubr.f32.gmra.mrb[0].mxu0 %v408
  %v512 = vpop.f32.mrb[0].mxu0
  %v513 = vadd.f32 0.0, %v512
  %v514 = vpop.f32.mrb[0].mxu0
  %v515 = vadd.f32 0.0, %v514
  %516 = vmatprep.mubr.f32.mxu0 0.0
  %517 = vmatmul.mubr.f32.gmra.mrb[0].mxu0 %v411
  %v518 = vpop.f32.mrb[0].mxu0
  %v519 = vadd.f32 0.0, %v518
  %v520 = vpop.f32.mrb[0].mxu0
  %v521 = vadd.f32 0.0, %v520
  %522 = vmatprep.mubr.f32.mxu0 0.0
  %523 = vmatmul.mubr.f32.gmra.mrb[0].mxu0 %v414
  %v524 = vpop.f32.mrb[0].mxu0
  %v525 = vadd.f32 0.0, %v524
  %v526 = vpop.f32.mrb[0].mxu0
  %v527 = vadd.f32 0.0, %v526
  %528 = vdwg.mxu0
  %v529 = vadd.f32 %v314, %v483
  %v530 = vadd.f32 %v316, %v485
  %v531 = vadd.f32 %v320, %v489
  %v532 = vadd.f32 %v322, %v491
  %v533 = vadd.f32 %v326, %v495
  %v534 = vadd.f32 %v328, %v497
  %v535 = vadd.f32 %v332, %v501
  %v536 = vadd.f32 %v334, %v503
  %v537 = vadd.f32 %v338, %v507
  %v538 = vadd.f32 %v340, %v509
  %v539 = vadd.f32 %v344, %v513
  %v540 = vadd.f32 %v346, %v515
  %v541 = vadd.f32 %v350, %v519
  %v542 = vadd.f32 %v352, %v521
  %v543 = vadd.f32 %v356, %v525
  %v544 = vadd.f32 %v358, %v527
  %v545 = vld [vmem:[%s0 + $0x3] sm:$0xff]
  %v546 = vld [vmem:[%s0 + $0xb] sm:$0xff]
  %v547 = vld [vmem:[%s0 + $0x13] sm:$0xff]
  %v548 = vld [vmem:[%s0 + $0x1b] sm:$0xff]
  %v549 = vld [vmem:[%s0 + $0x23] sm:$0xff]
  %v550 = vld [vmem:[%s0 + $0x2b] sm:$0xff]
  %v551 = vld [vmem:[%s0 + $0x33] sm:$0xff]
  %v552 = vld [vmem:[%s0 + $0x3b] sm:$0xf]
  %v553 = vld [vmem:[%s1 + $0x240] sm:$0xff]
  %v554 = vld [vmem:[%s1 + $0x248] sm:$0xff]
  %v555 = vld [vmem:[%s1 + $0x250] sm:$0xff]
  %v556 = vld [vmem:[%s1 + $0x258] sm:$0xff]
  %v557 = vld [vmem:[%s1 + $0x260] sm:$0xff]
  %v558 = vld [vmem:[%s1 + $0x268] sm:$0xff]
  %v559 = vld [vmem:[%s1 + $0x270] sm:$0xff]
  %v560 = vld [vmem:[%s1 + $0x278] sm:$0xff]
  %v561 = vld [vmem:[%s1 + $0x280] sm:$0xff]
  %v562 = vld [vmem:[%s1 + $0x288] sm:$0xff]
  %v563 = vld [vmem:[%s1 + $0x290] sm:$0xff]
  %v564 = vld [vmem:[%s1 + $0x298] sm:$0xff]
  %v565 = vld [vmem:[%s1 + $0x2a0] sm:$0xff]
  %v566 = vld [vmem:[%s1 + $0x2a8] sm:$0xff]
  %v567 = vld [vmem:[%s1 + $0x2b0] sm:$0xff]
  %v568 = vld [vmem:[%s1 + $0x2b8] sm:$0xff]
  %v569 = vld [vmem:[%s1 + $0x2c0] sm:$0xff]
  %v570 = vld [vmem:[%s1 + $0x2c8] sm:$0xff]
  %v571 = vld [vmem:[%s1 + $0x2d0] sm:$0xff]
  %v572 = vld [vmem:[%s1 + $0x2d8] sm:$0xff]
  %v573 = vld [vmem:[%s1 + $0x2e0] sm:$0xff]
  %v574 = vld [vmem:[%s1 + $0x2e8] sm:$0xff]
  %v575 = vld [vmem:[%s1 + $0x2f0] sm:$0xff]
  %v576 = vld [vmem:[%s1 + $0x2f8] sm:$0xff]
  %v578 = vsel %vm85, %v545, 0
  %v581 = vsel %vm85, %v546, 0
  %v584 = vsel %vm85, %v547, 0
  %v587 = vsel %vm85, %v548, 0
  %v590 = vsel %vm85, %v549, 0
  %v593 = vsel %vm85, %v550, 0
  %v596 = vsel %vm85, %v551, 0
  %v599 = vsel %vm85, %v552, 0
  %601 = vmatprep.subr.mxu0 %v554
  %602 = vmatpush1.msra.mxu0 %v553
  %603 = vmatprep.subr.mxu0 %v556
  %604 = vmatpush1.msra.mxu0 %v555
  %605 = vmatprep.subr.mxu0 %v558
  %606 = vmatpush1.msra.mxu0 %v557
  %607 = vmatprep.subr.mxu0 %v560
  %608 = vmatpush1.msra.mxu0 %v559
  %609 = vmatprep.subr.mxu0 %v562
  %610 = vmatpush1.msra.mxu0 %v561
  %611 = vmatprep.subr.mxu0 %v564
  %612 = vmatpush1.msra.mxu0 %v563
  %613 = vmatprep.subr.mxu0 %v566
  %614 = vmatpush1.msra.mxu0 %v565
  %615 = vmatprep.subr.mxu0 %v568
  %616 = vmatpush1.msra.mxu0 %v567
  %617 = vmatprep.subr.mxu0 %v570
  %618 = vmatpush1.msra.mxu0 %v569
  %619 = vmatprep.subr.mxu0 %v572
  %620 = vmatpush1.msra.mxu0 %v571
  %621 = vmatprep.subr.mxu0 %v574
  %622 = vmatpush1.msra.mxu0 %v573
  %623 = vmatprep.subr.mxu0 %v576
  %624 = vmatpush1.msra.mxu0 %v575
  %625 = vmatprep.subr.mxu0 0.0
  %626 = vmatpush1.msra.mxu0 0.0
  %627 = vmatprep.subr.mxu0 0.0
  %628 = vmatpush1.msra.mxu0 0.0
  %629 = vmatprep.subr.mxu0 0.0
  %630 = vmatpush1.msra.mxu0 0.0
  %631 = vmatprep.subr.mxu0 0.0
  %632 = vmatpush1.msra.mxu0 0.0
  %633 = vmatprep.subr.mxu0 0.0
  %634 = vmatpush1.msra.mxu0 0.0
  %635 = vmatprep.subr.mxu0 0.0
  %636 = vmatpush1.msra.mxu0 0.0
  %637 = vmatprep.subr.mxu0 0.0
  %638 = vmatpush1.msra.mxu0 0.0
  %639 = vmatprep.subr.mxu0 0.0
  %640 = vmatpush1.msra.mxu0 0.0
  %641 = vmatprep.subr.mxu0 0.0
  %642 = vmatpush1.msra.mxu0 0.0
  %643 = vmatprep.subr.mxu0 0.0
  %644 = vmatpush1.msra.mxu0 0.0
  %645 = vmatprep.subr.mxu0 0.0
  %646 = vmatpush1.msra.mxu0 0.0
  %647 = vmatprep.subr.mxu0 0.0
  %648 = vmatpush1.msra.mxu0 0.0
  %649 = vmatprep.subr.mxu0 0.0
  %650 = vmatpush1.msra.mxu0 0.0
  %651 = vmatprep.subr.mxu0 0.0
  %652 = vmatpush1.msra.mxu0 0.0
  %653 = vmatprep.subr.mxu0 0.0
  %654 = vmatpush1.msra.mxu0 0.0
  %655 = vmatprep.subr.mxu0 0.0
  %656 = vmatpush1.msra.mxu0 0.0
  %657 = vmatprep.subr.mxu0 0.0
  %658 = vmatpush1.msra.mxu0 0.0
  %659 = vmatprep.subr.mxu0 0.0
  %660 = vmatpush1.msra.mxu0 0.0
  %661 = vmatprep.subr.mxu0 0.0
  %662 = vmatpush1.msra.mxu0 0.0
  %663 = vmatprep.subr.mxu0 0.0
  %664 = vmatpush1.msra.mxu0 0.0
  %665 = vmatprep.mubr.f32.mxu0 0.0
  %666 = vmatmul.mubr.f32.gmra.mrb[0].mxu0 %v578
  %v667 = vpop.f32.mrb[0].mxu0
  %v668 = vadd.f32 0.0, %v667
  %v669 = vpop.f32.mrb[0].mxu0
  %v670 = vadd.f32 0.0, %v669
  %671 = vmatprep.mubr.f32.mxu0 0.0
  %672 = vmatmul.mubr.f32.gmra.mrb[0].mxu0 %v581
  %v673 = vpop.f32.mrb[0].mxu0
  %v674 = vadd.f32 0.0, %v673
  %v675 = vpop.f32.mrb[0].mxu0
  %v676 = vadd.f32 0.0, %v675
  %677 = vmatprep.mubr.f32.mxu0 0.0
  %678 = vmatmul.mubr.f32.gmra.mrb[0].mxu0 %v584
  %v679 = vpop.f32.mrb[0].mxu0
  %v680 = vadd.f32 0.0, %v679
  %v681 = vpop.f32.mrb[0].mxu0
  %v682 = vadd.f32 0.0, %v681
  %683 = vmatprep.mubr.f32.mxu0 0.0
  %684 = vmatmul.mubr.f32.gmra.mrb[0].mxu0 %v587
  %v685 = vpop.f32.mrb[0].mxu0
  %v686 = vadd.f32 0.0, %v685
  %v687 = vpop.f32.mrb[0].mxu0
  %v688 = vadd.f32 0.0, %v687
  %689 = vmatprep.mubr.f32.mxu0 0.0
  %690 = vmatmul.mubr.f32.gmra.mrb[0].mxu0 %v590
  %v691 = vpop.f32.mrb[0].mxu0
  %v692 = vadd.f32 0.0, %v691
  %v693 = vpop.f32.mrb[0].mxu0
  %v694 = vadd.f32 0.0, %v693
  %695 = vmatprep.mubr.f32.mxu0 0.0
  %696 = vmatmul.mubr.f32.gmra.mrb[0].mxu0 %v593
  %v697 = vpop.f32.mrb[0].mxu0
  %v698 = vadd.f32 0.0, %v697
  %v699 = vpop.f32.mrb[0].mxu0
  %v700 = vadd.f32 0.0, %v699
  %701 = vmatprep.mubr.f32.mxu0 0.0
  %702 = vmatmul.mubr.f32.gmra.mrb[0].mxu0 %v596
  %v703 = vpop.f32.mrb[0].mxu0
  %v704 = vadd.f32 0.0, %v703
  %v705 = vpop.f32.mrb[0].mxu0
  %v706 = vadd.f32 0.0, %v705
  %707 = vmatprep.mubr.f32.mxu0 0.0
  %708 = vmatmul.mubr.f32.gmra.mrb[0].mxu0 %v599
  %v709 = vpop.f32.mrb[0].mxu0
  %v710 = vadd.f32 0.0, %v709
  %v711 = vpop.f32.mrb[0].mxu0
  %v712 = vadd.f32 0.0, %v711
  %713 = vdwg.mxu0
  %v714 = vadd.f32 %v529, %v668
  %v715 = vadd.f32 %v530, %v670
  %v716 = vadd.f32 %v531, %v674
  %v717 = vadd.f32 %v532, %v676
  %v718 = vadd.f32 %v533, %v680
  %v719 = vadd.f32 %v534, %v682
  %v720 = vadd.f32 %v535, %v686
  %v721 = vadd.f32 %v536, %v688
  %v722 = vadd.f32 %v537, %v692
  %v723 = vadd.f32 %v538, %v694
  %v724 = vadd.f32 %v539, %v698
  %v725 = vadd.f32 %v540, %v700
  %v726 = vadd.f32 %v541, %v704
  %v727 = vadd.f32 %v542, %v706
  %v728 = vadd.f32 %v543, %v710
  %v729 = vadd.f32 %v544, %v712
  %v730 = vld [vmem:[%s0 + $0x4] sm:$0xff]
  %v731 = vld [vmem:[%s0 + $0xc] sm:$0xff]
  %v732 = vld [vmem:[%s0 + $0x14] sm:$0xff]
  %v733 = vld [vmem:[%s0 + $0x1c] sm:$0xff]
  %v734 = vld [vmem:[%s0 + $0x24] sm:$0xff]
  %v735 = vld [vmem:[%s0 + $0x2c] sm:$0xff]
  %v736 = vld [vmem:[%s0 + $0x34] sm:$0xff]
  %v737 = vld [vmem:[%s0 + $0x3c] sm:$0xf]
  %v738 = vld [vmem:[%s1 + $0x300] sm:$0xff]
  %v739 = vld [vmem:[%s1 + $0x308] sm:$0xff]
  %v740 = vld [vmem:[%s1 + $0x310] sm:$0xff]
  %v741 = vld [vmem:[%s1 + $0x318] sm:$0xff]
  %v742 = vld [vmem:[%s1 + $0x320] sm:$0xff]
  %v743 = vld [vmem:[%s1 + $0x328] sm:$0xff]
  %v744 = vld [vmem:[%s1 + $0x330] sm:$0xff]
  %v745 = vld [vmem:[%s1 + $0x338] sm:$0xff]
  %v746 = vld [vmem:[%s1 + $0x340] sm:$0xff]
  %v747 = vld [vmem:[%s1 + $0x348] sm:$0xff]
  %v748 = vld [vmem:[%s1 + $0x350] sm:$0xff]
  %v749 = vld [vmem:[%s1 + $0x358] sm:$0xff]
  %v750 = vld [vmem:[%s1 + $0x360] sm:$0xff]
  %v751 = vld [vmem:[%s1 + $0x368] sm:$0xff]
  %v752 = vld [vmem:[%s1 + $0x370] sm:$0xff]
  %v753 = vld [vmem:[%s1 + $0x378] sm:$0xff]
  %v754 = vld [vmem:[%s1 + $0x380] sm:$0xff]
  %v755 = vld [vmem:[%s1 + $0x388] sm:$0xff]
  %v756 = vld [vmem:[%s1 + $0x390] sm:$0xff]
  %v757 = vld [vmem:[%s1 + $0x398] sm:$0xff]
  %v758 = vld [vmem:[%s1 + $0x3a0] sm:$0xff]
  %v759 = vld [vmem:[%s1 + $0x3a8] sm:$0xff]
  %v760 = vld [vmem:[%s1 + $0x3b0] sm:$0xff]
  %v761 = vld [vmem:[%s1 + $0x3b8] sm:$0xff]
  %v763 = vsel %vm85, %v730, 0
  %v766 = vsel %vm85, %v731, 0
  %v769 = vsel %vm85, %v732, 0
  %v772 = vsel %vm85, %v733, 0
  %v775 = vsel %vm85, %v734, 0
  %v778 = vsel %vm85, %v735, 0
  %v781 = vsel %vm85, %v736, 0
  %v784 = vsel %vm85, %v737, 0
  %786 = vmatprep.subr.mxu0 %v739
  %787 = vmatpush1.msra.mxu0 %v738
  %788 = vmatprep.subr.mxu0 %v741
  %789 = vmatpush1.msra.mxu0 %v740
  %790 = vmatprep.subr.mxu0 %v743
  %791 = vmatpush1.msra.mxu0 %v742
  %792 = vmatprep.subr.mxu0 %v745
  %793 = vmatpush1.msra.mxu0 %v744
  %794 = vmatprep.subr.mxu0 %v747
  %795 = vmatpush1.msra.mxu0 %v746
  %796 = vmatprep.subr.mxu0 %v749
  %797 = vmatpush1.msra.mxu0 %v748
  %798 = vmatprep.subr.mxu0 %v751
  %799 = vmatpush1.msra.mxu0 %v750
  %800 = vmatprep.subr.mxu0 %v753
  %801 = vmatpush1.msra.mxu0 %v752
  %802 = vmatprep.subr.mxu0 %v755
  %803 = vmatpush1.msra.mxu0 %v754
  %804 = vmatprep.subr.mxu0 %v757
  %805 = vmatpush1.msra.mxu0 %v756
  %806 = vmatprep.subr.mxu0 %v759
  %807 = vmatpush1.msra.mxu0 %v758
  %808 = vmatprep.subr.mxu0 %v761
  %809 = vmatpush1.msra.mxu0 %v760
  %810 = vmatprep.subr.mxu0 0.0
  %811 = vmatpush1.msra.mxu0 0.0
  %812 = vmatprep.subr.mxu0 0.0
  %813 = vmatpush1.msra.mxu0 0.0
  %814 = vmatprep.subr.mxu0 0.0
  %815 = vmatpush1.msra.mxu0 0.0
  %816 = vmatprep.subr.mxu0 0.0
  %817 = vmatpush1.msra.mxu0 0.0
  %818 = vmatprep.subr.mxu0 0.0
  %819 = vmatpush1.msra.mxu0 0.0
  %820 = vmatprep.subr.mxu0 0.0
  %821 = vmatpush1.msra.mxu0 0.0
  %822 = vmatprep.subr.mxu0 0.0
  %823 = vmatpush1.msra.mxu0 0.0
  %824 = vmatprep.subr.mxu0 0.0
  %825 = vmatpush1.msra.mxu0 0.0
  %826 = vmatprep.subr.mxu0 0.0
  %827 = vmatpush1.msra.mxu0 0.0
  %828 = vmatprep.subr.mxu0 0.0
  %829 = vmatpush1.msra.mxu0 0.0
  %830 = vmatprep.subr.mxu0 0.0
  %831 = vmatpush1.msra.mxu0 0.0
  %832 = vmatprep.subr.mxu0 0.0
  %833 = vmatpush1.msra.mxu0 0.0
  %834 = vmatprep.subr.mxu0 0.0
  %835 = vmatpush1.msra.mxu0 0.0
  %836 = vmatprep.subr.mxu0 0.0
  %837 = vmatpush1.msra.mxu0 0.0
  %838 = vmatprep.subr.mxu0 0.0
  %839 = vmatpush1.msra.mxu0 0.0
  %840 = vmatprep.subr.mxu0 0.0
  %841 = vmatpush1.msra.mxu0 0.0
  %842 = vmatprep.subr.mxu0 0.0
  %843 = vmatpush1.msra.mxu0 0.0
  %844 = vmatprep.subr.mxu0 0.0
  %845 = vmatpush1.msra.mxu0 0.0
  %846 = vmatprep.subr.mxu0 0.0
  %847 = vmatpush1.msra.mxu0 0.0
  %848 = vmatprep.subr.mxu0 0.0
  %849 = vmatpush1.msra.mxu0 0.0
  %850 = vmatprep.mubr.f32.mxu0 0.0
  %851 = vmatmul.mubr.f32.gmra.mrb[0].mxu0 %v763
  %v852 = vpop.f32.mrb[0].mxu0
  %v853 = vadd.f32 0.0, %v852
  %v854 = vpop.f32.mrb[0].mxu0
  %v855 = vadd.f32 0.0, %v854
  %856 = vmatprep.mubr.f32.mxu0 0.0
  %857 = vmatmul.mubr.f32.gmra.mrb[0].mxu0 %v766
  %v858 = vpop.f32.mrb[0].mxu0
  %v859 = vadd.f32 0.0, %v858
  %v860 = vpop.f32.mrb[0].mxu0
  %v861 = vadd.f32 0.0, %v860
  %862 = vmatprep.mubr.f32.mxu0 0.0
  %863 = vmatmul.mubr.f32.gmra.mrb[0].mxu0 %v769
  %v864 = vpop.f32.mrb[0].mxu0
  %v865 = vadd.f32 0.0, %v864
  %v866 = vpop.f32.mrb[0].mxu0
  %v867 = vadd.f32 0.0, %v866
  %868 = vmatprep.mubr.f32.mxu0 0.0
  %869 = vmatmul.mubr.f32.gmra.mrb[0].mxu0 %v772
  %v870 = vpop.f32.mrb[0].mxu0
  %v871 = vadd.f32 0.0, %v870
  %v872 = vpop.f32.mrb[0].mxu0
  %v873 = vadd.f32 0.0, %v872
  %874 = vmatprep.mubr.f32.mxu0 0.0
  %875 = vmatmul.mubr.f32.gmra.mrb[0].mxu0 %v775
  %v876 = vpop.f32.mrb[0].mxu0
  %v877 = vadd.f32 0.0, %v876
  %v878 = vpop.f32.mrb[0].mxu0
  %v879 = vadd.f32 0.0, %v878
  %880 = vmatprep.mubr.f32.mxu0 0.0
  %881 = vmatmul.mubr.f32.gmra.mrb[0].mxu0 %v778
  %v882 = vpop.f32.mrb[0].mxu0
  %v883 = vadd.f32 0.0, %v882
  %v884 = vpop.f32.mrb[0].mxu0
  %v885 = vadd.f32 0.0, %v884
  %886 = vmatprep.mubr.f32.mxu0 0.0
  %887 = vmatmul.mubr.f32.gmra.mrb[0].mxu0 %v781
  %v888 = vpop.f32.mrb[0].mxu0
  %v889 = vadd.f32 0.0, %v888
  %v890 = vpop.f32.mrb[0].mxu0
  %v891 = vadd.f32 0.0, %v890
  %892 = vmatprep.mubr.f32.mxu0 0.0
  %893 = vmatmul.mubr.f32.gmra.mrb[0].mxu0 %v784
  %v894 = vpop.f32.mrb[0].mxu0
  %v895 = vadd.f32 0.0, %v894
  %v896 = vpop.f32.mrb[0].mxu0
  %v897 = vadd.f32 0.0, %v896
  %898 = vdwg.mxu0
  %v899 = vadd.f32 %v714, %v853
  %v900 = vadd.f32 %v715, %v855
  %v901 = vadd.f32 %v716, %v859
  %v902 = vadd.f32 %v717, %v861
  %v903 = vadd.f32 %v718, %v865
  %v904 = vadd.f32 %v719, %v867
  %v905 = vadd.f32 %v720, %v871
  %v906 = vadd.f32 %v721, %v873
  %v907 = vadd.f32 %v722, %v877
  %v908 = vadd.f32 %v723, %v879
  %v909 = vadd.f32 %v724, %v883
  %v910 = vadd.f32 %v725, %v885
  %v911 = vadd.f32 %v726, %v889
  %v912 = vadd.f32 %v727, %v891
  %v913 = vadd.f32 %v728, %v895
  %v914 = vadd.f32 %v729, %v897
  %s915 = scalar_lea.vmem %s1, 960
  %v916 = vld [vmem:[%s915] ss:$8 sm:$0x3]
  %v918 = vlaneseq
  %v919 = vshrl.u32 %v918, 7
  %v920 = vsub.s32 0, %v919
  %v921 = vrot.slane %v916, %v920
  %v922 = vlaneseq
  %v923 = vshrl.u32 %v922, 7
  %v924 = vsub.s32 1, %v923
  %v925 = vrot.slane %v916, %v924
  %v928 = vadd.f32 %v899, %v921
  %v929 = vadd.f32 %v900, %v925
  %v930 = vadd.f32 %v901, %v921
  %v931 = vadd.f32 %v902, %v925
  %v932 = vadd.f32 %v903, %v921
  %v933 = vadd.f32 %v904, %v925
  %v934 = vadd.f32 %v905, %v921
  %v935 = vadd.f32 %v906, %v925
  %v936 = vadd.f32 %v907, %v921
  %v937 = vadd.f32 %v908, %v925
  %v938 = vadd.f32 %v909, %v921
  %v939 = vadd.f32 %v910, %v925
  %v940 = vadd.f32 %v911, %v921
  %v941 = vadd.f32 %v912, %v925
  %v942 = vadd.f32 %v913, %v921
  %v943 = vadd.f32 %v914, %v925
  %v944 = vmax.f32 %v928, 0.0
  %v945 = vmax.f32 %v929, 0.0
  %v946 = vmax.f32 %v930, 0.0
  %v947 = vmax.f32 %v931, 0.0
  %v948 = vmax.f32 %v932, 0.0
  %v949 = vmax.f32 %v933, 0.0
  %v950 = vmax.f32 %v934, 0.0
  %v951 = vmax.f32 %v935, 0.0
  %v952 = vmax.f32 %v936, 0.0
  %v953 = vmax.f32 %v937, 0.0
  %v954 = vmax.f32 %v938, 0.0
  %v955 = vmax.f32 %v939, 0.0
  %v956 = vmax.f32 %v940, 0.0
  %v957 = vmax.f32 %v941, 0.0
  %v958 = vmax.f32 %v942, 0.0
  %v959 = vmax.f32 %v943, 0.0
  %v960 = vld [vmem:[%s2] sm:$0xff]
  %v961 = vld [vmem:[%s2 + $0x8] sm:$0xff]
  %v962 = vld [vmem:[%s2 + $0x10] sm:$0xff]
  %v963 = vld [vmem:[%s2 + $0x18] sm:$0xf]
  %vm964 = vcmask 490496
  %v966 = vsel %vm964, %v960, 0
  %v969 = vsel %vm964, %v961, 0
  %v972 = vsel %vm964, %v962, 0
  %v975 = vsel %vm964, %v963, 0
  %vm977 = vcmask 1043456
  %v979 = vsel %vm977, %v958, 0
  %v982 = vsel %vm977, %v959, 0
  %984 = vmatprep.subr.mxu0 %v945
  %985 = vmatpush1.msra.mxu0 %v944
  %986 = vmatprep.subr.mxu0 %v947
  %987 = vmatpush1.msra.mxu0 %v946
  %988 = vmatprep.subr.mxu0 %v949
  %989 = vmatpush1.msra.mxu0 %v948
  %990 = vmatprep.subr.mxu0 %v951
  %991 = vmatpush1.msra.mxu0 %v950
  %992 = vmatprep.subr.mxu0 %v953
  %993 = vmatpush1.msra.mxu0 %v952
  %994 = vmatprep.subr.mxu0 %v955
  %995 = vmatpush1.msra.mxu0 %v954
  %996 = vmatprep.subr.mxu0 %v957
  %997 = vmatpush1.msra.mxu0 %v956
  %998 = vmatprep.subr.mxu0 %v982
  %999 = vmatpush1.msra.mxu0 %v979
  %1000 = vmatprep.subr.mxu0 0.0
  %1001 = vmatpush1.msra.mxu0 0.0
  %1002 = vmatprep.subr.mxu0 0.0
  %1003 = vmatpush1.msra.mxu0 0.0
  %1004 = vmatprep.subr.mxu0 0.0
  %1005 = vmatpush1.msra.mxu0 0.0
  %1006 = vmatprep.subr.mxu0 0.0
  %1007 = vmatpush1.msra.mxu0 0.0
  %1008 = vmatprep.subr.mxu0 0.0
  %1009 = vmatpush1.msra.mxu0 0.0
  %1010 = vmatprep.subr.mxu0 0.0
  %1011 = vmatpush1.msra.mxu0 0.0
  %1012 = vmatprep.subr.mxu0 0.0
  %1013 = vmatpush1.msra.mxu0 0.0
  %1014 = vmatprep.subr.mxu0 0.0
  %1015 = vmatpush1.msra.mxu0 0.0
  %1016 = vmatprep.subr.mxu0 0.0
  %1017 = vmatpush1.msra.mxu0 0.0
  %1018 = vmatprep.subr.mxu0 0.0
  %1019 = vmatpush1.msra.mxu0 0.0
  %1020 = vmatprep.subr.mxu0 0.0
  %1021 = vmatpush1.msra.mxu0 0.0
  %1022 = vmatprep.subr.mxu0 0.0
  %1023 = vmatpush1.msra.mxu0 0.0
  %1024 = vmatprep.subr.mxu0 0.0
  %1025 = vmatpush1.msra.mxu0 0.0
  %1026 = vmatprep.subr.mxu0 0.0
  %1027 = vmatpush1.msra.mxu0 0.0
  %1028 = vmatprep.subr.mxu0 0.0
  %1029 = vmatpush1.msra.mxu0 0.0
  %1030 = vmatprep.subr.mxu0 0.0
  %1031 = vmatpush1.msra.mxu0 0.0
  %1032 = vmatprep.subr.mxu0 0.0
  %1033 = vmatpush1.msra.mxu0 0.0
  %1034 = vmatprep.subr.mxu0 0.0
  %1035 = vmatpush1.msra.mxu0 0.0
  %1036 = vmatprep.subr.mxu0 0.0
  %1037 = vmatpush1.msra.mxu0 0.0
  %1038 = vmatprep.subr.mxu0 0.0
  %1039 = vmatpush1.msra.mxu0 0.0
  %1040 = vmatprep.subr.mxu0 0.0
  %1041 = vmatpush1.msra.mxu0 0.0
  %1042 = vmatprep.subr.mxu0 0.0
  %1043 = vmatpush1.msra.mxu0 0.0
  %1044 = vmatprep.subr.mxu0 0.0
  %1045 = vmatpush1.msra.mxu0 0.0
  %1046 = vmatprep.subr.mxu0 0.0
  %1047 = vmatpush1.msra.mxu0 0.0
  %1048 = vmatprep.mubr.f32.mxu0 0.0
  %1049 = vmatmul.mubr.f32.gmra.mrb[0].mxu0 %v966
  %v1050 = vpop.f32.mrb[0].mxu0
  %v1051 = vadd.f32 0.0, %v1050
  %v1052 = vpop.f32.mrb[0].mxu0
  %v1053 = vadd.f32 0.0, %v1052
  %1054 = vmatprep.mubr.f32.mxu0 0.0
  %1055 = vmatmul.mubr.f32.gmra.mrb[0].mxu0 %v969
  %v1056 = vpop.f32.mrb[0].mxu0
  %v1057 = vadd.f32 0.0, %v1056
  %v1058 = vpop.f32.mrb[0].mxu0
  %v1059 = vadd.f32 0.0, %v1058
  %1060 = vmatprep.mubr.f32.mxu0 0.0
  %1061 = vmatmul.mubr.f32.gmra.mrb[0].mxu0 %v972
  %v1062 = vpop.f32.mrb[0].mxu0
  %v1063 = vadd.f32 0.0, %v1062
  %v1064 = vpop.f32.mrb[0].mxu0
  %v1065 = vadd.f32 0.0, %v1064
  %1066 = vmatprep.mubr.f32.mxu0 0.0
  %1067 = vmatmul.mubr.f32.gmra.mrb[0].mxu0 %v975
  %v1068 = vpop.f32.mrb[0].mxu0
  %v1069 = vadd.f32 0.0, %v1068
  %v1070 = vpop.f32.mrb[0].mxu0
  %v1071 = vadd.f32 0.0, %v1070
  %1072 = vdwg.mxu0
  %v1073 = vld [vmem:[%s2 + $0x20] sm:$0xff]
  %v1074 = vld [vmem:[%s2 + $0x28] sm:$0xff]
  %v1075 = vld [vmem:[%s2 + $0x30] sm:$0xff]
  %v1076 = vld [vmem:[%s2 + $0x38] sm:$0xf]
  %v1078 = vsel %vm964, %v1073, 0
  %v1081 = vsel %vm964, %v1074, 0
  %v1084 = vsel %vm964, %v1075, 0
  %v1087 = vsel %vm964, %v1076, 0
  %1089 = vmatprep.subr.mxu0 %v945
  %1090 = vmatpush1.msra.mxu0 %v944
  %1091 = vmatprep.subr.mxu0 %v947
  %1092 = vmatpush1.msra.mxu0 %v946
  %1093 = vmatprep.subr.mxu0 %v949
  %1094 = vmatpush1.msra.mxu0 %v948
  %1095 = vmatprep.subr.mxu0 %v951
  %1096 = vmatpush1.msra.mxu0 %v950
  %1097 = vmatprep.subr.mxu0 %v953
  %1098 = vmatpush1.msra.mxu0 %v952
  %1099 = vmatprep.subr.mxu0 %v955
  %1100 = vmatpush1.msra.mxu0 %v954
  %1101 = vmatprep.subr.mxu0 %v957
  %1102 = vmatpush1.msra.mxu0 %v956
  %1103 = vmatprep.subr.mxu0 %v982
  %1104 = vmatpush1.msra.mxu0 %v979
  %1105 = vmatprep.subr.mxu0 0.0
  %1106 = vmatpush1.msra.mxu0 0.0
  %1107 = vmatprep.subr.mxu0 0.0
  %1108 = vmatpush1.msra.mxu0 0.0
  %1109 = vmatprep.subr.mxu0 0.0
  %1110 = vmatpush1.msra.mxu0 0.0
  %1111 = vmatprep.subr.mxu0 0.0
  %1112 = vmatpush1.msra.mxu0 0.0
  %1113 = vmatprep.subr.mxu0 0.0
  %1114 = vmatpush1.msra.mxu0 0.0
  %1115 = vmatprep.subr.mxu0 0.0
  %1116 = vmatpush1.msra.mxu0 0.0
  %1117 = vmatprep.subr.mxu0 0.0
  %1118 = vmatpush1.msra.mxu0 0.0
  %1119 = vmatprep.subr.mxu0 0.0
  %1120 = vmatpush1.msra.mxu0 0.0
  %1121 = vmatprep.subr.mxu0 0.0
  %1122 = vmatpush1.msra.mxu0 0.0
  %1123 = vmatprep.subr.mxu0 0.0
  %1124 = vmatpush1.msra.mxu0 0.0
  %1125 = vmatprep.subr.mxu0 0.0
  %1126 = vmatpush1.msra.mxu0 0.0
  %1127 = vmatprep.subr.mxu0 0.0
  %1128 = vmatpush1.msra.mxu0 0.0
  %1129 = vmatprep.subr.mxu0 0.0
  %1130 = vmatpush1.msra.mxu0 0.0
  %1131 = vmatprep.subr.mxu0 0.0
  %1132 = vmatpush1.msra.mxu0 0.0
  %1133 = vmatprep.subr.mxu0 0.0
  %1134 = vmatpush1.msra.mxu0 0.0
  %1135 = vmatprep.subr.mxu0 0.0
  %1136 = vmatpush1.msra.mxu0 0.0
  %1137 = vmatprep.subr.mxu0 0.0
  %1138 = vmatpush1.msra.mxu0 0.0
  %1139 = vmatprep.subr.mxu0 0.0
  %1140 = vmatpush1.msra.mxu0 0.0
  %1141 = vmatprep.subr.mxu0 0.0
  %1142 = vmatpush1.msra.mxu0 0.0
  %1143 = vmatprep.subr.mxu0 0.0
  %1144 = vmatpush1.msra.mxu0 0.0
  %1145 = vmatprep.subr.mxu0 0.0
  %1146 = vmatpush1.msra.mxu0 0.0
  %1147 = vmatprep.subr.mxu0 0.0
  %1148 = vmatpush1.msra.mxu0 0.0
  %1149 = vmatprep.subr.mxu0 0.0
  %1150 = vmatpush1.msra.mxu0 0.0
  %1151 = vmatprep.subr.mxu0 0.0
  %1152 = vmatpush1.msra.mxu0 0.0
  %1153 = vmatprep.mubr.f32.mxu0 0.0
  %1154 = vmatmul.mubr.f32.gmra.mrb[0].mxu0 %v1078
  %v1155 = vpop.f32.mrb[0].mxu0
  %v1156 = vadd.f32 0.0, %v1155
  %v1157 = vpop.f32.mrb[0].mxu0
  %v1158 = vadd.f32 0.0, %v1157
  %1159 = vmatprep.mubr.f32.mxu0 0.0
  %1160 = vmatmul.mubr.f32.gmra.mrb[0].mxu0 %v1081
  %v1161 = vpop.f32.mrb[0].mxu0
  %v1162 = vadd.f32 0.0, %v1161
  %v1163 = vpop.f32.mrb[0].mxu0
  %v1164 = vadd.f32 0.0, %v1163
  %1165 = vmatprep.mubr.f32.mxu0 0.0
  %1166 = vmatmul.mubr.f32.gmra.mrb[0].mxu0 %v1084
  %v1167 = vpop.f32.mrb[0].mxu0
  %v1168 = vadd.f32 0.0, %v1167
  %v1169 = vpop.f32.mrb[0].mxu0
  %v1170 = vadd.f32 0.0, %v1169
  %1171 = vmatprep.mubr.f32.mxu0 0.0
  %1172 = vmatmul.mubr.f32.gmra.mrb[0].mxu0 %v1087
  %v1173 = vpop.f32.mrb[0].mxu0
  %v1174 = vadd.f32 0.0, %v1173
  %v1175 = vpop.f32.mrb[0].mxu0
  %v1176 = vadd.f32 0.0, %v1175
  %1177 = vdwg.mxu0
  %v1178 = vmax.f32 %v1051, %v1156
  %v1179 = vmax.f32 %v1053, %v1158
  %v1180 = vmax.f32 %v1057, %v1162
  %v1181 = vmax.f32 %v1059, %v1164
  %v1182 = vmax.f32 %v1063, %v1168
  %v1183 = vmax.f32 %v1065, %v1170
  %v1184 = vmax.f32 %v1069, %v1174
  %v1185 = vmax.f32 %v1071, %v1176
  %v1186 = vld [vmem:[%s2 + $0x40] sm:$0xff]
  %v1187 = vld [vmem:[%s2 + $0x48] sm:$0xff]
  %v1188 = vld [vmem:[%s2 + $0x50] sm:$0xff]
  %v1189 = vld [vmem:[%s2 + $0x58] sm:$0xff]
  %v1190 = vld [vmem:[%s2 + $0x60] sm:$0xff]
  %v1191 = vld [vmem:[%s2 + $0x68] sm:$0xff]
  %v1192 = vld [vmem:[%s2 + $0x70] sm:$0xff]
  %v1193 = vld [vmem:[%s2 + $0x78] sm:$0xff]
  %v1194 = vld [vmem:[%s2 + $0x80] sm:$0xff]
  %v1195 = vld [vmem:[%s2 + $0x88] sm:$0xff]
  %v1196 = vld [vmem:[%s2 + $0x90] sm:$0xff]
  %v1197 = vld [vmem:[%s2 + $0x98] sm:$0xff]
  %v1198 = vld [vmem:[%s2 + $0xa0] sm:$0xff]
  %v1199 = vld [vmem:[%s2 + $0xa8] sm:$0xff]
  %v1200 = vld [vmem:[%s2 + $0xb0] sm:$0xff]
  %v1201 = vld [vmem:[%s2 + $0xb8] sm:$0xff]
  %v1202 = vld [vmem:[%s2 + $0xc0] sm:$0xff]
  %v1203 = vld [vmem:[%s2 + $0xc8] sm:$0xff]
  %v1204 = vld [vmem:[%s2 + $0xd0] sm:$0xff]
  %v1205 = vld [vmem:[%s2 + $0xd8] sm:$0xff]
  %v1206 = vld [vmem:[%s2 + $0xe0] sm:$0xff]
  %vm1207 = vcmask 326656
  %v1209 = vsel %vm1207, %v1179, 0
  %v1212 = vsel %vm1207, %v1181, 0
  %v1215 = vsel %vm1207, %v1183, 0
  %v1218 = vsel %vm1207, %v1185, 0
  %1220 = vmatprep.subr.mxu0 0.0
  %1221 = vmatpush1.msra.mxu0 %v1186
  %1222 = vmatprep.subr.mxu0 0.0
  %1223 = vmatpush1.msra.mxu0 %v1187
  %1224 = vmatprep.subr.mxu0 0.0
  %1225 = vmatpush1.msra.mxu0 %v1188
  %1226 = vmatprep.subr.mxu0 0.0
  %1227 = vmatpush1.msra.mxu0 %v1189
  %1228 = vmatprep.subr.mxu0 0.0
  %1229 = vmatpush1.msra.mxu0 %v1190
  %1230 = vmatprep.subr.mxu0 0.0
  %1231 = vmatpush1.msra.mxu0 %v1191
  %1232 = vmatprep.subr.mxu0 0.0
  %1233 = vmatpush1.msra.mxu0 %v1192
  %1234 = vmatprep.subr.mxu0 0.0
  %1235 = vmatpush1.msra.mxu0 %v1193
  %1236 = vmatprep.subr.mxu0 0.0
  %1237 = vmatpush1.msra.mxu0 %v1194
  %1238 = vmatprep.subr.mxu0 0.0
  %1239 = vmatpush1.msra.mxu0 %v1195
  %1240 = vmatprep.subr.mxu0 0.0
  %1241 = vmatpush1.msra.mxu0 %v1196
  %1242 = vmatprep.subr.mxu0 0.0
  %1243 = vmatpush1.msra.mxu0 %v1197
  %1244 = vmatprep.subr.mxu0 0.0
  %1245 = vmatpush1.msra.mxu0 %v1198
  %1246 = vmatprep.subr.mxu0 0.0
  %1247 = vmatpush1.msra.mxu0 %v1199
  %1248 = vmatprep.subr.mxu0 0.0
  %1249 = vmatpush1.msra.mxu0 %v1200
  %1250 = vmatprep.subr.mxu0 0.0
  %1251 = vmatpush1.msra.mxu0 %v1201
  %1252 = vmatprep.subr.mxu0 0.0
  %1253 = vmatpush1.msra.mxu0 %v1202
  %1254 = vmatprep.subr.mxu0 0.0
  %1255 = vmatpush1.msra.mxu0 %v1203
  %1256 = vmatprep.subr.mxu0 0.0
  %1257 = vmatpush1.msra.mxu0 %v1204
  %1258 = vmatprep.subr.mxu0 0.0
  %1259 = vmatpush1.msra.mxu0 %v1205
  %1260 = vmatprep.subr.mxu0 0.0
  %1261 = vmatpush1.msra.mxu0 %v1206
  %1262 = vmatprep.subr.mxu0 0.0
  %1263 = vmatpush1.msra.mxu0 0.0
  %1264 = vmatprep.subr.mxu0 0.0
  %1265 = vmatpush1.msra.mxu0 0.0
  %1266 = vmatprep.subr.mxu0 0.0
  %1267 = vmatpush1.msra.mxu0 0.0
  %1268 = vmatprep.subr.mxu0 0.0
  %1269 = vmatpush1.msra.mxu0 0.0
  %1270 = vmatprep.subr.mxu0 0.0
  %1271 = vmatpush1.msra.mxu0 0.0
  %1272 = vmatprep.subr.mxu0 0.0
  %1273 = vmatpush1.msra.mxu0 0.0
  %1274 = vmatprep.subr.mxu0 0.0
  %1275 = vmatpush1.msra.mxu0 0.0
  %1276 = vmatprep.subr.mxu0 0.0
  %1277 = vmatpush1.msra.mxu0 0.0
  %1278 = vmatprep.subr.mxu0 0.0
  %1279 = vmatpush1.msra.mxu0 0.0
  %1280 = vmatprep.subr.mxu0 0.0
  %1281 = vmatpush1.msra.mxu0 0.0
  %1282 = vmatprep.subr.mxu0 0.0
  %1283 = vmatpush1.msra.mxu0 0.0
  %1284 = vmatprep.mubr.f32.mxu0 %v1209
  %1285 = vmatmul.mubr.f32.gmra.mrb[0].mxu0 %v1178
  %v1286 = vpop.f32.mrb[0].mxu0
  %v1287 = vadd.f32 0.0, %v1286
  %v1288 = vpop.f32.mrb[0].mxu0
  %1289 = vmatprep.mubr.f32.mxu0 %v1212
  %1290 = vmatmul.mubr.f32.gmra.mrb[0].mxu0 %v1180
  %v1291 = vpop.f32.mrb[0].mxu0
  %v1292 = vadd.f32 0.0, %v1291
  %v1293 = vpop.f32.mrb[0].mxu0
  %1294 = vmatprep.mubr.f32.mxu0 %v1215
  %1295 = vmatmul.mubr.f32.gmra.mrb[0].mxu0 %v1182
  %v1296 = vpop.f32.mrb[0].mxu0
  %v1297 = vadd.f32 0.0, %v1296
  %v1298 = vpop.f32.mrb[0].mxu0
  %1299 = vmatprep.mubr.f32.mxu0 %v1218
  %1300 = vmatmul.mubr.f32.gmra.mrb[0].mxu0 %v1184
  %v1301 = vpop.f32.mrb[0].mxu0
  %v1302 = vadd.f32 0.0, %v1301
  %v1303 = vpop.f32.mrb[0].mxu0
  %1304 = vdwg.mxu0
  %v1305 = vld [vmem:[%s2 + $0xe8] sm:$0xff]
  %v1306 = vld [vmem:[%s2 + $0xf0] sm:$0xff]
  %v1307 = vld [vmem:[%s2 + $0xf8] sm:$0xff]
  %v1308 = vld [vmem:[%s2 + $0x100] sm:$0xff]
  %v1309 = vld [vmem:[%s2 + $0x108] sm:$0xff]
  %v1310 = vld [vmem:[%s2 + $0x110] sm:$0xff]
  %v1311 = vld [vmem:[%s2 + $0x118] sm:$0xff]
  %v1312 = vld [vmem:[%s2 + $0x120] sm:$0xff]
  %v1313 = vld [vmem:[%s2 + $0x128] sm:$0xff]
  %v1314 = vld [vmem:[%s2 + $0x130] sm:$0xff]
  %v1315 = vld [vmem:[%s2 + $0x138] sm:$0xff]
  %v1316 = vld [vmem:[%s2 + $0x140] sm:$0xff]
  %v1317 = vld [vmem:[%s2 + $0x148] sm:$0xff]
  %v1318 = vld [vmem:[%s2 + $0x150] sm:$0xff]
  %v1319 = vld [vmem:[%s2 + $0x158] sm:$0xff]
  %v1320 = vld [vmem:[%s2 + $0x160] sm:$0xff]
  %v1321 = vld [vmem:[%s2 + $0x168] sm:$0xff]
  %v1322 = vld [vmem:[%s2 + $0x170] sm:$0xff]
  %v1323 = vld [vmem:[%s2 + $0x178] sm:$0xff]
  %v1324 = vld [vmem:[%s2 + $0x180] sm:$0xff]
  %v1325 = vld [vmem:[%s2 + $0x188] sm:$0xff]
  %1326 = vmatprep.subr.mxu0 0.0
  %1327 = vmatpush1.msra.mxu0 %v1305
  %1328 = vmatprep.subr.mxu0 0.0
  %1329 = vmatpush1.msra.mxu0 %v1306
  %1330 = vmatprep.subr.mxu0 0.0
  %1331 = vmatpush1.msra.mxu0 %v1307
  %1332 = vmatprep.subr.mxu0 0.0
  %1333 = vmatpush1.msra.mxu0 %v1308
  %1334 = vmatprep.subr.mxu0 0.0
  %1335 = vmatpush1.msra.mxu0 %v1309
  %1336 = vmatprep.subr.mxu0 0.0
  %1337 = vmatpush1.msra.mxu0 %v1310
  %1338 = vmatprep.subr.mxu0 0.0
  %1339 = vmatpush1.msra.mxu0 %v1311
  %1340 = vmatprep.subr.mxu0 0.0
  %1341 = vmatpush1.msra.mxu0 %v1312
  %1342 = vmatprep.subr.mxu0 0.0
  %1343 = vmatpush1.msra.mxu0 %v1313
  %1344 = vmatprep.subr.mxu0 0.0
  %1345 = vmatpush1.msra.mxu0 %v1314
  %1346 = vmatprep.subr.mxu0 0.0
  %1347 = vmatpush1.msra.mxu0 %v1315
  %1348 = vmatprep.subr.mxu0 0.0
  %1349 = vmatpush1.msra.mxu0 %v1316
  %1350 = vmatprep.subr.mxu0 0.0
  %1351 = vmatpush1.msra.mxu0 %v1317
  %1352 = vmatprep.subr.mxu0 0.0
  %1353 = vmatpush1.msra.mxu0 %v1318
  %1354 = vmatprep.subr.mxu0 0.0
  %1355 = vmatpush1.msra.mxu0 %v1319
  %1356 = vmatprep.subr.mxu0 0.0
  %1357 = vmatpush1.msra.mxu0 %v1320
  %1358 = vmatprep.subr.mxu0 0.0
  %1359 = vmatpush1.msra.mxu0 %v1321
  %1360 = vmatprep.subr.mxu0 0.0
  %1361 = vmatpush1.msra.mxu0 %v1322
  %1362 = vmatprep.subr.mxu0 0.0
  %1363 = vmatpush1.msra.mxu0 %v1323
  %1364 = vmatprep.subr.mxu0 0.0
  %1365 = vmatpush1.msra.mxu0 %v1324
  %1366 = vmatprep.subr.mxu0 0.0
  %1367 = vmatpush1.msra.mxu0 %v1325
  %1368 = vmatprep.subr.mxu0 0.0
  %1369 = vmatpush1.msra.mxu0 0.0
  %1370 = vmatprep.subr.mxu0 0.0
  %1371 = vmatpush1.msra.mxu0 0.0
  %1372 = vmatprep.subr.mxu0 0.0
  %1373 = vmatpush1.msra.mxu0 0.0
  %1374 = vmatprep.subr.mxu0 0.0
  %1375 = vmatpush1.msra.mxu0 0.0
  %1376 = vmatprep.subr.mxu0 0.0
  %1377 = vmatpush1.msra.mxu0 0.0
  %1378 = vmatprep.subr.mxu0 0.0
  %1379 = vmatpush1.msra.mxu0 0.0
  %1380 = vmatprep.subr.mxu0 0.0
  %1381 = vmatpush1.msra.mxu0 0.0
  %1382 = vmatprep.subr.mxu0 0.0
  %1383 = vmatpush1.msra.mxu0 0.0
  %1384 = vmatprep.subr.mxu0 0.0
  %1385 = vmatpush1.msra.mxu0 0.0
  %1386 = vmatprep.subr.mxu0 0.0
  %1387 = vmatpush1.msra.mxu0 0.0
  %1388 = vmatprep.subr.mxu0 0.0
  %1389 = vmatpush1.msra.mxu0 0.0
  %1390 = vmatprep.mubr.f32.mxu0 %v1209
  %1391 = vmatmul.mubr.f32.gmra.mrb[0].mxu0 %v1178
  %v1392 = vpop.f32.mrb[0].mxu0
  %v1393 = vadd.f32 0.0, %v1392
  %v1394 = vpop.f32.mrb[0].mxu0
  %1395 = vmatprep.mubr.f32.mxu0 %v1212
  %1396 = vmatmul.mubr.f32.gmra.mrb[0].mxu0 %v1180
  %v1397 = vpop.f32.mrb[0].mxu0
  %v1398 = vadd.f32 0.0, %v1397
  %v1399 = vpop.f32.mrb[0].mxu0
  %1400 = vmatprep.mubr.f32.mxu0 %v1215
  %1401 = vmatmul.mubr.f32.gmra.mrb[0].mxu0 %v1182
  %v1402 = vpop.f32.mrb[0].mxu0
  %v1403 = vadd.f32 0.0, %v1402
  %v1404 = vpop.f32.mrb[0].mxu0
  %1405 = vmatprep.mubr.f32.mxu0 %v1218
  %1406 = vmatmul.mubr.f32.gmra.mrb[0].mxu0 %v1184
  %v1407 = vpop.f32.mrb[0].mxu0
  %v1408 = vadd.f32 0.0, %v1407
  %v1409 = vpop.f32.mrb[0].mxu0
  %1410 = vdwg.mxu0
  %v1411 = vmax.f32 %v1287, %v1393
  %v1412 = vmax.f32 %v1292, %v1398
  %v1413 = vmax.f32 %v1297, %v1403
  %v1414 = vmax.f32 %v1302, %v1408
  %vm1415 = vcmask 687104
  %v1416 = vsel %vm1415, %v1411, 0.0
  %v1417 = vsel %vm1415, %v1412, 0.0
  %v1418 = vadd.f32 %v1416, %v1417
  %v1419 = vsel %vm1415, %v1413, 0.0
  %v1420 = vadd.f32 %v1418, %v1419
  %vm1421 = vcmask 683008
  %v1422 = vsel %vm1421, %v1414, 0.0
  %v1423 = vadd.f32 %v1420, %v1422
  %v1424 = vrot.slane %v1423, 4
  %v1425 = vadd.f32 %v1423, %v1424
  %v1426 = vrot.slane %v1425, 2
  %v1427 = vadd.f32 %v1425, %v1426
  %v1428 = vrot.slane %v1427, 1
  %v1429 = vadd.f32 %v1427, %v1428
  %v1430 = vmul.f32 %v1411, %v1411
  %v1431 = vmul.f32 %v1412, %v1412
  %v1432 = vmul.f32 %v1413, %v1413
  %v1433 = vmul.f32 %v1414, %v1414
  %v1434 = vsel %vm1415, %v1430, 0.0
  %v1435 = vsel %vm1415, %v1431, 0.0
  %v1436 = vadd.f32 %v1434, %v1435
  %v1437 = vsel %vm1415, %v1432, 0.0
  %v1438 = vadd.f32 %v1436, %v1437
  %v1439 = vsel %vm1421, %v1433, 0.0
  %v1440 = vadd.f32 %v1438, %v1439
  %v1441 = vrot.slane %v1440, 4
  %v1442 = vadd.f32 %v1440, %v1441
  %v1443 = vrot.slane %v1442, 2
  %v1444 = vadd.f32 %v1442, %v1443
  %v1445 = vrot.slane %v1444, 1
  %v1446 = vadd.f32 %v1444, %v1445
  %v1447 = vld [vmem:[%s2 + $0x190] sm:$0xff]
  %v1448 = vld [vmem:[%s2 + $0x198] sm:$0xff]
  %v1449 = vld [vmem:[%s2 + $0x1a0] sm:$0xff]
  %v1450 = vld [vmem:[%s2 + $0x1a8] sm:$0xff]
  %v1451 = vld [vmem:[%s2 + $0x1b0] sm:$0xff]
  %v1452 = vld [vmem:[%s2 + $0x1b8] sm:$0xff]
  %v1453 = vld [vmem:[%s2 + $0x1c0] sm:$0xff]
  %v1454 = vld [vmem:[%s2 + $0x1c8] sm:$0xff]
  %v1455 = vld [vmem:[%s2 + $0x1d0] sm:$0xff]
  %v1456 = vld [vmem:[%s2 + $0x1d8] sm:$0xff]
  %v1457 = vld [vmem:[%s2 + $0x1e0] sm:$0xf]
  %v1459 = vsel %vm1415, %v1429, 0
  %v1462 = vsel %vm977, %v1457, 0
  %1464 = vmatprep.subr.mxu0 0.0
  %1465 = vmatpush1.msra.mxu0 %v1447
  %1466 = vmatprep.subr.mxu0 0.0
  %1467 = vmatpush1.msra.mxu0 %v1448
  %1468 = vmatprep.subr.mxu0 0.0
  %1469 = vmatpush1.msra.mxu0 %v1449
  %1470 = vmatprep.subr.mxu0 0.0
  %1471 = vmatpush1.msra.mxu0 %v1450
  %1472 = vmatprep.subr.mxu0 0.0
  %1473 = vmatpush1.msra.mxu0 %v1451
  %1474 = vmatprep.subr.mxu0 0.0
  %1475 = vmatpush1.msra.mxu0 %v1452
  %1476 = vmatprep.subr.mxu0 0.0
  %1477 = vmatpush1.msra.mxu0 %v1453
  %1478 = vmatprep.subr.mxu0 0.0
  %1479 = vmatpush1.msra.mxu0 %v1454
  %1480 = vmatprep.subr.mxu0 0.0
  %1481 = vmatpush1.msra.mxu0 %v1455
  %1482 = vmatprep.subr.mxu0 0.0
  %1483 = vmatpush1.msra.mxu0 %v1456
  %1484 = vmatprep.subr.mxu0 0.0
  %1485 = vmatpush1.msra.mxu0 %v1462
  %1486 = vmatprep.subr.mxu0 0.0
  %1487 = vmatpush1.msra.mxu0 0.0
  %1488 = vmatprep.subr.mxu0 0.0
  %1489 = vmatpush1.msra.mxu0 0.0
  %1490 = vmatprep.subr.mxu0 0.0
  %1491 = vmatpush1.msra.mxu0 0.0
  %1492 = vmatprep.subr.mxu0 0.0
  %1493 = vmatpush1.msra.mxu0 0.0
  %1494 = vmatprep.subr.mxu0 0.0
  %1495 = vmatpush1.msra.mxu0 0.0
  %1496 = vmatprep.subr.mxu0 0.0
  %1497 = vmatpush1.msra.mxu0 0.0
  %1498 = vmatprep.subr.mxu0 0.0
  %1499 = vmatpush1.msra.mxu0 0.0
  %1500 = vmatprep.subr.mxu0 0.0
  %1501 = vmatpush1.msra.mxu0 0.0
  %1502 = vmatprep.subr.mxu0 0.0
  %1503 = vmatpush1.msra.mxu0 0.0
  %1504 = vmatprep.subr.mxu0 0.0
  %1505 = vmatpush1.msra.mxu0 0.0
  %1506 = vmatprep.subr.mxu0 0.0
  %1507 = vmatpush1.msra.mxu0 0.0
  %1508 = vmatprep.subr.mxu0 0.0
  %1509 = vmatpush1.msra.mxu0 0.0
  %1510 = vmatprep.subr.mxu0 0.0
  %1511 = vmatpush1.msra.mxu0 0.0
  %1512 = vmatprep.subr.mxu0 0.0
  %1513 = vmatpush1.msra.mxu0 0.0
  %1514 = vmatprep.subr.mxu0 0.0
  %1515 = vmatpush1.msra.mxu0 0.0
  %1516 = vmatprep.subr.mxu0 0.0
  %1517 = vmatpush1.msra.mxu0 0.0
  %1518 = vmatprep.subr.mxu0 0.0
  %1519 = vmatpush1.msra.mxu0 0.0
  %1520 = vmatprep.subr.mxu0 0.0
  %1521 = vmatpush1.msra.mxu0 0.0
  %1522 = vmatprep.subr.mxu0 0.0
  %1523 = vmatpush1.msra.mxu0 0.0
  %1524 = vmatprep.subr.mxu0 0.0
  %1525 = vmatpush1.msra.mxu0 0.0
  %1526 = vmatprep.subr.mxu0 0.0
  %1527 = vmatpush1.msra.mxu0 0.0
  %1528 = vmatprep.mubr.f32.mxu0 0.0
  %1529 = vmatmul.mubr.f32.gmra.mrb[0].mxu0 %v1459
  %v1530 = vpop.f32.mrb[0].mxu0
  %v1531 = vadd.f32 0.0, %v1530
  %v1532 = vpop.f32.mrb[0].mxu0
  %1533 = vdwg.mxu0
  %v1535 = vsel %vm1415, %v1446, 0
  %1537 = vmatprep.subr.mxu0 0.0
  %1538 = vmatpush1.msra.mxu0 %v1447
  %1539 = vmatprep.subr.mxu0 0.0
  %1540 = vmatpush1.msra.mxu0 %v1448
  %1541 = vmatprep.subr.mxu0 0.0
  %1542 = vmatpush1.msra.mxu0 %v1449
  %1543 = vmatprep.subr.mxu0 0.0
  %1544 = vmatpush1.msra.mxu0 %v1450
  %1545 = vmatprep.subr.mxu0 0.0
  %1546 = vmatpush1.msra.mxu0 %v1451
  %1547 = vmatprep.subr.mxu0 0.0
  %1548 = vmatpush1.msra.mxu0 %v1452
  %1549 = vmatprep.subr.mxu0 0.0
  %1550 = vmatpush1.msra.mxu0 %v1453
  %1551 = vmatprep.subr.mxu0 0.0
  %1552 = vmatpush1.msra.mxu0 %v1454
  %1553 = vmatprep.subr.mxu0 0.0
  %1554 = vmatpush1.msra.mxu0 %v1455
  %1555 = vmatprep.subr.mxu0 0.0
  %1556 = vmatpush1.msra.mxu0 %v1456
  %1557 = vmatprep.subr.mxu0 0.0
  %1558 = vmatpush1.msra.mxu0 %v1462
  %1559 = vmatprep.subr.mxu0 0.0
  %1560 = vmatpush1.msra.mxu0 0.0
  %1561 = vmatprep.subr.mxu0 0.0
  %1562 = vmatpush1.msra.mxu0 0.0
  %1563 = vmatprep.subr.mxu0 0.0
  %1564 = vmatpush1.msra.mxu0 0.0
  %1565 = vmatprep.subr.mxu0 0.0
  %1566 = vmatpush1.msra.mxu0 0.0
  %1567 = vmatprep.subr.mxu0 0.0
  %1568 = vmatpush1.msra.mxu0 0.0
  %1569 = vmatprep.subr.mxu0 0.0
  %1570 = vmatpush1.msra.mxu0 0.0
  %1571 = vmatprep.subr.mxu0 0.0
  %1572 = vmatpush1.msra.mxu0 0.0
  %1573 = vmatprep.subr.mxu0 0.0
  %1574 = vmatpush1.msra.mxu0 0.0
  %1575 = vmatprep.subr.mxu0 0.0
  %1576 = vmatpush1.msra.mxu0 0.0
  %1577 = vmatprep.subr.mxu0 0.0
  %1578 = vmatpush1.msra.mxu0 0.0
  %1579 = vmatprep.subr.mxu0 0.0
  %1580 = vmatpush1.msra.mxu0 0.0
  %1581 = vmatprep.subr.mxu0 0.0
  %1582 = vmatpush1.msra.mxu0 0.0
  %1583 = vmatprep.subr.mxu0 0.0
  %1584 = vmatpush1.msra.mxu0 0.0
  %1585 = vmatprep.subr.mxu0 0.0
  %1586 = vmatpush1.msra.mxu0 0.0
  %1587 = vmatprep.subr.mxu0 0.0
  %1588 = vmatpush1.msra.mxu0 0.0
  %1589 = vmatprep.subr.mxu0 0.0
  %1590 = vmatpush1.msra.mxu0 0.0
  %1591 = vmatprep.subr.mxu0 0.0
  %1592 = vmatpush1.msra.mxu0 0.0
  %1593 = vmatprep.subr.mxu0 0.0
  %1594 = vmatpush1.msra.mxu0 0.0
  %1595 = vmatprep.subr.mxu0 0.0
  %1596 = vmatpush1.msra.mxu0 0.0
  %1597 = vmatprep.subr.mxu0 0.0
  %1598 = vmatpush1.msra.mxu0 0.0
  %1599 = vmatprep.subr.mxu0 0.0
  %1600 = vmatpush1.msra.mxu0 0.0
  %1601 = vmatprep.mubr.f32.mxu0 0.0
  %1602 = vmatmul.mubr.f32.gmra.mrb[0].mxu0 %v1535
  %v1603 = vpop.f32.mrb[0].mxu0
  %v1604 = vadd.f32 0.0, %v1603
  %v1605 = vpop.f32.mrb[0].mxu0
  %1606 = vdwg.mxu0
  %v1607 = vmul.f32 %v1531, %v1531
  %v1608 = vsub.f32 %v1604, %v1607
  %v1609 = vadd.f32 %v1608, 1e-05
  %v1610 = vrsqrt.pop %v1609
  %v1611 = vld [vmem:[%s2 + $0x1e8] sm:$0x3f]
  %vm1612 = vcmask 48128
  %v1614 = vsel %vm1612, %v1610, 0
  %vm1616 = vcmask 1045504
  %v1618 = vsel %vm1616, %v1611, 0
  %1620 = vmatprep.subr.mxu0 0.0
  %1621 = vmatpush1.msra.mxu0 %v1618
  %1622 = vmatprep.subr.mxu0 0.0
  %1623 = vmatpush1.msra.mxu0 0.0
  %1624 = vmatprep.subr.mxu0 0.0
  %1625 = vmatpush1.msra.mxu0 0.0
  %1626 = vmatprep.subr.mxu0 0.0
  %1627 = vmatpush1.msra.mxu0 0.0
  %1628 = vmatprep.subr.mxu0 0.0
  %1629 = vmatpush1.msra.mxu0 0.0
  %1630 = vmatprep.subr.mxu0 0.0
  %1631 = vmatpush1.msra.mxu0 0.0
  %1632 = vmatprep.subr.mxu0 0.0
  %1633 = vmatpush1.msra.mxu0 0.0
  %1634 = vmatprep.subr.mxu0 0.0
  %1635 = vmatpush1.msra.mxu0 0.0
  %1636 = vmatprep.subr.mxu0 0.0
  %1637 = vmatpush1.msra.mxu0 0.0
  %1638 = vmatprep.subr.mxu0 0.0
  %1639 = vmatpush1.msra.mxu0 0.0
  %1640 = vmatprep.subr.mxu0 0.0
  %1641 = vmatpush1.msra.mxu0 0.0
  %1642 = vmatprep.subr.mxu0 0.0
  %1643 = vmatpush1.msra.mxu0 0.0
  %1644 = vmatprep.subr.mxu0 0.0
  %1645 = vmatpush1.msra.mxu0 0.0
  %1646 = vmatprep.subr.mxu0 0.0
  %1647 = vmatpush1.msra.mxu0 0.0
  %1648 = vmatprep.subr.mxu0 0.0
  %1649 = vmatpush1.msra.mxu0 0.0
  %1650 = vmatprep.subr.mxu0 0.0
  %1651 = vmatpush1.msra.mxu0 0.0
  %1652 = vmatprep.subr.mxu0 0.0
  %1653 = vmatpush1.msra.mxu0 0.0
  %1654 = vmatprep.subr.mxu0 0.0
  %1655 = vmatpush1.msra.mxu0 0.0
  %1656 = vmatprep.subr.mxu0 0.0
  %1657 = vmatpush1.msra.mxu0 0.0
  %1658 = vmatprep.subr.mxu0 0.0
  %1659 = vmatpush1.msra.mxu0 0.0
  %1660 = vmatprep.subr.mxu0 0.0
  %1661 = vmatpush1.msra.mxu0 0.0
  %1662 = vmatprep.subr.mxu0 0.0
  %1663 = vmatpush1.msra.mxu0 0.0
  %1664 = vmatprep.subr.mxu0 0.0
  %1665 = vmatpush1.msra.mxu0 0.0
  %1666 = vmatprep.subr.mxu0 0.0
  %1667 = vmatpush1.msra.mxu0 0.0
  %1668 = vmatprep.subr.mxu0 0.0
  %1669 = vmatpush1.msra.mxu0 0.0
  %1670 = vmatprep.subr.mxu0 0.0
  %1671 = vmatpush1.msra.mxu0 0.0
  %1672 = vmatprep.subr.mxu0 0.0
  %1673 = vmatpush1.msra.mxu0 0.0
  %1674 = vmatprep.subr.mxu0 0.0
  %1675 = vmatpush1.msra.mxu0 0.0
  %1676 = vmatprep.subr.mxu0 0.0
  %1677 = vmatpush1.msra.mxu0 0.0
  %1678 = vmatprep.subr.mxu0 0.0
  %1679 = vmatpush1.msra.mxu0 0.0
  %1680 = vmatprep.subr.mxu0 0.0
  %1681 = vmatpush1.msra.mxu0 0.0
  %1682 = vmatprep.subr.mxu0 0.0
  %1683 = vmatpush1.msra.mxu0 0.0
  %1684 = vmatprep.mubr.f32.mxu0 0.0
  %1685 = vmatmul.mubr.f32.gmra.mrb[0].mxu0 %v1614
  %v1686 = vpop.f32.mrb[0].mxu0
  %v1687 = vadd.f32 0.0, %v1686
  %v1688 = vpop.f32.mrb[0].mxu0
  %1689 = vdwg.mxu0
  %v1690 = vld [vmem:[%s2 + $0x1f0] sm:$0x1]
  %v1691 = vmul.f32 %v1531, %v1610
  %v1693 = vsel %vm1612, %v1691, 0
  %1695 = vmatprep.subr.mxu0 0.0
  %1696 = vmatpush1.msra.mxu0 %v1618
  %1697 = vmatprep.subr.mxu0 0.0
  %1698 = vmatpush1.msra.mxu0 0.0
  %1699 = vmatprep.subr.mxu0 0.0
  %1700 = vmatpush1.msra.mxu0 0.0
  %1701 = vmatprep.subr.mxu0 0.0
  %1702 = vmatpush1.msra.mxu0 0.0
  %1703 = vmatprep.subr.mxu0 0.0
  %1704 = vmatpush1.msra.mxu0 0.0
  %1705 = vmatprep.subr.mxu0 0.0
  %1706 = vmatpush1.msra.mxu0 0.0
  %1707 = vmatprep.subr.mxu0 0.0
  %1708 = vmatpush1.msra.mxu0 0.0
  %1709 = vmatprep.subr.mxu0 0.0
  %1710 = vmatpush1.msra.mxu0 0.0
  %1711 = vmatprep.subr.mxu0 0.0
  %1712 = vmatpush1.msra.mxu0 0.0
  %1713 = vmatprep.subr.mxu0 0.0
  %1714 = vmatpush1.msra.mxu0 0.0
  %1715 = vmatprep.subr.mxu0 0.0
  %1716 = vmatpush1.msra.mxu0 0.0
  %1717 = vmatprep.subr.mxu0 0.0
  %1718 = vmatpush1.msra.mxu0 0.0
  %1719 = vmatprep.subr.mxu0 0.0
  %1720 = vmatpush1.msra.mxu0 0.0
  %1721 = vmatprep.subr.mxu0 0.0
  %1722 = vmatpush1.msra.mxu0 0.0
  %1723 = vmatprep.subr.mxu0 0.0
  %1724 = vmatpush1.msra.mxu0 0.0
  %1725 = vmatprep.subr.mxu0 0.0
  %1726 = vmatpush1.msra.mxu0 0.0
  %1727 = vmatprep.subr.mxu0 0.0
  %1728 = vmatpush1.msra.mxu0 0.0
  %1729 = vmatprep.subr.mxu0 0.0
  %1730 = vmatpush1.msra.mxu0 0.0
  %1731 = vmatprep.subr.mxu0 0.0
  %1732 = vmatpush1.msra.mxu0 0.0
  %1733 = vmatprep.subr.mxu0 0.0
  %1734 = vmatpush1.msra.mxu0 0.0
  %1735 = vmatprep.subr.mxu0 0.0
  %1736 = vmatpush1.msra.mxu0 0.0
  %1737 = vmatprep.subr.mxu0 0.0
  %1738 = vmatpush1.msra.mxu0 0.0
  %1739 = vmatprep.subr.mxu0 0.0
  %1740 = vmatpush1.msra.mxu0 0.0
  %1741 = vmatprep.subr.mxu0 0.0
  %1742 = vmatpush1.msra.mxu0 0.0
  %1743 = vmatprep.subr.mxu0 0.0
  %1744 = vmatpush1.msra.mxu0 0.0
  %1745 = vmatprep.subr.mxu0 0.0
  %1746 = vmatpush1.msra.mxu0 0.0
  %1747 = vmatprep.subr.mxu0 0.0
  %1748 = vmatpush1.msra.mxu0 0.0
  %1749 = vmatprep.subr.mxu0 0.0
  %1750 = vmatpush1.msra.mxu0 0.0
  %1751 = vmatprep.subr.mxu0 0.0
  %1752 = vmatpush1.msra.mxu0 0.0
  %1753 = vmatprep.subr.mxu0 0.0
  %1754 = vmatpush1.msra.mxu0 0.0
  %1755 = vmatprep.subr.mxu0 0.0
  %1756 = vmatpush1.msra.mxu0 0.0
  %1757 = vmatprep.subr.mxu0 0.0
  %1758 = vmatpush1.msra.mxu0 0.0
  %1759 = vmatprep.mubr.f32.mxu0 0.0
  %1760 = vmatmul.mubr.f32.gmra.mrb[0].mxu0 %v1693
  %v1761 = vpop.f32.mrb[0].mxu0
  %v1762 = vadd.f32 0.0, %v1761
  %v1763 = vpop.f32.mrb[0].mxu0
  %1764 = vdwg.mxu0
  %v1765 = vsub.f32 %v1690, %v1762
  %v1766 = vlaneseq
  %v1767 = vshrl.u32 %v1766, 7
  %v1768 = vsub.s32 0, %v1767
  %v1769 = vrot.slane %v1687, %v1768
  %v1770 = vmul.f32 %v1411, %v1769
  %v1771 = vmul.f32 %v1412, %v1769
  %v1772 = vmul.f32 %v1413, %v1769
  %v1773 = vmul.f32 %v1414, %v1769
  %v1774 = vlaneseq
  %v1775 = vshrl.u32 %v1774, 7
  %v1776 = vsub.s32 0, %v1775
  %v1777 = vrot.slane %v1765, %v1776
  %v1778 = vadd.f32 %v1770, %v1777
  %v1779 = vadd.f32 %v1771, %v1777
  %v1780 = vadd.f32 %v1772, %v1777
  %v1781 = vadd.f32 %v1773, %v1777
  %1782 = vst.msk [vmem:[#allocation2] sm:$0xff] %vm1415, %v1778
  %1783 = vst.msk [vmem:[#allocation2 + $0x8] sm:$0xff] %vm1415, %v1779
  %1784 = vst.msk [vmem:[#allocation2 + $0x10] sm:$0xff] %vm1415, %v1780
  %1785 = vst.msk [vmem:[#allocation2 + $0x18] sm:$0xf] %vm1421, %v1781
  %v1786 = vld [vmem:[#allocation2] sm:$0xff]
  %v1787 = vld [vmem:[#allocation2 + $0x8] sm:$0xff]
  %v1788 = vld [vmem:[#allocation2 + $0x10] sm:$0xff]
  %v1789 = vld [vmem:[%s1 + $0x3d0] sm:$0xff]
  %v1790 = vld [vmem:[%s1 + $0x3d8] sm:$0xff]
  %v1791 = vld [vmem:[%s1 + $0x3e0] sm:$0xff]
  %v1792 = vld [vmem:[%s1 + $0x3e8] sm:$0xff]
  %v1793 = vld [vmem:[%s1 + $0x3f0] sm:$0xff]
  %v1794 = vld [vmem:[%s1 + $0x3f8] sm:$0xff]
  %v1795 = vld [vmem:[%s1 + $0x400] sm:$0xff]
  %v1796 = vld [vmem:[%s1 + $0x408] sm:$0xff]
  %v1797 = vld [vmem:[%s1 + $0x410] sm:$0xff]
  %v1798 = vld [vmem:[%s1 + $0x418] sm:$0xff]
  %v1799 = vld [vmem:[%s1 + $0x420] sm:$0xff]
  %v1800 = vld [vmem:[%s1 + $0x428] sm:$0xff]
  %v1801 = vld [vmem:[%s1 + $0x430] sm:$0xff]
  %v1802 = vld [vmem:[%s1 + $0x438] sm:$0xff]
  %v1803 = vld [vmem:[%s1 + $0x440] sm:$0xff]
  %v1804 = vld [vmem:[%s1 + $0x448] sm:$0xff]
  %v1805 = vld [vmem:[%s1 + $0x450] sm:$0xff]
  %v1806 = vld [vmem:[%s1 + $0x458] sm:$0xff]
  %v1807 = vld [vmem:[%s1 + $0x460] sm:$0xff]
  %v1808 = vld [vmem:[%s1 + $0x468] sm:$0xff]
  %v1809 = vld [vmem:[%s1 + $0x470] sm:$0xf]
  %v1810 = vld [vmem:[%s1 + $0x478] sm:$0xf]
  %v1811 = vld [vmem:[#allocation2 + $0x1] sm:$0xff]
  %v1812 = vld [vmem:[#allocation2 + $0x9] sm:$0xff]
  %v1813 = vld [vmem:[#allocation2 + $0x11] sm:$0xff]
  %v1814 = vld [vmem:[%s1 + $0x480] sm:$0xff]
  %v1815 = vld [vmem:[%s1 + $0x488] sm:$0xff]
  %v1816 = vld [vmem:[%s1 + $0x490] sm:$0xff]
  %v1817 = vld [vmem:[%s1 + $0x498] sm:$0xff]
  %v1818 = vld [vmem:[%s1 + $0x4a0] sm:$0xff]
  %v1819 = vld [vmem:[%s1 + $0x4a8] sm:$0xff]
  %v1820 = vld [vmem:[%s1 + $0x4b0] sm:$0xff]
  %v1821 = vld [vmem:[%s1 + $0x4b8] sm:$0xff]
  %v1822 = vld [vmem:[%s1 + $0x4c0] sm:$0xff]
  %v1823 = vld [vmem:[%s1 + $0x4c8] sm:$0xff]
  %v1824 = vld [vmem:[%s1 + $0x4d0] sm:$0xff]
  %v1825 = vld [vmem:[%s1 + $0x4d8] sm:$0xff]
  %v1826 = vld [vmem:[%s1 + $0x4e0] sm:$0xff]
  %v1827 = vld [vmem:[%s1 + $0x4e8] sm:$0xff]
  %v1828 = vld [vmem:[%s1 + $0x4f0] sm:$0xff]
  %v1829 = vld [vmem:[%s1 + $0x4f8] sm:$0xff]
  %v1830 = vld [vmem:[%s1 + $0x500] sm:$0xff]
  %v1831 = vld [vmem:[%s1 + $0x508] sm:$0xff]
  %v1832 = vld [vmem:[%s1 + $0x510] sm:$0xff]
  %v1833 = vld [vmem:[%s1 + $0x518] sm:$0xff]
  %v1834 = vld [vmem:[%s1 + $0x520] sm:$0xf]
  %v1835 = vld [vmem:[%s1 + $0x528] sm:$0xf]
  %v1837 = vsel %vm1415, %v1811, 0
  %v1840 = vsel %vm1415, %v1812, 0
  %v1843 = vsel %vm1415, %v1813, 0
  %v1846 = vsel %vm977, %v1834, 0
  %v1849 = vsel %vm977, %v1835, 0
  %1851 = vmatprep.subr.mxu0 %v1815
  %1852 = vmatpush1.msra.mxu0 %v1814
  %1853 = vmatprep.subr.mxu0 %v1817
  %1854 = vmatpush1.msra.mxu0 %v1816
  %1855 = vmatprep.subr.mxu0 %v1819
  %1856 = vmatpush1.msra.mxu0 %v1818
  %1857 = vmatprep.subr.mxu0 %v1821
  %1858 = vmatpush1.msra.mxu0 %v1820
  %1859 = vmatprep.subr.mxu0 %v1823
  %1860 = vmatpush1.msra.mxu0 %v1822
  %1861 = vmatprep.subr.mxu0 %v1825
  %1862 = vmatpush1.msra.mxu0 %v1824
  %1863 = vmatprep.subr.mxu0 %v1827
  %1864 = vmatpush1.msra.mxu0 %v1826
  %1865 = vmatprep.subr.mxu0 %v1829
  %1866 = vmatpush1.msra.mxu0 %v1828
  %1867 = vmatprep.subr.mxu0 %v1831
  %1868 = vmatpush1.msra.mxu0 %v1830
  %1869 = vmatprep.subr.mxu0 %v1833
  %1870 = vmatpush1.msra.mxu0 %v1832
  %1871 = vmatprep.subr.mxu0 %v1849
  %1872 = vmatpush1.msra.mxu0 %v1846
  %1873 = vmatprep.subr.mxu0 0.0
  %1874 = vmatpush1.msra.mxu0 0.0
  %1875 = vmatprep.subr.mxu0 0.0
  %1876 = vmatpush1.msra.mxu0 0.0
  %1877 = vmatprep.subr.mxu0 0.0
  %1878 = vmatpush1.msra.mxu0 0.0
  %1879 = vmatprep.subr.mxu0 0.0
  %1880 = vmatpush1.msra.mxu0 0.0
  %1881 = vmatprep.subr.mxu0 0.0
  %1882 = vmatpush1.msra.mxu0 0.0
  %1883 = vmatprep.subr.mxu0 0.0
  %1884 = vmatpush1.msra.mxu0 0.0
  %1885 = vmatprep.subr.mxu0 0.0
  %1886 = vmatpush1.msra.mxu0 0.0
  %1887 = vmatprep.subr.mxu0 0.0
  %1888 = vmatpush1.msra.mxu0 0.0
  %1889 = vmatprep.subr.mxu0 0.0
  %1890 = vmatpush1.msra.mxu0 0.0
  %1891 = vmatprep.subr.mxu0 0.0
  %1892 = vmatpush1.msra.mxu0 0.0
  %1893 = vmatprep.subr.mxu0 0.0
  %1894 = vmatpush1.msra.mxu0 0.0
  %1895 = vmatprep.subr.mxu0 0.0
  %1896 = vmatpush1.msra.mxu0 0.0
  %1897 = vmatprep.subr.mxu0 0.0
  %1898 = vmatpush1.msra.mxu0 0.0
  %1899 = vmatprep.subr.mxu0 0.0
  %1900 = vmatpush1.msra.mxu0 0.0
  %1901 = vmatprep.subr.mxu0 0.0
  %1902 = vmatpush1.msra.mxu0 0.0
  %1903 = vmatprep.subr.mxu0 0.0
  %1904 = vmatpush1.msra.mxu0 0.0
  %1905 = vmatprep.subr.mxu0 0.0
  %1906 = vmatpush1.msra.mxu0 0.0
  %1907 = vmatprep.subr.mxu0 0.0
  %1908 = vmatpush1.msra.mxu0 0.0
  %1909 = vmatprep.subr.mxu0 0.0
  %1910 = vmatpush1.msra.mxu0 0.0
  %1911 = vmatprep.subr.mxu0 0.0
  %1912 = vmatpush1.msra.mxu0 0.0
  %1913 = vmatprep.subr.mxu0 0.0
  %1914 = vmatpush1.msra.mxu0 0.0
  %1915 = vmatprep.mubr.f32.mxu0 0.0
  %1916 = vmatmul.mubr.f32.gmra.mrb[0].mxu0 %v1837
  %v1917 = vpop.f32.mrb[0].mxu0
  %v1918 = vadd.f32 0.0, %v1917
  %v1919 = vpop.f32.mrb[0].mxu0
  %v1920 = vadd.f32 0.0, %v1919
  %1921 = vmatprep.mubr.f32.mxu0 0.0
  %1922 = vmatmul.mubr.f32.gmra.mrb[0].mxu0 %v1840
  %v1923 = vpop.f32.mrb[0].mxu0
  %v1924 = vadd.f32 0.0, %v1923
  %v1925 = vpop.f32.mrb[0].mxu0
  %v1926 = vadd.f32 0.0, %v1925
  %1927 = vmatprep.mubr.f32.mxu0 0.0
  %1928 = vmatmul.mubr.f32.gmra.mrb[0].mxu0 %v1843
  %v1929 = vpop.f32.mrb[0].mxu0
  %v1930 = vadd.f32 0.0, %v1929
  %v1931 = vpop.f32.mrb[0].mxu0
  %v1932 = vadd.f32 0.0, %v1931
  %1933 = vdwg.mxu0
  %v1935 = vsel %vm1415, %v1786, 0
  %v1938 = vsel %vm1415, %v1787, 0
  %v1941 = vsel %vm1415, %v1788, 0
  %v1944 = vsel %vm977, %v1809, 0
  %v1947 = vsel %vm977, %v1810, 0
  %1949 = vmatprep.subr.mxu0 %v1790
  %1950 = vmatpush1.msra.mxu0 %v1789
  %1951 = vmatprep.subr.mxu0 %v1792
  %1952 = vmatpush1.msra.mxu0 %v1791
  %1953 = vmatprep.subr.mxu0 %v1794
  %1954 = vmatpush1.msra.mxu0 %v1793
  %1955 = vmatprep.subr.mxu0 %v1796
  %1956 = vmatpush1.msra.mxu0 %v1795
  %1957 = vmatprep.subr.mxu0 %v1798
  %1958 = vmatpush1.msra.mxu0 %v1797
  %1959 = vmatprep.subr.mxu0 %v1800
  %1960 = vmatpush1.msra.mxu0 %v1799
  %1961 = vmatprep.subr.mxu0 %v1802
  %1962 = vmatpush1.msra.mxu0 %v1801
  %1963 = vmatprep.subr.mxu0 %v1804
  %1964 = vmatpush1.msra.mxu0 %v1803
  %1965 = vmatprep.subr.mxu0 %v1806
  %1966 = vmatpush1.msra.mxu0 %v1805
  %1967 = vmatprep.subr.mxu0 %v1808
  %1968 = vmatpush1.msra.mxu0 %v1807
  %1969 = vmatprep.subr.mxu0 %v1947
  %1970 = vmatpush1.msra.mxu0 %v1944
  %1971 = vmatprep.subr.mxu0 0.0
  %1972 = vmatpush1.msra.mxu0 0.0
  %1973 = vmatprep.subr.mxu0 0.0
  %1974 = vmatpush1.msra.mxu0 0.0
  %1975 = vmatprep.subr.mxu0 0.0
  %1976 = vmatpush1.msra.mxu0 0.0
  %1977 = vmatprep.subr.mxu0 0.0
  %1978 = vmatpush1.msra.mxu0 0.0
  %1979 = vmatprep.subr.mxu0 0.0
  %1980 = vmatpush1.msra.mxu0 0.0
  %1981 = vmatprep.subr.mxu0 0.0
  %1982 = vmatpush1.msra.mxu0 0.0
  %1983 = vmatprep.subr.mxu0 0.0
  %1984 = vmatpush1.msra.mxu0 0.0
  %1985 = vmatprep.subr.mxu0 0.0
  %1986 = vmatpush1.msra.mxu0 0.0
  %1987 = vmatprep.subr.mxu0 0.0
  %1988 = vmatpush1.msra.mxu0 0.0
  %1989 = vmatprep.subr.mxu0 0.0
  %1990 = vmatpush1.msra.mxu0 0.0
  %1991 = vmatprep.subr.mxu0 0.0
  %1992 = vmatpush1.msra.mxu0 0.0
  %1993 = vmatprep.subr.mxu0 0.0
  %1994 = vmatpush1.msra.mxu0 0.0
  %1995 = vmatprep.subr.mxu0 0.0
  %1996 = vmatpush1.msra.mxu0 0.0
  %1997 = vmatprep.subr.mxu0 0.0
  %1998 = vmatpush1.msra.mxu0 0.0
  %1999 = vmatprep.subr.mxu0 0.0
  %2000 = vmatpush1.msra.mxu0 0.0
  %2001 = vmatprep.subr.mxu0 0.0
  %2002 = vmatpush1.msra.mxu0 0.0
  %2003 = vmatprep.subr.mxu0 0.0
  %2004 = vmatpush1.msra.mxu0 0.0
  %2005 = vmatprep.subr.mxu0 0.0
  %2006 = vmatpush1.msra.mxu0 0.0
  %2007 = vmatprep.subr.mxu0 0.0
  %2008 = vmatpush1.msra.mxu0 0.0
  %2009 = vmatprep.subr.mxu0 0.0
  %2010 = vmatpush1.msra.mxu0 0.0
  %2011 = vmatprep.subr.mxu0 0.0
  %2012 = vmatpush1.msra.mxu0 0.0
  %2013 = vmatprep.mubr.f32.mxu0 0.0
  %2014 = vmatmul.mubr.f32.gmra.mrb[0].mxu0 %v1935
  %v2015 = vpop.f32.mrb[0].mxu0
  %v2016 = vadd.f32 %v1918, %v2015
  %v2017 = vpop.f32.mrb[0].mxu0
  %v2018 = vadd.f32 %v1920, %v2017
  %2019 = vmatprep.mubr.f32.mxu0 0.0
  %2020 = vmatmul.mubr.f32.gmra.mrb[0].mxu0 %v1938
  %v2021 = vpop.f32.mrb[0].mxu0
  %v2022 = vadd.f32 %v1924, %v2021
  %v2023 = vpop.f32.mrb[0].mxu0
  %v2024 = vadd.f32 %v1926, %v2023
  %2025 = vmatprep.mubr.f32.mxu0 0.0
  %2026 = vmatmul.mubr.f32.gmra.mrb[0].mxu0 %v1941
  %v2027 = vpop.f32.mrb[0].mxu0
  %v2028 = vadd.f32 %v1930, %v2027
  %v2029 = vpop.f32.mrb[0].mxu0
  %v2030 = vadd.f32 %v1932, %v2029
  %2031 = vdwg.mxu0
  %v2032 = vld [vmem:[#allocation2 + $0x2] sm:$0xff]
  %v2033 = vld [vmem:[#allocation2 + $0xa] sm:$0xff]
  %v2034 = vld [vmem:[#allocation2 + $0x12] sm:$0xff]
  %v2035 = vld [vmem:[%s1 + $0x530] sm:$0xff]
  %v2036 = vld [vmem:[%s1 + $0x538] sm:$0xff]
  %v2037 = vld [vmem:[%s1 + $0x540] sm:$0xff]
  %v2038 = vld [vmem:[%s1 + $0x548] sm:$0xff]
  %v2039 = vld [vmem:[%s1 + $0x550] sm:$0xff]
  %v2040 = vld [vmem:[%s1 + $0x558] sm:$0xff]
  %v2041 = vld [vmem:[%s1 + $0x560] sm:$0xff]
  %v2042 = vld [vmem:[%s1 + $0x568] sm:$0xff]
  %v2043 = vld [vmem:[%s1 + $0x570] sm:$0xff]
  %v2044 = vld [vmem:[%s1 + $0x578] sm:$0xff]
  %v2045 = vld [vmem:[%s1 + $0x580] sm:$0xff]
  %v2046 = vld [vmem:[%s1 + $0x588] sm:$0xff]
  %v2047 = vld [vmem:[%s1 + $0x590] sm:$0xff]
  %v2048 = vld [vmem:[%s1 + $0x598] sm:$0xff]
  %v2049 = vld [vmem:[%s1 + $0x5a0] sm:$0xff]
  %v2050 = vld [vmem:[%s1 + $0x5a8] sm:$0xff]
  %v2051 = vld [vmem:[%s1 + $0x5b0] sm:$0xff]
  %v2052 = vld [vmem:[%s1 + $0x5b8] sm:$0xff]
  %v2053 = vld [vmem:[%s1 + $0x5c0] sm:$0xff]
  %v2054 = vld [vmem:[%s1 + $0x5c8] sm:$0xff]
  %v2055 = vld [vmem:[%s1 + $0x5d0] sm:$0xf]
  %v2056 = vld [vmem:[%s1 + $0x5d8] sm:$0xf]
  %v2058 = vsel %vm1415, %v2032, 0
  %v2061 = vsel %vm1415, %v2033, 0
  %v2064 = vsel %vm1415, %v2034, 0
  %v2067 = vsel %vm977, %v2055, 0
  %v2070 = vsel %vm977, %v2056, 0
  %2072 = vmatprep.subr.mxu0 %v2036
  %2073 = vmatpush1.msra.mxu0 %v2035
  %2074 = vmatprep.subr.mxu0 %v2038
  %2075 = vmatpush1.msra.mxu0 %v2037
  %2076 = vmatprep.subr.mxu0 %v2040
  %2077 = vmatpush1.msra.mxu0 %v2039
  %2078 = vmatprep.subr.mxu0 %v2042
  %2079 = vmatpush1.msra.mxu0 %v2041
  %2080 = vmatprep.subr.mxu0 %v2044
  %2081 = vmatpush1.msra.mxu0 %v2043
  %2082 = vmatprep.subr.mxu0 %v2046
  %2083 = vmatpush1.msra.mxu0 %v2045
  %2084 = vmatprep.subr.mxu0 %v2048
  %2085 = vmatpush1.msra.mxu0 %v2047
  %2086 = vmatprep.subr.mxu0 %v2050
  %2087 = vmatpush1.msra.mxu0 %v2049
  %2088 = vmatprep.subr.mxu0 %v2052
  %2089 = vmatpush1.msra.mxu0 %v2051
  %2090 = vmatprep.subr.mxu0 %v2054
  %2091 = vmatpush1.msra.mxu0 %v2053
  %2092 = vmatprep.subr.mxu0 %v2070
  %2093 = vmatpush1.msra.mxu0 %v2067
  %2094 = vmatprep.subr.mxu0 0.0
  %2095 = vmatpush1.msra.mxu0 0.0
  %2096 = vmatprep.subr.mxu0 0.0
  %2097 = vmatpush1.msra.mxu0 0.0
  %2098 = vmatprep.subr.mxu0 0.0
  %2099 = vmatpush1.msra.mxu0 0.0
  %2100 = vmatprep.subr.mxu0 0.0
  %2101 = vmatpush1.msra.mxu0 0.0
  %2102 = vmatprep.subr.mxu0 0.0
  %2103 = vmatpush1.msra.mxu0 0.0
  %2104 = vmatprep.subr.mxu0 0.0
  %2105 = vmatpush1.msra.mxu0 0.0
  %2106 = vmatprep.subr.mxu0 0.0
  %2107 = vmatpush1.msra.mxu0 0.0
  %2108 = vmatprep.subr.mxu0 0.0
  %2109 = vmatpush1.msra.mxu0 0.0
  %2110 = vmatprep.subr.mxu0 0.0
  %2111 = vmatpush1.msra.mxu0 0.0
  %2112 = vmatprep.subr.mxu0 0.0
  %2113 = vmatpush1.msra.mxu0 0.0
  %2114 = vmatprep.subr.mxu0 0.0
  %2115 = vmatpush1.msra.mxu0 0.0
  %2116 = vmatprep.subr.mxu0 0.0
  %2117 = vmatpush1.msra.mxu0 0.0
  %2118 = vmatprep.subr.mxu0 0.0
  %2119 = vmatpush1.msra.mxu0 0.0
  %2120 = vmatprep.subr.mxu0 0.0
  %2121 = vmatpush1.msra.mxu0 0.0
  %2122 = vmatprep.subr.mxu0 0.0
  %2123 = vmatpush1.msra.mxu0 0.0
  %2124 = vmatprep.subr.mxu0 0.0
  %2125 = vmatpush1.msra.mxu0 0.0
  %2126 = vmatprep.subr.mxu0 0.0
  %2127 = vmatpush1.msra.mxu0 0.0
  %2128 = vmatprep.subr.mxu0 0.0
  %2129 = vmatpush1.msra.mxu0 0.0
  %2130 = vmatprep.subr.mxu0 0.0
  %2131 = vmatpush1.msra.mxu0 0.0
  %2132 = vmatprep.subr.mxu0 0.0
  %2133 = vmatpush1.msra.mxu0 0.0
  %2134 = vmatprep.subr.mxu0 0.0
  %2135 = vmatpush1.msra.mxu0 0.0
  %2136 = vmatprep.mubr.f32.mxu0 0.0
  %2137 = vmatmul.mubr.f32.gmra.mrb[0].mxu0 %v2058
  %v2138 = vpop.f32.mrb[0].mxu0
  %v2139 = vadd.f32 0.0, %v2138
  %v2140 = vpop.f32.mrb[0].mxu0
  %v2141 = vadd.f32 0.0, %v2140
  %2142 = vmatprep.mubr.f32.mxu0 0.0
  %2143 = vmatmul.mubr.f32.gmra.mrb[0].mxu0 %v2061
  %v2144 = vpop.f32.mrb[0].mxu0
  %v2145 = vadd.f32 0.0, %v2144
  %v2146 = vpop.f32.mrb[0].mxu0
  %v2147 = vadd.f32 0.0, %v2146
  %2148 = vmatprep.mubr.f32.mxu0 0.0
  %2149 = vmatmul.mubr.f32.gmra.mrb[0].mxu0 %v2064
  %v2150 = vpop.f32.mrb[0].mxu0
  %v2151 = vadd.f32 0.0, %v2150
  %v2152 = vpop.f32.mrb[0].mxu0
  %v2153 = vadd.f32 0.0, %v2152
  %2154 = vdwg.mxu0
  %v2155 = vadd.f32 %v2016, %v2139
  %v2156 = vadd.f32 %v2018, %v2141
  %v2157 = vadd.f32 %v2022, %v2145
  %v2158 = vadd.f32 %v2024, %v2147
  %v2159 = vadd.f32 %v2028, %v2151
  %v2160 = vadd.f32 %v2030, %v2153
  %v2161 = vld [vmem:[#allocation2 + $0x3] sm:$0xff]
  %v2162 = vld [vmem:[#allocation2 + $0xb] sm:$0xff]
  %v2163 = vld [vmem:[#allocation2 + $0x13] sm:$0xff]
  %v2164 = vld [vmem:[%s1 + $0x5e0] sm:$0xff]
  %v2165 = vld [vmem:[%s1 + $0x5e8] sm:$0xff]
  %v2166 = vld [vmem:[%s1 + $0x5f0] sm:$0xff]
  %v2167 = vld [vmem:[%s1 + $0x5f8] sm:$0xff]
  %v2168 = vld [vmem:[%s1 + $0x600] sm:$0xff]
  %v2169 = vld [vmem:[%s1 + $0x608] sm:$0xff]
  %v2170 = vld [vmem:[%s1 + $0x610] sm:$0xff]
  %v2171 = vld [vmem:[%s1 + $0x618] sm:$0xff]
  %v2172 = vld [vmem:[%s1 + $0x620] sm:$0xff]
  %v2173 = vld [vmem:[%s1 + $0x628] sm:$0xff]
  %v2174 = vld [vmem:[%s1 + $0x630] sm:$0xff]
  %v2175 = vld [vmem:[%s1 + $0x638] sm:$0xff]
  %v2176 = vld [vmem:[%s1 + $0x640] sm:$0xff]
  %v2177 = vld [vmem:[%s1 + $0x648] sm:$0xff]
  %v2178 = vld [vmem:[%s1 + $0x650] sm:$0xff]
  %v2179 = vld [vmem:[%s1 + $0x658] sm:$0xff]
  %v2180 = vld [vmem:[%s1 + $0x660] sm:$0xff]
  %v2181 = vld [vmem:[%s1 + $0x668] sm:$0xff]
  %v2182 = vld [vmem:[%s1 + $0x670] sm:$0xff]
  %v2183 = vld [vmem:[%s1 + $0x678] sm:$0xff]
  %v2184 = vld [vmem:[%s1 + $0x680] sm:$0xf]
  %v2185 = vld [vmem:[%s1 + $0x688] sm:$0xf]
  %v2187 = vsel %vm1415, %v2161, 0
  %v2190 = vsel %vm1415, %v2162, 0
  %v2193 = vsel %vm1415, %v2163, 0
  %v2196 = vsel %vm977, %v2184, 0
  %v2199 = vsel %vm977, %v2185, 0
  %2201 = vmatprep.subr.mxu0 %v2165
  %2202 = vmatpush1.msra.mxu0 %v2164
  %2203 = vmatprep.subr.mxu0 %v2167
  %2204 = vmatpush1.msra.mxu0 %v2166
  %2205 = vmatprep.subr.mxu0 %v2169
  %2206 = vmatpush1.msra.mxu0 %v2168
  %2207 = vmatprep.subr.mxu0 %v2171
  %2208 = vmatpush1.msra.mxu0 %v2170
  %2209 = vmatprep.subr.mxu0 %v2173
  %2210 = vmatpush1.msra.mxu0 %v2172
  %2211 = vmatprep.subr.mxu0 %v2175
  %2212 = vmatpush1.msra.mxu0 %v2174
  %2213 = vmatprep.subr.mxu0 %v2177
  %2214 = vmatpush1.msra.mxu0 %v2176
  %2215 = vmatprep.subr.mxu0 %v2179
  %2216 = vmatpush1.msra.mxu0 %v2178
  %2217 = vmatprep.subr.mxu0 %v2181
  %2218 = vmatpush1.msra.mxu0 %v2180
  %2219 = vmatprep.subr.mxu0 %v2183
  %2220 = vmatpush1.msra.mxu0 %v2182
  %2221 = vmatprep.subr.mxu0 %v2199
  %2222 = vmatpush1.msra.mxu0 %v2196
  %2223 = vmatprep.subr.mxu0 0.0
  %2224 = vmatpush1.msra.mxu0 0.0
  %2225 = vmatprep.subr.mxu0 0.0
  %2226 = vmatpush1.msra.mxu0 0.0
  %2227 = vmatprep.subr.mxu0 0.0
  %2228 = vmatpush1.msra.mxu0 0.0
  %2229 = vmatprep.subr.mxu0 0.0
  %2230 = vmatpush1.msra.mxu0 0.0
  %2231 = vmatprep.subr.mxu0 0.0
  %2232 = vmatpush1.msra.mxu0 0.0
  %2233 = vmatprep.subr.mxu0 0.0
  %2234 = vmatpush1.msra.mxu0 0.0
  %2235 = vmatprep.subr.mxu0 0.0
  %2236 = vmatpush1.msra.mxu0 0.0
  %2237 = vmatprep.subr.mxu0 0.0
  %2238 = vmatpush1.msra.mxu0 0.0
  %2239 = vmatprep.subr.mxu0 0.0
  %2240 = vmatpush1.msra.mxu0 0.0
  %2241 = vmatprep.subr.mxu0 0.0
  %2242 = vmatpush1.msra.mxu0 0.0
  %2243 = vmatprep.subr.mxu0 0.0
  %2244 = vmatpush1.msra.mxu0 0.0
  %2245 = vmatprep.subr.mxu0 0.0
  %2246 = vmatpush1.msra.mxu0 0.0
  %2247 = vmatprep.subr.mxu0 0.0
  %2248 = vmatpush1.msra.mxu0 0.0
  %2249 = vmatprep.subr.mxu0 0.0
  %2250 = vmatpush1.msra.mxu0 0.0
  %2251 = vmatprep.subr.mxu0 0.0
  %2252 = vmatpush1.msra.mxu0 0.0
  %2253 = vmatprep.subr.mxu0 0.0
  %2254 = vmatpush1.msra.mxu0 0.0
  %2255 = vmatprep.subr.mxu0 0.0
  %2256 = vmatpush1.msra.mxu0 0.0
  %2257 = vmatprep.subr.mxu0 0.0
  %2258 = vmatpush1.msra.mxu0 0.0
  %2259 = vmatprep.subr.mxu0 0.0
  %2260 = vmatpush1.msra.mxu0 0.0
  %2261 = vmatprep.subr.mxu0 0.0
  %2262 = vmatpush1.msra.mxu0 0.0
  %2263 = vmatprep.subr.mxu0 0.0
  %2264 = vmatpush1.msra.mxu0 0.0
  %2265 = vmatprep.mubr.f32.mxu0 0.0
  %2266 = vmatmul.mubr.f32.gmra.mrb[0].mxu0 %v2187
  %v2267 = vpop.f32.mrb[0].mxu0
  %v2268 = vadd.f32 0.0, %v2267
  %v2269 = vpop.f32.mrb[0].mxu0
  %v2270 = vadd.f32 0.0, %v2269
  %2271 = vmatprep.mubr.f32.mxu0 0.0
  %2272 = vmatmul.mubr.f32.gmra.mrb[0].mxu0 %v2190
  %v2273 = vpop.f32.mrb[0].mxu0
  %v2274 = vadd.f32 0.0, %v2273
  %v2275 = vpop.f32.mrb[0].mxu0
  %v2276 = vadd.f32 0.0, %v2275
  %2277 = vmatprep.mubr.f32.mxu0 0.0
  %2278 = vmatmul.mubr.f32.gmra.mrb[0].mxu0 %v2193
  %v2279 = vpop.f32.mrb[0].mxu0
  %v2280 = vadd.f32 0.0, %v2279
  %v2281 = vpop.f32.mrb[0].mxu0
  %v2282 = vadd.f32 0.0, %v2281
  %2283 = vdwg.mxu0
  %v2284 = vadd.f32 %v2155, %v2268
  %v2285 = vadd.f32 %v2156, %v2270
  %v2286 = vadd.f32 %v2157, %v2274
  %v2287 = vadd.f32 %v2158, %v2276
  %v2288 = vadd.f32 %v2159, %v2280
  %v2289 = vadd.f32 %v2160, %v2282
  %v2290 = vld [vmem:[#allocation2 + $0x4] sm:$0xff]
  %v2291 = vld [vmem:[#allocation2 + $0xc] sm:$0xff]
  %v2292 = vld [vmem:[#allocation2 + $0x14] sm:$0xff]
  %v2293 = vld [vmem:[%s1 + $0x690] sm:$0xff]
  %v2294 = vld [vmem:[%s1 + $0x698] sm:$0xff]
  %v2295 = vld [vmem:[%s1 + $0x6a0] sm:$0xff]
  %v2296 = vld [vmem:[%s1 + $0x6a8] sm:$0xff]
  %v2297 = vld [vmem:[%s1 + $0x6b0] sm:$0xff]
  %v2298 = vld [vmem:[%s1 + $0x6b8] sm:$0xff]
  %v2299 = vld [vmem:[%s1 + $0x6c0] sm:$0xff]
  %v2300 = vld [vmem:[%s1 + $0x6c8] sm:$0xff]
  %v2301 = vld [vmem:[%s1 + $0x6d0] sm:$0xff]
  %v2302 = vld [vmem:[%s1 + $0x6d8] sm:$0xff]
  %v2303 = vld [vmem:[%s1 + $0x6e0] sm:$0xff]
  %v2304 = vld [vmem:[%s1 + $0x6e8] sm:$0xff]
  %v2305 = vld [vmem:[%s1 + $0x6f0] sm:$0xff]
  %v2306 = vld [vmem:[%s1 + $0x6f8] sm:$0xff]
  %v2307 = vld [vmem:[%s1 + $0x700] sm:$0xff]
  %v2308 = vld [vmem:[%s1 + $0x708] sm:$0xff]
  %v2309 = vld [vmem:[%s1 + $0x710] sm:$0xff]
  %v2310 = vld [vmem:[%s1 + $0x718] sm:$0xff]
  %v2311 = vld [vmem:[%s1 + $0x720] sm:$0xff]
  %v2312 = vld [vmem:[%s1 + $0x728] sm:$0xff]
  %v2313 = vld [vmem:[%s1 + $0x730] sm:$0xf]
  %v2314 = vld [vmem:[%s1 + $0x738] sm:$0xf]
  %v2316 = vsel %vm1415, %v2290, 0
  %v2319 = vsel %vm1415, %v2291, 0
  %v2322 = vsel %vm1415, %v2292, 0
  %v2325 = vsel %vm977, %v2313, 0
  %v2328 = vsel %vm977, %v2314, 0
  %2330 = vmatprep.subr.mxu0 %v2294
  %2331 = vmatpush1.msra.mxu0 %v2293
  %2332 = vmatprep.subr.mxu0 %v2296
  %2333 = vmatpush1.msra.mxu0 %v2295
  %2334 = vmatprep.subr.mxu0 %v2298
  %2335 = vmatpush1.msra.mxu0 %v2297
  %2336 = vmatprep.subr.mxu0 %v2300
  %2337 = vmatpush1.msra.mxu0 %v2299
  %2338 = vmatprep.subr.mxu0 %v2302
  %2339 = vmatpush1.msra.mxu0 %v2301
  %2340 = vmatprep.subr.mxu0 %v2304
  %2341 = vmatpush1.msra.mxu0 %v2303
  %2342 = vmatprep.subr.mxu0 %v2306
  %2343 = vmatpush1.msra.mxu0 %v2305
  %2344 = vmatprep.subr.mxu0 %v2308
  %2345 = vmatpush1.msra.mxu0 %v2307
  %2346 = vmatprep.subr.mxu0 %v2310
  %2347 = vmatpush1.msra.mxu0 %v2309
  %2348 = vmatprep.subr.mxu0 %v2312
  %2349 = vmatpush1.msra.mxu0 %v2311
  %2350 = vmatprep.subr.mxu0 %v2328
  %2351 = vmatpush1.msra.mxu0 %v2325
  %2352 = vmatprep.subr.mxu0 0.0
  %2353 = vmatpush1.msra.mxu0 0.0
  %2354 = vmatprep.subr.mxu0 0.0
  %2355 = vmatpush1.msra.mxu0 0.0
  %2356 = vmatprep.subr.mxu0 0.0
  %2357 = vmatpush1.msra.mxu0 0.0
  %2358 = vmatprep.subr.mxu0 0.0
  %2359 = vmatpush1.msra.mxu0 0.0
  %2360 = vmatprep.subr.mxu0 0.0
  %2361 = vmatpush1.msra.mxu0 0.0
  %2362 = vmatprep.subr.mxu0 0.0
  %2363 = vmatpush1.msra.mxu0 0.0
  %2364 = vmatprep.subr.mxu0 0.0
  %2365 = vmatpush1.msra.mxu0 0.0
  %2366 = vmatprep.subr.mxu0 0.0
  %2367 = vmatpush1.msra.mxu0 0.0
  %2368 = vmatprep.subr.mxu0 0.0
  %2369 = vmatpush1.msra.mxu0 0.0
  %2370 = vmatprep.subr.mxu0 0.0
  %2371 = vmatpush1.msra.mxu0 0.0
  %2372 = vmatprep.subr.mxu0 0.0
  %2373 = vmatpush1.msra.mxu0 0.0
  %2374 = vmatprep.subr.mxu0 0.0
  %2375 = vmatpush1.msra.mxu0 0.0
  %2376 = vmatprep.subr.mxu0 0.0
  %2377 = vmatpush1.msra.mxu0 0.0
  %2378 = vmatprep.subr.mxu0 0.0
  %2379 = vmatpush1.msra.mxu0 0.0
  %2380 = vmatprep.subr.mxu0 0.0
  %2381 = vmatpush1.msra.mxu0 0.0
  %2382 = vmatprep.subr.mxu0 0.0
  %2383 = vmatpush1.msra.mxu0 0.0
  %2384 = vmatprep.subr.mxu0 0.0
  %2385 = vmatpush1.msra.mxu0 0.0
  %2386 = vmatprep.subr.mxu0 0.0
  %2387 = vmatpush1.msra.mxu0 0.0
  %2388 = vmatprep.subr.mxu0 0.0
  %2389 = vmatpush1.msra.mxu0 0.0
  %2390 = vmatprep.subr.mxu0 0.0
  %2391 = vmatpush1.msra.mxu0 0.0
  %2392 = vmatprep.subr.mxu0 0.0
  %2393 = vmatpush1.msra.mxu0 0.0
  %2394 = vmatprep.mubr.f32.mxu0 0.0
  %2395 = vmatmul.mubr.f32.gmra.mrb[0].mxu0 %v2316
  %v2396 = vpop.f32.mrb[0].mxu0
  %v2397 = vadd.f32 0.0, %v2396
  %v2398 = vpop.f32.mrb[0].mxu0
  %v2399 = vadd.f32 0.0, %v2398
  %2400 = vmatprep.mubr.f32.mxu0 0.0
  %2401 = vmatmul.mubr.f32.gmra.mrb[0].mxu0 %v2319
  %v2402 = vpop.f32.mrb[0].mxu0
  %v2403 = vadd.f32 0.0, %v2402
  %v2404 = vpop.f32.mrb[0].mxu0
  %v2405 = vadd.f32 0.0, %v2404
  %2406 = vmatprep.mubr.f32.mxu0 0.0
  %2407 = vmatmul.mubr.f32.gmra.mrb[0].mxu0 %v2322
  %v2408 = vpop.f32.mrb[0].mxu0
  %v2409 = vadd.f32 0.0, %v2408
  %v2410 = vpop.f32.mrb[0].mxu0
  %v2411 = vadd.f32 0.0, %v2410
  %2412 = vdwg.mxu0
  %v2413 = vadd.f32 %v2284, %v2397
  %v2414 = vadd.f32 %v2285, %v2399
  %v2415 = vadd.f32 %v2286, %v2403
  %v2416 = vadd.f32 %v2287, %v2405
  %v2417 = vadd.f32 %v2288, %v2409
  %v2418 = vadd.f32 %v2289, %v2411
  %s2419 = scalar_lea.vmem %s1, 1856
  %v2420 = vld [vmem:[%s2419] ss:$8 sm:$0x3]
  %v2422 = vlaneseq
  %v2423 = vshrl.u32 %v2422, 7
  %v2424 = vsub.s32 0, %v2423
  %v2425 = vrot.slane %v2420, %v2424
  %v2426 = vlaneseq
  %v2427 = vshrl.u32 %v2426, 7
  %v2428 = vsub.s32 1, %v2427
  %v2429 = vrot.slane %v2420, %v2428
  %v2432 = vadd.f32 %v2413, %v2425
  %v2433 = vadd.f32 %v2414, %v2429
  %v2434 = vadd.f32 %v2415, %v2425
  %v2435 = vadd.f32 %v2416, %v2429
  %v2436 = vadd.f32 %v2417, %v2425
  %v2437 = vadd.f32 %v2418, %v2429
  %v2438 = vmax.f32 %v2432, 0.0
  %v2439 = vmax.f32 %v2433, 0.0
  %v2440 = vmax.f32 %v2434, 0.0
  %v2441 = vmax.f32 %v2435, 0.0
  %v2442 = vmax.f32 %v2436, 0.0
  %v2443 = vmax.f32 %v2437, 0.0
  %v2444 = vld [vmem:[%s2 + $0x1f8] sm:$0xff]
  %v2445 = vld [vmem:[%s2 + $0x200] sm:$0xff]
  %v2446 = vld [vmem:[%s2 + $0x208] sm:$0xff]
  %v2447 = vld [vmem:[%s2 + $0x210] sm:$0xff]
  %v2448 = vld [vmem:[%s2 + $0x218] sm:$0xff]
  %vm2449 = vcmask 195584
  %v2451 = vsel %vm2449, %v2444, 0
  %v2454 = vsel %vm2449, %v2445, 0
  %v2457 = vsel %vm2449, %v2446, 0
  %v2460 = vsel %vm2449, %v2447, 0
  %v2463 = vsel %vm2449, %v2448, 0
  %2465 = vmatprep.subr.mxu0 %v2439
  %2466 = vmatpush1.msra.mxu0 %v2438
  %2467 = vmatprep.subr.mxu0 %v2441
  %2468 = vmatpush1.msra.mxu0 %v2440
  %2469 = vmatprep.subr.mxu0 %v2443
  %2470 = vmatpush1.msra.mxu0 %v2442
  %2471 = vmatprep.subr.mxu0 0.0
  %2472 = vmatpush1.msra.mxu0 0.0
  %2473 = vmatprep.subr.mxu0 0.0
  %2474 = vmatpush1.msra.mxu0 0.0
  %2475 = vmatprep.subr.mxu0 0.0
  %2476 = vmatpush1.msra.mxu0 0.0
  %2477 = vmatprep.subr.mxu0 0.0
  %2478 = vmatpush1.msra.mxu0 0.0
  %2479 = vmatprep.subr.mxu0 0.0
  %2480 = vmatpush1.msra.mxu0 0.0
  %2481 = vmatprep.subr.mxu0 0.0
  %2482 = vmatpush1.msra.mxu0 0.0
  %2483 = vmatprep.subr.mxu0 0.0
  %2484 = vmatpush1.msra.mxu0 0.0
  %2485 = vmatprep.subr.mxu0 0.0
  %2486 = vmatpush1.msra.mxu0 0.0
  %2487 = vmatprep.subr.mxu0 0.0
  %2488 = vmatpush1.msra.mxu0 0.0
  %2489 = vmatprep.subr.mxu0 0.0
  %2490 = vmatpush1.msra.mxu0 0.0
  %2491 = vmatprep.subr.mxu0 0.0
  %2492 = vmatpush1.msra.mxu0 0.0
  %2493 = vmatprep.subr.mxu0 0.0
  %2494 = vmatpush1.msra.mxu0 0.0
  %2495 = vmatprep.subr.mxu0 0.0
  %2496 = vmatpush1.msra.mxu0 0.0
  %2497 = vmatprep.subr.mxu0 0.0
  %2498 = vmatpush1.msra.mxu0 0.0
  %2499 = vmatprep.subr.mxu0 0.0
  %2500 = vmatpush1.msra.mxu0 0.0
  %2501 = vmatprep.subr.mxu0 0.0
  %2502 = vmatpush1.msra.mxu0 0.0
  %2503 = vmatprep.subr.mxu0 0.0
  %2504 = vmatpush1.msra.mxu0 0.0
  %2505 = vmatprep.subr.mxu0 0.0
  %2506 = vmatpush1.msra.mxu0 0.0
  %2507 = vmatprep.subr.mxu0 0.0
  %2508 = vmatpush1.msra.mxu0 0.0
  %2509 = vmatprep.subr.mxu0 0.0
  %2510 = vmatpush1.msra.mxu0 0.0
  %2511 = vmatprep.subr.mxu0 0.0
  %2512 = vmatpush1.msra.mxu0 0.0
  %2513 = vmatprep.subr.mxu0 0.0
  %2514 = vmatpush1.msra.mxu0 0.0
  %2515 = vmatprep.subr.mxu0 0.0
  %2516 = vmatpush1.msra.mxu0 0.0
  %2517 = vmatprep.subr.mxu0 0.0
  %2518 = vmatpush1.msra.mxu0 0.0
  %2519 = vmatprep.subr.mxu0 0.0
  %2520 = vmatpush1.msra.mxu0 0.0
  %2521 = vmatprep.subr.mxu0 0.0
  %2522 = vmatpush1.msra.mxu0 0.0
  %2523 = vmatprep.subr.mxu0 0.0
  %2524 = vmatpush1.msra.mxu0 0.0
  %2525 = vmatprep.subr.mxu0 0.0
  %2526 = vmatpush1.msra.mxu0 0.0
  %2527 = vmatprep.subr.mxu0 0.0
  %2528 = vmatpush1.msra.mxu0 0.0
  %2529 = vmatprep.mubr.f32.mxu0 0.0
  %2530 = vmatmul.mubr.f32.gmra.mrb[0].mxu0 %v2451
  %v2531 = vpop.f32.mrb[0].mxu0
  %v2532 = vadd.f32 0.0, %v2531
  %v2533 = vpop.f32.mrb[0].mxu0
  %v2534 = vadd.f32 0.0, %v2533
  %2535 = vmatprep.mubr.f32.mxu0 0.0
  %2536 = vmatmul.mubr.f32.gmra.mrb[0].mxu0 %v2454
  %v2537 = vpop.f32.mrb[0].mxu0
  %v2538 = vadd.f32 0.0, %v2537
  %v2539 = vpop.f32.mrb[0].mxu0
  %v2540 = vadd.f32 0.0, %v2539
  %2541 = vmatprep.mubr.f32.mxu0 0.0
  %2542 = vmatmul.mubr.f32.gmra.mrb[0].mxu0 %v2457
  %v2543 = vpop.f32.mrb[0].mxu0
  %v2544 = vadd.f32 0.0, %v2543
  %v2545 = vpop.f32.mrb[0].mxu0
  %v2546 = vadd.f32 0.0, %v2545
  %2547 = vmatprep.mubr.f32.mxu0 0.0
  %2548 = vmatmul.mubr.f32.gmra.mrb[0].mxu0 %v2460
  %v2549 = vpop.f32.mrb[0].mxu0
  %v2550 = vadd.f32 0.0, %v2549
  %v2551 = vpop.f32.mrb[0].mxu0
  %v2552 = vadd.f32 0.0, %v2551
  %2553 = vmatprep.mubr.f32.mxu0 0.0
  %2554 = vmatmul.mubr.f32.gmra.mrb[0].mxu0 %v2463
  %v2555 = vpop.f32.mrb[0].mxu0
  %v2556 = vadd.f32 0.0, %v2555
  %v2557 = vpop.f32.mrb[0].mxu0
  %v2558 = vadd.f32 0.0, %v2557
  %2559 = vdwg.mxu0
  %v2560 = vld [vmem:[%s2 + $0x220] sm:$0xff]
  %v2561 = vld [vmem:[%s2 + $0x228] sm:$0xff]
  %v2562 = vld [vmem:[%s2 + $0x230] sm:$0xff]
  %v2563 = vld [vmem:[%s2 + $0x238] sm:$0xff]
  %v2564 = vld [vmem:[%s2 + $0x240] sm:$0xff]
  %v2566 = vsel %vm2449, %v2560, 0
  %v2569 = vsel %vm2449, %v2561, 0
  %v2572 = vsel %vm2449, %v2562, 0
  %v2575 = vsel %vm2449, %v2563, 0
  %v2578 = vsel %vm2449, %v2564, 0
  %2580 = vmatprep.subr.mxu0 %v2439
  %2581 = vmatpush1.msra.mxu0 %v2438
  %2582 = vmatprep.subr.mxu0 %v2441
  %2583 = vmatpush1.msra.mxu0 %v2440
  %2584 = vmatprep.subr.mxu0 %v2443
  %2585 = vmatpush1.msra.mxu0 %v2442
  %2586 = vmatprep.subr.mxu0 0.0
  %2587 = vmatpush1.msra.mxu0 0.0
  %2588 = vmatprep.subr.mxu0 0.0
  %2589 = vmatpush1.msra.mxu0 0.0
  %2590 = vmatprep.subr.mxu0 0.0
  %2591 = vmatpush1.msra.mxu0 0.0
  %2592 = vmatprep.subr.mxu0 0.0
  %2593 = vmatpush1.msra.mxu0 0.0
  %2594 = vmatprep.subr.mxu0 0.0
  %2595 = vmatpush1.msra.mxu0 0.0
  %2596 = vmatprep.subr.mxu0 0.0
  %2597 = vmatpush1.msra.mxu0 0.0
  %2598 = vmatprep.subr.mxu0 0.0
  %2599 = vmatpush1.msra.mxu0 0.0
  %2600 = vmatprep.subr.mxu0 0.0
  %2601 = vmatpush1.msra.mxu0 0.0
  %2602 = vmatprep.subr.mxu0 0.0
  %2603 = vmatpush1.msra.mxu0 0.0
  %2604 = vmatprep.subr.mxu0 0.0
  %2605 = vmatpush1.msra.mxu0 0.0
  %2606 = vmatprep.subr.mxu0 0.0
  %2607 = vmatpush1.msra.mxu0 0.0
  %2608 = vmatprep.subr.mxu0 0.0
  %2609 = vmatpush1.msra.mxu0 0.0
  %2610 = vmatprep.subr.mxu0 0.0
  %2611 = vmatpush1.msra.mxu0 0.0
  %2612 = vmatprep.subr.mxu0 0.0
  %2613 = vmatpush1.msra.mxu0 0.0
  %2614 = vmatprep.subr.mxu0 0.0
  %2615 = vmatpush1.msra.mxu0 0.0
  %2616 = vmatprep.subr.mxu0 0.0
  %2617 = vmatpush1.msra.mxu0 0.0
  %2618 = vmatprep.subr.mxu0 0.0
  %2619 = vmatpush1.msra.mxu0 0.0
  %2620 = vmatprep.subr.mxu0 0.0
  %2621 = vmatpush1.msra.mxu0 0.0
  %2622 = vmatprep.subr.mxu0 0.0
  %2623 = vmatpush1.msra.mxu0 0.0
  %2624 = vmatprep.subr.mxu0 0.0
  %2625 = vmatpush1.msra.mxu0 0.0
  %2626 = vmatprep.subr.mxu0 0.0
  %2627 = vmatpush1.msra.mxu0 0.0
  %2628 = vmatprep.subr.mxu0 0.0
  %2629 = vmatpush1.msra.mxu0 0.0
  %2630 = vmatprep.subr.mxu0 0.0
  %2631 = vmatpush1.msra.mxu0 0.0
  %2632 = vmatprep.subr.mxu0 0.0
  %2633 = vmatpush1.msra.mxu0 0.0
  %2634 = vmatprep.subr.mxu0 0.0
  %2635 = vmatpush1.msra.mxu0 0.0
  %2636 = vmatprep.subr.mxu0 0.0
  %2637 = vmatpush1.msra.mxu0 0.0
  %2638 = vmatprep.subr.mxu0 0.0
  %2639 = vmatpush1.msra.mxu0 0.0
  %2640 = vmatprep.subr.mxu0 0.0
  %2641 = vmatpush1.msra.mxu0 0.0
  %2642 = vmatprep.subr.mxu0 0.0
  %2643 = vmatpush1.msra.mxu0 0.0
  %2644 = vmatprep.mubr.f32.mxu0 0.0
  %2645 = vmatmul.mubr.f32.gmra.mrb[0].mxu0 %v2566
  %v2646 = vpop.f32.mrb[0].mxu0
  %v2647 = vadd.f32 0.0, %v2646
  %v2648 = vpop.f32.mrb[0].mxu0
  %v2649 = vadd.f32 0.0, %v2648
  %2650 = vmatprep.mubr.f32.mxu0 0.0
  %2651 = vmatmul.mubr.f32.gmra.mrb[0].mxu0 %v2569
  %v2652 = vpop.f32.mrb[0].mxu0
  %v2653 = vadd.f32 0.0, %v2652
  %v2654 = vpop.f32.mrb[0].mxu0
  %v2655 = vadd.f32 0.0, %v2654
  %2656 = vmatprep.mubr.f32.mxu0 0.0
  %2657 = vmatmul.mubr.f32.gmra.mrb[0].mxu0 %v2572
  %v2658 = vpop.f32.mrb[0].mxu0
  %v2659 = vadd.f32 0.0, %v2658
  %v2660 = vpop.f32.mrb[0].mxu0
  %v2661 = vadd.f32 0.0, %v2660
  %2662 = vmatprep.mubr.f32.mxu0 0.0
  %2663 = vmatmul.mubr.f32.gmra.mrb[0].mxu0 %v2575
  %v2664 = vpop.f32.mrb[0].mxu0
  %v2665 = vadd.f32 0.0, %v2664
  %v2666 = vpop.f32.mrb[0].mxu0
  %v2667 = vadd.f32 0.0, %v2666
  %2668 = vmatprep.mubr.f32.mxu0 0.0
  %2669 = vmatmul.mubr.f32.gmra.mrb[0].mxu0 %v2578
  %v2670 = vpop.f32.mrb[0].mxu0
  %v2671 = vadd.f32 0.0, %v2670
  %v2672 = vpop.f32.mrb[0].mxu0
  %v2673 = vadd.f32 0.0, %v2672
  %2674 = vdwg.mxu0
  %v2675 = vmax.f32 %v2532, %v2647
  %v2676 = vmax.f32 %v2534, %v2649
  %v2677 = vmax.f32 %v2538, %v2653
  %v2678 = vmax.f32 %v2540, %v2655
  %v2679 = vmax.f32 %v2544, %v2659
  %v2680 = vmax.f32 %v2546, %v2661
  %v2681 = vmax.f32 %v2550, %v2665
  %v2682 = vmax.f32 %v2552, %v2667
  %v2683 = vmax.f32 %v2556, %v2671
  %v2684 = vmax.f32 %v2558, %v2673
  %v2685 = vld [vmem:[%s2 + $0x248] sm:$0xff]
  %v2686 = vld [vmem:[%s2 + $0x250] sm:$0xff]
  %v2687 = vld [vmem:[%s2 + $0x258] sm:$0xff]
  %v2688 = vld [vmem:[%s2 + $0x260] sm:$0xff]
  %v2689 = vld [vmem:[%s2 + $0x268] sm:$0xff]
  %v2690 = vld [vmem:[%s2 + $0x270] sm:$0xff]
  %v2691 = vld [vmem:[%s2 + $0x278] sm:$0xff]
  %v2692 = vld [vmem:[%s2 + $0x280] sm:$0xff]
  %v2693 = vld [vmem:[%s2 + $0x288] sm:$0xff]
  %v2694 = vld [vmem:[%s2 + $0x290] sm:$0xff]
  %v2695 = vld [vmem:[%s2 + $0x298] sm:$0xff]
  %v2696 = vld [vmem:[%s2 + $0x2a0] sm:$0xff]
  %v2697 = vld [vmem:[%s2 + $0x2a8] sm:$0xff]
  %v2698 = vld [vmem:[%s2 + $0x2b0] sm:$0xff]
  %v2699 = vld [vmem:[%s2 + $0x2b8] sm:$0xff]
  %v2700 = vld [vmem:[%s2 + $0x2c0] sm:$0xff]
  %v2701 = vld [vmem:[%s2 + $0x2c8] sm:$0xff]
  %v2702 = vld [vmem:[%s2 + $0x2d0] sm:$0xff]
  %v2703 = vld [vmem:[%s2 + $0x2d8] sm:$0xff]
  %v2704 = vld [vmem:[%s2 + $0x2e0] sm:$0xff]
  %vm2705 = vcmask 261120
  %v2707 = vsel %vm2705, %v2676, 0
  %v2710 = vsel %vm2705, %v2678, 0
  %v2713 = vsel %vm2705, %v2680, 0
  %v2716 = vsel %vm2705, %v2682, 0
  %v2719 = vsel %vm2705, %v2684, 0
  %2721 = vmatprep.subr.mxu0 0.0
  %2722 = vmatpush1.msra.mxu0 %v2685
  %2723 = vmatprep.subr.mxu0 0.0
  %2724 = vmatpush1.msra.mxu0 %v2686
  %2725 = vmatprep.subr.mxu0 0.0
  %2726 = vmatpush1.msra.mxu0 %v2687
  %2727 = vmatprep.subr.mxu0 0.0
  %2728 = vmatpush1.msra.mxu0 %v2688
  %2729 = vmatprep.subr.mxu0 0.0
  %2730 = vmatpush1.msra.mxu0 %v2689
  %2731 = vmatprep.subr.mxu0 0.0
  %2732 = vmatpush1.msra.mxu0 %v2690
  %2733 = vmatprep.subr.mxu0 0.0
  %2734 = vmatpush1.msra.mxu0 %v2691
  %2735 = vmatprep.subr.mxu0 0.0
  %2736 = vmatpush1.msra.mxu0 %v2692
  %2737 = vmatprep.subr.mxu0 0.0
  %2738 = vmatpush1.msra.mxu0 %v2693
  %2739 = vmatprep.subr.mxu0 0.0
  %2740 = vmatpush1.msra.mxu0 %v2694
  %2741 = vmatprep.subr.mxu0 0.0
  %2742 = vmatpush1.msra.mxu0 %v2695
  %2743 = vmatprep.subr.mxu0 0.0
  %2744 = vmatpush1.msra.mxu0 %v2696
  %2745 = vmatprep.subr.mxu0 0.0
  %2746 = vmatpush1.msra.mxu0 %v2697
  %2747 = vmatprep.subr.mxu0 0.0
  %2748 = vmatpush1.msra.mxu0 %v2698
  %2749 = vmatprep.subr.mxu0 0.0
  %2750 = vmatpush1.msra.mxu0 %v2699
  %2751 = vmatprep.subr.mxu0 0.0
  %2752 = vmatpush1.msra.mxu0 %v2700
  %2753 = vmatprep.subr.mxu0 0.0
  %2754 = vmatpush1.msra.mxu0 %v2701
  %2755 = vmatprep.subr.mxu0 0.0
  %2756 = vmatpush1.msra.mxu0 %v2702
  %2757 = vmatprep.subr.mxu0 0.0
  %2758 = vmatpush1.msra.mxu0 %v2703
  %2759 = vmatprep.subr.mxu0 0.0
  %2760 = vmatpush1.msra.mxu0 %v2704
  %2761 = vmatprep.subr.mxu0 0.0
  %2762 = vmatpush1.msra.mxu0 0.0
  %2763 = vmatprep.subr.mxu0 0.0
  %2764 = vmatpush1.msra.mxu0 0.0
  %2765 = vmatprep.subr.mxu0 0.0
  %2766 = vmatpush1.msra.mxu0 0.0
  %2767 = vmatprep.subr.mxu0 0.0
  %2768 = vmatpush1.msra.mxu0 0.0
  %2769 = vmatprep.subr.mxu0 0.0
  %2770 = vmatpush1.msra.mxu0 0.0
  %2771 = vmatprep.subr.mxu0 0.0
  %2772 = vmatpush1.msra.mxu0 0.0
  %2773 = vmatprep.subr.mxu0 0.0
  %2774 = vmatpush1.msra.mxu0 0.0
  %2775 = vmatprep.subr.mxu0 0.0
  %2776 = vmatpush1.msra.mxu0 0.0
  %2777 = vmatprep.subr.mxu0 0.0
  %2778 = vmatpush1.msra.mxu0 0.0
  %2779 = vmatprep.subr.mxu0 0.0
  %2780 = vmatpush1.msra.mxu0 0.0
  %2781 = vmatprep.subr.mxu0 0.0
  %2782 = vmatpush1.msra.mxu0 0.0
  %2783 = vmatprep.subr.mxu0 0.0
  %2784 = vmatpush1.msra.mxu0 0.0
  %2785 = vmatprep.mubr.f32.mxu0 %v2707
  %2786 = vmatmul.mubr.f32.gmra.mrb[0].mxu0 %v2675
  %v2787 = vpop.f32.mrb[0].mxu0
  %v2788 = vadd.f32 0.0, %v2787
  %v2789 = vpop.f32.mrb[0].mxu0
  %2790 = vmatprep.mubr.f32.mxu0 %v2710
  %2791 = vmatmul.mubr.f32.gmra.mrb[0].mxu0 %v2677
  %v2792 = vpop.f32.mrb[0].mxu0
  %v2793 = vadd.f32 0.0, %v2792
  %v2794 = vpop.f32.mrb[0].mxu0
  %2795 = vmatprep.mubr.f32.mxu0 %v2713
  %2796 = vmatmul.mubr.f32.gmra.mrb[0].mxu0 %v2679
  %v2797 = vpop.f32.mrb[0].mxu0
  %v2798 = vadd.f32 0.0, %v2797
  %v2799 = vpop.f32.mrb[0].mxu0
  %2800 = vmatprep.mubr.f32.mxu0 %v2716
  %2801 = vmatmul.mubr.f32.gmra.mrb[0].mxu0 %v2681
  %v2802 = vpop.f32.mrb[0].mxu0
  %v2803 = vadd.f32 0.0, %v2802
  %v2804 = vpop.f32.mrb[0].mxu0
  %2805 = vmatprep.mubr.f32.mxu0 %v2719
  %2806 = vmatmul.mubr.f32.gmra.mrb[0].mxu0 %v2683
  %v2807 = vpop.f32.mrb[0].mxu0
  %v2808 = vadd.f32 0.0, %v2807
  %v2809 = vpop.f32.mrb[0].mxu0
  %2810 = vdwg.mxu0
  %v2811 = vld [vmem:[%s2 + $0x2e8] sm:$0xff]
  %v2812 = vld [vmem:[%s2 + $0x2f0] sm:$0xff]
  %v2813 = vld [vmem:[%s2 + $0x2f8] sm:$0xff]
  %v2814 = vld [vmem:[%s2 + $0x300] sm:$0xff]
  %v2815 = vld [vmem:[%s2 + $0x308] sm:$0xff]
  %v2816 = vld [vmem:[%s2 + $0x310] sm:$0xff]
  %v2817 = vld [vmem:[%s2 + $0x318] sm:$0xff]
  %v2818 = vld [vmem:[%s2 + $0x320] sm:$0xff]
  %v2819 = vld [vmem:[%s2 + $0x328] sm:$0xff]
  %v2820 = vld [vmem:[%s2 + $0x330] sm:$0xff]
  %v2821 = vld [vmem:[%s2 + $0x338] sm:$0xff]
  %v2822 = vld [vmem:[%s2 + $0x340] sm:$0xff]
  %v2823 = vld [vmem:[%s2 + $0x348] sm:$0xff]
  %v2824 = vld [vmem:[%s2 + $0x350] sm:$0xff]
  %v2825 = vld [vmem:[%s2 + $0x358] sm:$0xff]
  %v2826 = vld [vmem:[%s2 + $0x360] sm:$0xff]
  %v2827 = vld [vmem:[%s2 + $0x368] sm:$0xff]
  %v2828 = vld [vmem:[%s2 + $0x370] sm:$0xff]
  %v2829 = vld [vmem:[%s2 + $0x378] sm:$0xff]
  %v2830 = vld [vmem:[%s2 + $0x380] sm:$0xff]
  %2831 = vmatprep.subr.mxu0 0.0
  %2832 = vmatpush1.msra.mxu0 %v2811
  %2833 = vmatprep.subr.mxu0 0.0
  %2834 = vmatpush1.msra.mxu0 %v2812
  %2835 = vmatprep.subr.mxu0 0.0
  %2836 = vmatpush1.msra.mxu0 %v2813
  %2837 = vmatprep.subr.mxu0 0.0
  %2838 = vmatpush1.msra.mxu0 %v2814
  %2839 = vmatprep.subr.mxu0 0.0
  %2840 = vmatpush1.msra.mxu0 %v2815
  %2841 = vmatprep.subr.mxu0 0.0
  %2842 = vmatpush1.msra.mxu0 %v2816
  %2843 = vmatprep.subr.mxu0 0.0
  %2844 = vmatpush1.msra.mxu0 %v2817
  %2845 = vmatprep.subr.mxu0 0.0
  %2846 = vmatpush1.msra.mxu0 %v2818
  %2847 = vmatprep.subr.mxu0 0.0
  %2848 = vmatpush1.msra.mxu0 %v2819
  %2849 = vmatprep.subr.mxu0 0.0
  %2850 = vmatpush1.msra.mxu0 %v2820
  %2851 = vmatprep.subr.mxu0 0.0
  %2852 = vmatpush1.msra.mxu0 %v2821
  %2853 = vmatprep.subr.mxu0 0.0
  %2854 = vmatpush1.msra.mxu0 %v2822
  %2855 = vmatprep.subr.mxu0 0.0
  %2856 = vmatpush1.msra.mxu0 %v2823
  %2857 = vmatprep.subr.mxu0 0.0
  %2858 = vmatpush1.msra.mxu0 %v2824
  %2859 = vmatprep.subr.mxu0 0.0
  %2860 = vmatpush1.msra.mxu0 %v2825
  %2861 = vmatprep.subr.mxu0 0.0
  %2862 = vmatpush1.msra.mxu0 %v2826
  %2863 = vmatprep.subr.mxu0 0.0
  %2864 = vmatpush1.msra.mxu0 %v2827
  %2865 = vmatprep.subr.mxu0 0.0
  %2866 = vmatpush1.msra.mxu0 %v2828
  %2867 = vmatprep.subr.mxu0 0.0
  %2868 = vmatpush1.msra.mxu0 %v2829
  %2869 = vmatprep.subr.mxu0 0.0
  %2870 = vmatpush1.msra.mxu0 %v2830
  %2871 = vmatprep.subr.mxu0 0.0
  %2872 = vmatpush1.msra.mxu0 0.0
  %2873 = vmatprep.subr.mxu0 0.0
  %2874 = vmatpush1.msra.mxu0 0.0
  %2875 = vmatprep.subr.mxu0 0.0
  %2876 = vmatpush1.msra.mxu0 0.0
  %2877 = vmatprep.subr.mxu0 0.0
  %2878 = vmatpush1.msra.mxu0 0.0
  %2879 = vmatprep.subr.mxu0 0.0
  %2880 = vmatpush1.msra.mxu0 0.0
  %2881 = vmatprep.subr.mxu0 0.0
  %2882 = vmatpush1.msra.mxu0 0.0
  %2883 = vmatprep.subr.mxu0 0.0
  %2884 = vmatpush1.msra.mxu0 0.0
  %2885 = vmatprep.subr.mxu0 0.0
  %2886 = vmatpush1.msra.mxu0 0.0
  %2887 = vmatprep.subr.mxu0 0.0
  %2888 = vmatpush1.msra.mxu0 0.0
  %2889 = vmatprep.subr.mxu0 0.0
  %2890 = vmatpush1.msra.mxu0 0.0
  %2891 = vmatprep.subr.mxu0 0.0
  %2892 = vmatpush1.msra.mxu0 0.0
  %2893 = vmatprep.subr.mxu0 0.0
  %2894 = vmatpush1.msra.mxu0 0.0
  %2895 = vmatprep.mubr.f32.mxu0 %v2707
  %2896 = vmatmul.mubr.f32.gmra.mrb[0].mxu0 %v2675
  %v2897 = vpop.f32.mrb[0].mxu0
  %v2898 = vadd.f32 0.0, %v2897
  %v2899 = vpop.f32.mrb[0].mxu0
  %2900 = vmatprep.mubr.f32.mxu0 %v2710
  %2901 = vmatmul.mubr.f32.gmra.mrb[0].mxu0 %v2677
  %v2902 = vpop.f32.mrb[0].mxu0
  %v2903 = vadd.f32 0.0, %v2902
  %v2904 = vpop.f32.mrb[0].mxu0
  %2905 = vmatprep.mubr.f32.mxu0 %v2713
  %2906 = vmatmul.mubr.f32.gmra.mrb[0].mxu0 %v2679
  %v2907 = vpop.f32.mrb[0].mxu0
  %v2908 = vadd.f32 0.0, %v2907
  %v2909 = vpop.f32.mrb[0].mxu0
  %2910 = vmatprep.mubr.f32.mxu0 %v2716
  %2911 = vmatmul.mubr.f32.gmra.mrb[0].mxu0 %v2681
  %v2912 = vpop.f32.mrb[0].mxu0
  %v2913 = vadd.f32 0.0, %v2912
  %v2914 = vpop.f32.mrb[0].mxu0
  %2915 = vmatprep.mubr.f32.mxu0 %v2719
  %2916 = vmatmul.mubr.f32.gmra.mrb[0].mxu0 %v2683
  %v2917 = vpop.f32.mrb[0].mxu0
  %v2918 = vadd.f32 0.0, %v2917
  %v2919 = vpop.f32.mrb[0].mxu0
  %2920 = vdwg.mxu0
  %v2921 = vmax.f32 %v2788, %v2898
  %v2922 = vmax.f32 %v2793, %v2903
  %v2923 = vmax.f32 %v2798, %v2908
  %v2924 = vmax.f32 %v2803, %v2913
  %v2925 = vmax.f32 %v2808, %v2918
  %vm2926 = vcmask 654336
  %v2927 = vsel %vm2926, %v2921, 0.0
  %v2928 = vsel %vm2926, %v2922, 0.0
  %v2929 = vadd.f32 %v2927, %v2928
  %v2930 = vsel %vm2926, %v2923, 0.0
  %v2931 = vadd.f32 %v2929, %v2930
  %v2932 = vsel %vm2926, %v2924, 0.0
  %v2933 = vadd.f32 %v2931, %v2932
  %v2934 = vsel %vm2926, %v2925, 0.0
  %v2935 = vadd.f32 %v2933, %v2934
  %v2936 = vrot.slane %v2935, 4
  %v2937 = vadd.f32 %v2935, %v2936
  %v2938 = vrot.slane %v2937, 2
  %v2939 = vadd.f32 %v2937, %v2938
  %v2940 = vrot.slane %v2939, 1
  %v2941 = vadd.f32 %v2939, %v2940
  %v2942 = vmul.f32 %v2921, %v2921
  %v2943 = vmul.f32 %v2922, %v2922
  %v2944 = vmul.f32 %v2923, %v2923
  %v2945 = vmul.f32 %v2924, %v2924
  %v2946 = vmul.f32 %v2925, %v2925
  %v2947 = vsel %vm2926, %v2942, 0.0
  %v2948 = vsel %vm2926, %v2943, 0.0
  %v2949 = vadd.f32 %v2947, %v2948
  %v2950 = vsel %vm2926, %v2944, 0.0
  %v2951 = vadd.f32 %v2949, %v2950
  %v2952 = vsel %vm2926, %v2945, 0.0
  %v2953 = vadd.f32 %v2951, %v2952
  %v2954 = vsel %vm2926, %v2946, 0.0
  %v2955 = vadd.f32 %v2953, %v2954
  %v2956 = vrot.slane %v2955, 4
  %v2957 = vadd.f32 %v2955, %v2956
  %v2958 = vrot.slane %v2957, 2
  %v2959 = vadd.f32 %v2957, %v2958
  %v2960 = vrot.slane %v2959, 1
  %v2961 = vadd.f32 %v2959, %v2960
  %v2962 = vld [vmem:[%s2 + $0x388] sm:$0xff]
  %v2963 = vld [vmem:[%s2 + $0x390] sm:$0xff]
  %v2964 = vld [vmem:[%s2 + $0x398] sm:$0xff]
  %v2965 = vld [vmem:[%s2 + $0x3a0] sm:$0xff]
  %v2966 = vld [vmem:[%s2 + $0x3a8] sm:$0xff]
  %v2967 = vld [vmem:[%s2 + $0x3b0] sm:$0xff]
  %v2968 = vld [vmem:[%s2 + $0x3b8] sm:$0xff]
  %v2969 = vld [vmem:[%s2 + $0x3c0] sm:$0xff]
  %v2970 = vld [vmem:[%s2 + $0x3c8] sm:$0xff]
  %v2971 = vld [vmem:[%s2 + $0x3d0] sm:$0xff]
  %v2973 = vsel %vm2926, %v2941, 0
  %2975 = vmatprep.subr.mxu0 0.0
  %2976 = vmatpush1.msra.mxu0 %v2962
  %2977 = vmatprep.subr.mxu0 0.0
  %2978 = vmatpush1.msra.mxu0 %v2963
  %2979 = vmatprep.subr.mxu0 0.0
  %2980 = vmatpush1.msra.mxu0 %v2964
  %2981 = vmatprep.subr.mxu0 0.0
  %2982 = vmatpush1.msra.mxu0 %v2965
  %2983 = vmatprep.subr.mxu0 0.0
  %2984 = vmatpush1.msra.mxu0 %v2966
  %2985 = vmatprep.subr.mxu0 0.0
  %2986 = vmatpush1.msra.mxu0 %v2967
  %2987 = vmatprep.subr.mxu0 0.0
  %2988 = vmatpush1.msra.mxu0 %v2968
  %2989 = vmatprep.subr.mxu0 0.0
  %2990 = vmatpush1.msra.mxu0 %v2969
  %2991 = vmatprep.subr.mxu0 0.0
  %2992 = vmatpush1.msra.mxu0 %v2970
  %2993 = vmatprep.subr.mxu0 0.0
  %2994 = vmatpush1.msra.mxu0 %v2971
  %2995 = vmatprep.subr.mxu0 0.0
  %2996 = vmatpush1.msra.mxu0 0.0
  %2997 = vmatprep.subr.mxu0 0.0
  %2998 = vmatpush1.msra.mxu0 0.0
  %2999 = vmatprep.subr.mxu0 0.0
  %3000 = vmatpush1.msra.mxu0 0.0
  %3001 = vmatprep.subr.mxu0 0.0
  %3002 = vmatpush1.msra.mxu0 0.0
  %3003 = vmatprep.subr.mxu0 0.0
  %3004 = vmatpush1.msra.mxu0 0.0
  %3005 = vmatprep.subr.mxu0 0.0
  %3006 = vmatpush1.msra.mxu0 0.0
  %3007 = vmatprep.subr.mxu0 0.0
  %3008 = vmatpush1.msra.mxu0 0.0
  %3009 = vmatprep.subr.mxu0 0.0
  %3010 = vmatpush1.msra.mxu0 0.0
  %3011 = vmatprep.subr.mxu0 0.0
  %3012 = vmatpush1.msra.mxu0 0.0
  %3013 = vmatprep.subr.mxu0 0.0
  %3014 = vmatpush1.msra.mxu0 0.0
  %3015 = vmatprep.subr.mxu0 0.0
  %3016 = vmatpush1.msra.mxu0 0.0
  %3017 = vmatprep.subr.mxu0 0.0
  %3018 = vmatpush1.msra.mxu0 0.0
  %3019 = vmatprep.subr.mxu0 0.0
  %3020 = vmatpush1.msra.mxu0 0.0
  %3021 = vmatprep.subr.mxu0 0.0
  %3022 = vmatpush1.msra.mxu0 0.0
  %3023 = vmatprep.subr.mxu0 0.0
  %3024 = vmatpush1.msra.mxu0 0.0
  %3025 = vmatprep.subr.mxu0 0.0
  %3026 = vmatpush1.msra.mxu0 0.0
  %3027 = vmatprep.subr.mxu0 0.0
  %3028 = vmatpush1.msra.mxu0 0.0
  %3029 = vmatprep.subr.mxu0 0.0
  %3030 = vmatpush1.msra.mxu0 0.0
  %3031 = vmatprep.subr.mxu0 0.0
  %3032 = vmatpush1.msra.mxu0 0.0
  %3033 = vmatprep.subr.mxu0 0.0
  %3034 = vmatpush1.msra.mxu0 0.0
  %3035 = vmatprep.subr.mxu0 0.0
  %3036 = vmatpush1.msra.mxu0 0.0
  %3037 = vmatprep.subr.mxu0 0.0
  %3038 = vmatpush1.msra.mxu0 0.0
  %3039 = vmatprep.mubr.f32.mxu0 0.0
  %3040 = vmatmul.mubr.f32.gmra.mrb[0].mxu0 %v2973
  %v3041 = vpop.f32.mrb[0].mxu0
  %v3042 = vadd.f32 0.0, %v3041
  %v3043 = vpop.f32.mrb[0].mxu0
  %3044 = vdwg.mxu0
  %v3046 = vsel %vm2926, %v2961, 0
  %3048 = vmatprep.subr.mxu0 0.0
  %3049 = vmatpush1.msra.mxu0 %v2962
  %3050 = vmatprep.subr.mxu0 0.0
  %3051 = vmatpush1.msra.mxu0 %v2963
  %3052 = vmatprep.subr.mxu0 0.0
  %3053 = vmatpush1.msra.mxu0 %v2964
  %3054 = vmatprep.subr.mxu0 0.0
  %3055 = vmatpush1.msra.mxu0 %v2965
  %3056 = vmatprep.subr.mxu0 0.0
  %3057 = vmatpush1.msra.mxu0 %v2966
  %3058 = vmatprep.subr.mxu0 0.0
  %3059 = vmatpush1.msra.mxu0 %v2967
  %3060 = vmatprep.subr.mxu0 0.0
  %3061 = vmatpush1.msra.mxu0 %v2968
  %3062 = vmatprep.subr.mxu0 0.0
  %3063 = vmatpush1.msra.mxu0 %v2969
  %3064 = vmatprep.subr.mxu0 0.0
  %3065 = vmatpush1.msra.mxu0 %v2970
  %3066 = vmatprep.subr.mxu0 0.0
  %3067 = vmatpush1.msra.mxu0 %v2971
  %3068 = vmatprep.subr.mxu0 0.0
  %3069 = vmatpush1.msra.mxu0 0.0
  %3070 = vmatprep.subr.mxu0 0.0
  %3071 = vmatpush1.msra.mxu0 0.0
  %3072 = vmatprep.subr.mxu0 0.0
  %3073 = vmatpush1.msra.mxu0 0.0
  %3074 = vmatprep.subr.mxu0 0.0
  %3075 = vmatpush1.msra.mxu0 0.0
  %3076 = vmatprep.subr.mxu0 0.0
  %3077 = vmatpush1.msra.mxu0 0.0
  %3078 = vmatprep.subr.mxu0 0.0
  %3079 = vmatpush1.msra.mxu0 0.0
  %3080 = vmatprep.subr.mxu0 0.0
  %3081 = vmatpush1.msra.mxu0 0.0
  %3082 = vmatprep.subr.mxu0 0.0
  %3083 = vmatpush1.msra.mxu0 0.0
  %3084 = vmatprep.subr.mxu0 0.0
  %3085 = vmatpush1.msra.mxu0 0.0
  %3086 = vmatprep.subr.mxu0 0.0
  %3087 = vmatpush1.msra.mxu0 0.0
  %3088 = vmatprep.subr.mxu0 0.0
  %3089 = vmatpush1.msra.mxu0 0.0
  %3090 = vmatprep.subr.mxu0 0.0
  %3091 = vmatpush1.msra.mxu0 0.0
  %3092 = vmatprep.subr.mxu0 0.0
  %3093 = vmatpush1.msra.mxu0 0.0
  %3094 = vmatprep.subr.mxu0 0.0
  %3095 = vmatpush1.msra.mxu0 0.0
  %3096 = vmatprep.subr.mxu0 0.0
  %3097 = vmatpush1.msra.mxu0 0.0
  %3098 = vmatprep.subr.mxu0 0.0
  %3099 = vmatpush1.msra.mxu0 0.0
  %3100 = vmatprep.subr.mxu0 0.0
  %3101 = vmatpush1.msra.mxu0 0.0
  %3102 = vmatprep.subr.mxu0 0.0
  %3103 = vmatpush1.msra.mxu0 0.0
  %3104 = vmatprep.subr.mxu0 0.0
  %3105 = vmatpush1.msra.mxu0 0.0
  %3106 = vmatprep.subr.mxu0 0.0
  %3107 = vmatpush1.msra.mxu0 0.0
  %3108 = vmatprep.subr.mxu0 0.0
  %3109 = vmatpush1.msra.mxu0 0.0
  %3110 = vmatprep.subr.mxu0 0.0
  %3111 = vmatpush1.msra.mxu0 0.0
  %3112 = vmatprep.mubr.f32.mxu0 0.0
  %3113 = vmatmul.mubr.f32.gmra.mrb[0].mxu0 %v3046
  %v3114 = vpop.f32.mrb[0].mxu0
  %v3115 = vadd.f32 0.0, %v3114
  %v3116 = vpop.f32.mrb[0].mxu0
  %3117 = vdwg.mxu0
  %v3118 = vmul.f32 %v3042, %v3042
  %v3119 = vsub.f32 %v3115, %v3118
  %v3120 = vadd.f32 %v3119, 1e-05
  %v3121 = vrsqrt.pop %v3120
  %v3122 = vld [vmem:[%s2 + $0x3d8] sm:$0xff]
  %v3123 = vld [vmem:[%s2 + $0x3e0] sm:$0xff]
  %vm3124 = vcmask 130048
  %v3126 = vsel %vm3124, %v3121, 0
  %3128 = vmatprep.subr.mxu0 0.0
  %3129 = vmatpush1.msra.mxu0 %v3122
  %3130 = vmatprep.subr.mxu0 0.0
  %3131 = vmatpush1.msra.mxu0 %v3123
  %3132 = vmatprep.subr.mxu0 0.0
  %3133 = vmatpush1.msra.mxu0 0.0
  %3134 = vmatprep.subr.mxu0 0.0
  %3135 = vmatpush1.msra.mxu0 0.0
  %3136 = vmatprep.subr.mxu0 0.0
  %3137 = vmatpush1.msra.mxu0 0.0
  %3138 = vmatprep.subr.mxu0 0.0
  %3139 = vmatpush1.msra.mxu0 0.0
  %3140 = vmatprep.subr.mxu0 0.0
  %3141 = vmatpush1.msra.mxu0 0.0
  %3142 = vmatprep.subr.mxu0 0.0
  %3143 = vmatpush1.msra.mxu0 0.0
  %3144 = vmatprep.subr.mxu0 0.0
  %3145 = vmatpush1.msra.mxu0 0.0
  %3146 = vmatprep.subr.mxu0 0.0
  %3147 = vmatpush1.msra.mxu0 0.0
  %3148 = vmatprep.subr.mxu0 0.0
  %3149 = vmatpush1.msra.mxu0 0.0
  %3150 = vmatprep.subr.mxu0 0.0
  %3151 = vmatpush1.msra.mxu0 0.0
  %3152 = vmatprep.subr.mxu0 0.0
  %3153 = vmatpush1.msra.mxu0 0.0
  %3154 = vmatprep.subr.mxu0 0.0
  %3155 = vmatpush1.msra.mxu0 0.0
  %3156 = vmatprep.subr.mxu0 0.0
  %3157 = vmatpush1.msra.mxu0 0.0
  %3158 = vmatprep.subr.mxu0 0.0
  %3159 = vmatpush1.msra.mxu0 0.0
  %3160 = vmatprep.subr.mxu0 0.0
  %3161 = vmatpush1.msra.mxu0 0.0
  %3162 = vmatprep.subr.mxu0 0.0
  %3163 = vmatpush1.msra.mxu0 0.0
  %3164 = vmatprep.subr.mxu0 0.0
  %3165 = vmatpush1.msra.mxu0 0.0
  %3166 = vmatprep.subr.mxu0 0.0
  %3167 = vmatpush1.msra.mxu0 0.0
  %3168 = vmatprep.subr.mxu0 0.0
  %3169 = vmatpush1.msra.mxu0 0.0
  %3170 = vmatprep.subr.mxu0 0.0
  %3171 = vmatpush1.msra.mxu0 0.0
  %3172 = vmatprep.subr.mxu0 0.0
  %3173 = vmatpush1.msra.mxu0 0.0
  %3174 = vmatprep.subr.mxu0 0.0
  %3175 = vmatpush1.msra.mxu0 0.0
  %3176 = vmatprep.subr.mxu0 0.0
  %3177 = vmatpush1.msra.mxu0 0.0
  %3178 = vmatprep.subr.mxu0 0.0
  %3179 = vmatpush1.msra.mxu0 0.0
  %3180 = vmatprep.subr.mxu0 0.0
  %3181 = vmatpush1.msra.mxu0 0.0
  %3182 = vmatprep.subr.mxu0 0.0
  %3183 = vmatpush1.msra.mxu0 0.0
  %3184 = vmatprep.subr.mxu0 0.0
  %3185 = vmatpush1.msra.mxu0 0.0
  %3186 = vmatprep.subr.mxu0 0.0
  %3187 = vmatpush1.msra.mxu0 0.0
  %3188 = vmatprep.subr.mxu0 0.0
  %3189 = vmatpush1.msra.mxu0 0.0
  %3190 = vmatprep.subr.mxu0 0.0
  %3191 = vmatpush1.msra.mxu0 0.0
  %3192 = vmatprep.mubr.f32.mxu0 0.0
  %3193 = vmatmul.mubr.f32.gmra.mrb[0].mxu0 %v3126
  %v3194 = vpop.f32.mrb[0].mxu0
  %v3195 = vadd.f32 0.0, %v3194
  %v3196 = vpop.f32.mrb[0].mxu0
  %3197 = vdwg.mxu0
  %v3198 = vld [vmem:[%s2 + $0x3e8] sm:$0x1]
  %v3199 = vmul.f32 %v3042, %v3121
  %v3201 = vsel %vm3124, %v3199, 0
  %3203 = vmatprep.subr.mxu0 0.0
  %3204 = vmatpush1.msra.mxu0 %v3122
  %3205 = vmatprep.subr.mxu0 0.0
  %3206 = vmatpush1.msra.mxu0 %v3123
  %3207 = vmatprep.subr.mxu0 0.0
  %3208 = vmatpush1.msra.mxu0 0.0
  %3209 = vmatprep.subr.mxu0 0.0
  %3210 = vmatpush1.msra.mxu0 0.0
  %3211 = vmatprep.subr.mxu0 0.0
  %3212 = vmatpush1.msra.mxu0 0.0
  %3213 = vmatprep.subr.mxu0 0.0
  %3214 = vmatpush1.msra.mxu0 0.0
  %3215 = vmatprep.subr.mxu0 0.0
  %3216 = vmatpush1.msra.mxu0 0.0
  %3217 = vmatprep.subr.mxu0 0.0
  %3218 = vmatpush1.msra.mxu0 0.0
  %3219 = vmatprep.subr.mxu0 0.0
  %3220 = vmatpush1.msra.mxu0 0.0
  %3221 = vmatprep.subr.mxu0 0.0
  %3222 = vmatpush1.msra.mxu0 0.0
  %3223 = vmatprep.subr.mxu0 0.0
  %3224 = vmatpush1.msra.mxu0 0.0
  %3225 = vmatprep.subr.mxu0 0.0
  %3226 = vmatpush1.msra.mxu0 0.0
  %3227 = vmatprep.subr.mxu0 0.0
  %3228 = vmatpush1.msra.mxu0 0.0
  %3229 = vmatprep.subr.mxu0 0.0
  %3230 = vmatpush1.msra.mxu0 0.0
  %3231 = vmatprep.subr.mxu0 0.0
  %3232 = vmatpush1.msra.mxu0 0.0
  %3233 = vmatprep.subr.mxu0 0.0
  %3234 = vmatpush1.msra.mxu0 0.0
  %3235 = vmatprep.subr.mxu0 0.0
  %3236 = vmatpush1.msra.mxu0 0.0
  %3237 = vmatprep.subr.mxu0 0.0
  %3238 = vmatpush1.msra.mxu0 0.0
  %3239 = vmatprep.subr.mxu0 0.0
  %3240 = vmatpush1.msra.mxu0 0.0
  %3241 = vmatprep.subr.mxu0 0.0
  %3242 = vmatpush1.msra.mxu0 0.0
  %3243 = vmatprep.subr.mxu0 0.0
  %3244 = vmatpush1.msra.mxu0 0.0
  %3245 = vmatprep.subr.mxu0 0.0
  %3246 = vmatpush1.msra.mxu0 0.0
  %3247 = vmatprep.subr.mxu0 0.0
  %3248 = vmatpush1.msra.mxu0 0.0
  %3249 = vmatprep.subr.mxu0 0.0
  %3250 = vmatpush1.msra.mxu0 0.0
  %3251 = vmatprep.subr.mxu0 0.0
  %3252 = vmatpush1.msra.mxu0 0.0
  %3253 = vmatprep.subr.mxu0 0.0
  %3254 = vmatpush1.msra.mxu0 0.0
  %3255 = vmatprep.subr.mxu0 0.0
  %3256 = vmatpush1.msra.mxu0 0.0
  %3257 = vmatprep.subr.mxu0 0.0
  %3258 = vmatpush1.msra.mxu0 0.0
  %3259 = vmatprep.subr.mxu0 0.0
  %3260 = vmatpush1.msra.mxu0 0.0
  %3261 = vmatprep.subr.mxu0 0.0
  %3262 = vmatpush1.msra.mxu0 0.0
  %3263 = vmatprep.subr.mxu0 0.0
  %3264 = vmatpush1.msra.mxu0 0.0
  %3265 = vmatprep.subr.mxu0 0.0
  %3266 = vmatpush1.msra.mxu0 0.0
  %3267 = vmatprep.mubr.f32.mxu0 0.0
  %3268 = vmatmul.mubr.f32.gmra.mrb[0].mxu0 %v3201
  %v3269 = vpop.f32.mrb[0].mxu0
  %v3270 = vadd.f32 0.0, %v3269
  %v3271 = vpop.f32.mrb[0].mxu0
  %3272 = vdwg.mxu0
  %v3273 = vsub.f32 %v3198, %v3270
  %v3274 = vlaneseq
  %v3275 = vshrl.u32 %v3274, 7
  %v3276 = vsub.s32 0, %v3275
  %v3277 = vrot.slane %v3195, %v3276
  %v3278 = vmul.f32 %v2921, %v3277
  %v3279 = vmul.f32 %v2922, %v3277
  %v3280 = vmul.f32 %v2923, %v3277
  %v3281 = vmul.f32 %v2924, %v3277
  %v3282 = vmul.f32 %v2925, %v3277
  %v3283 = vlaneseq
  %v3284 = vshrl.u32 %v3283, 7
  %v3285 = vsub.s32 0, %v3284
  %v3286 = vrot.slane %v3273, %v3285
  %v3287 = vadd.f32 %v3278, %v3286
  %v3288 = vadd.f32 %v3279, %v3286
  %v3289 = vadd.f32 %v3280, %v3286
  %v3290 = vadd.f32 %v3281, %v3286
  %v3291 = vadd.f32 %v3282, %v3286
  %v3292 = vpack.c.bf16 %v3287, %v3287
  %v3293 = vld [vmem:[%s3] sm:$0xf]
  %v3294 = vld [vmem:[%s3 + $0x4] sm:$0xf]
  %v3295 = vld [vmem:[%s3 + $0x8] sm:$0xf]
  %v3296 = vld [vmem:[%s3 + $0xc] sm:$0xf]
  %v3297 = vld [vmem:[%s3 + $0x10] sm:$0xf]
  %v3298 = vld [vmem:[%s3 + $0x14] sm:$0xf]
  %v3299 = vld [vmem:[%s3 + $0x18] sm:$0xf]
  %v3300 = vld [vmem:[%s3 + $0x1c] sm:$0xf]
  %v3301 = vld [vmem:[%s3 + $0x20] sm:$0xf]
  %v3302 = vld [vmem:[%s3 + $0x24] sm:$0xf]
  %v3303 = vpack.c.bf16 %v3288, %v3288
  %v3304 = vld [vmem:[%s3 + $0x28] sm:$0xf]
  %v3305 = vld [vmem:[%s3 + $0x2c] sm:$0xf]
  %v3306 = vld [vmem:[%s3 + $0x30] sm:$0xf]
  %v3307 = vld [vmem:[%s3 + $0x34] sm:$0xf]
  %v3308 = vld [vmem:[%s3 + $0x38] sm:$0xf]
  %v3309 = vld [vmem:[%s3 + $0x3c] sm:$0xf]
  %v3310 = vld [vmem:[%s3 + $0x40] sm:$0xf]
  %v3311 = vld [vmem:[%s3 + $0x44] sm:$0xf]
  %v3312 = vld [vmem:[%s3 + $0x48] sm:$0xf]
  %v3313 = vld [vmem:[%s3 + $0x4c] sm:$0xf]
  %v3324 = vunpack.c.l.b16 %v3304
  %v3325 = vunpack.c.l.b16 %v3305
  %v3326 = vunpack.c.l.b16 %v3306
  %v3327 = vunpack.c.l.b16 %v3307
  %v3328 = vunpack.c.l.b16 %v3308
  %v3329 = vunpack.c.l.b16 %v3309
  %v3330 = vunpack.c.l.b16 %v3310
  %v3331 = vunpack.c.l.b16 %v3311
  %v3332 = vunpack.c.l.b16 %v3312
  %v3333 = vunpack.c.l.b16 %v3313
  %v3334 = vpack.c.b16 %v3325, %v3324
  %v3335 = vpack.c.b16 %v3327, %v3326
  %v3336 = vpack.c.b16 %v3329, %v3328
  %v3337 = vpack.c.b16 %v3331, %v3330
  %v3338 = vpack.c.b16 %v3333, %v3332
  %v3345 = vsel %vm2926, %v3303, 0
  %3347 = vmatprep.subr.bf16.mxu0 0
  %3348 = vmatpush1.bf16.msra.mxu0 %v3334
  %3349 = vmatprep.subr.bf16.mxu0 0
  %3350 = vmatpush1.bf16.msra.mxu0 %v3335
  %3351 = vmatprep.subr.bf16.mxu0 0
  %3352 = vmatpush1.bf16.msra.mxu0 %v3336
  %3353 = vmatprep.subr.bf16.mxu0 0
  %3354 = vmatpush1.bf16.msra.mxu0 %v3337
  %3355 = vmatprep.subr.bf16.mxu0 0
  %3356 = vmatpush1.bf16.msra.mxu0 %v3338
  %3357 = vmatprep.subr.bf16.mxu0 0
  %3358 = vmatpush1.bf16.msra.mxu0 0
  %3359 = vmatprep.subr.bf16.mxu0 0
  %3360 = vmatpush1.bf16.msra.mxu0 0
  %3361 = vmatprep.subr.bf16.mxu0 0
  %3362 = vmatpush1.bf16.msra.mxu0 0
  %3363 = vmatprep.subr.bf16.mxu0 0
  %3364 = vmatpush1.bf16.msra.mxu0 0
  %3365 = vmatprep.subr.bf16.mxu0 0
  %3366 = vmatpush1.bf16.msra.mxu0 0
  %3367 = vmatprep.subr.bf16.mxu0 0
  %3368 = vmatpush1.bf16.msra.mxu0 0
  %3369 = vmatprep.subr.bf16.mxu0 0
  %3370 = vmatpush1.bf16.msra.mxu0 0
  %3371 = vmatprep.subr.bf16.mxu0 0
  %3372 = vmatpush1.bf16.msra.mxu0 0
  %3373 = vmatprep.subr.bf16.mxu0 0
  %3374 = vmatpush1.bf16.msra.mxu0 0
  %3375 = vmatprep.subr.bf16.mxu0 0
  %3376 = vmatpush1.bf16.msra.mxu0 0
  %3377 = vmatprep.subr.bf16.mxu0 0
  %3378 = vmatpush1.bf16.msra.mxu0 0
  %3379 = vmatprep.mubr.bf16.mxu0 0
  %3380 = vmatmul.mubr.bf16.gmra.mrb[0].mxu0 %v3345
  %v3381 = vpop.f32.mrb[0].mxu0
  %v3382 = vadd.f32 0.0, %v3381
  %v3383 = vpop.f32.mrb[0].mxu0
  %v3384 = vpop.f32.mrb[0].mxu0
  %v3385 = vpop.f32.mrb[0].mxu0
  %3386 = vdwg.mxu0
  %v3397 = vunpack.c.l.b16 %v3293
  %v3398 = vunpack.c.l.b16 %v3294
  %v3399 = vunpack.c.l.b16 %v3295
  %v3400 = vunpack.c.l.b16 %v3296
  %v3401 = vunpack.c.l.b16 %v3297
  %v3402 = vunpack.c.l.b16 %v3298
  %v3403 = vunpack.c.l.b16 %v3299
  %v3404 = vunpack.c.l.b16 %v3300
  %v3405 = vunpack.c.l.b16 %v3301
  %v3406 = vunpack.c.l.b16 %v3302
  %v3407 = vpack.c.b16 %v3398, %v3397
  %v3408 = vpack.c.b16 %v3400, %v3399
  %v3409 = vpack.c.b16 %v3402, %v3401
  %v3410 = vpack.c.b16 %v3404, %v3403
  %v3411 = vpack.c.b16 %v3406, %v3405
  %v3418 = vsel %vm2926, %v3292, 0
  %3420 = vmatprep.subr.bf16.mxu0 0
  %3421 = vmatpush1.bf16.msra.mxu0 %v3407
  %3422 = vmatprep.subr.bf16.mxu0 0
  %3423 = vmatpush1.bf16.msra.mxu0 %v3408
  %3424 = vmatprep.subr.bf16.mxu0 0
  %3425 = vmatpush1.bf16.msra.mxu0 %v3409
  %3426 = vmatprep.subr.bf16.mxu0 0
  %3427 = vmatpush1.bf16.msra.mxu0 %v3410
  %3428 = vmatprep.subr.bf16.mxu0 0
  %3429 = vmatpush1.bf16.msra.mxu0 %v3411
  %3430 = vmatprep.subr.bf16.mxu0 0
  %3431 = vmatpush1.bf16.msra.mxu0 0
  %3432 = vmatprep.subr.bf16.mxu0 0
  %3433 = vmatpush1.bf16.msra.mxu0 0
  %3434 = vmatprep.subr.bf16.mxu0 0
  %3435 = vmatpush1.bf16.msra.mxu0 0
  %3436 = vmatprep.subr.bf16.mxu0 0
  %3437 = vmatpush1.bf16.msra.mxu0 0
  %3438 = vmatprep.subr.bf16.mxu0 0
  %3439 = vmatpush1.bf16.msra.mxu0 0
  %3440 = vmatprep.subr.bf16.mxu0 0
  %3441 = vmatpush1.bf16.msra.mxu0 0
  %3442 = vmatprep.subr.bf16.mxu0 0
  %3443 = vmatpush1.bf16.msra.mxu0 0
  %3444 = vmatprep.subr.bf16.mxu0 0
  %3445 = vmatpush1.bf16.msra.mxu0 0
  %3446 = vmatprep.subr.bf16.mxu0 0
  %3447 = vmatpush1.bf16.msra.mxu0 0
  %3448 = vmatprep.subr.bf16.mxu0 0
  %3449 = vmatpush1.bf16.msra.mxu0 0
  %3450 = vmatprep.subr.bf16.mxu0 0
  %3451 = vmatpush1.bf16.msra.mxu0 0
  %3452 = vmatprep.mubr.bf16.mxu0 0
  %3453 = vmatmul.mubr.bf16.gmra.mrb[0].mxu0 %v3418
  %v3454 = vpop.f32.mrb[0].mxu0
  %v3455 = vadd.f32 %v3382, %v3454
  %v3456 = vpop.f32.mrb[0].mxu0
  %v3457 = vpop.f32.mrb[0].mxu0
  %v3458 = vpop.f32.mrb[0].mxu0
  %3459 = vdwg.mxu0
  %v3460 = vpack.c.bf16 %v3289, %v3289
  %v3461 = vld [vmem:[%s3 + $0x50] sm:$0xf]
  %v3462 = vld [vmem:[%s3 + $0x54] sm:$0xf]
  %v3463 = vld [vmem:[%s3 + $0x58] sm:$0xf]
  %v3464 = vld [vmem:[%s3 + $0x5c] sm:$0xf]
  %v3465 = vld [vmem:[%s3 + $0x60] sm:$0xf]
  %v3466 = vld [vmem:[%s3 + $0x64] sm:$0xf]
  %v3467 = vld [vmem:[%s3 + $0x68] sm:$0xf]
  %v3468 = vld [vmem:[%s3 + $0x6c] sm:$0xf]
  %v3469 = vld [vmem:[%s3 + $0x70] sm:$0xf]
  %v3470 = vld [vmem:[%s3 + $0x74] sm:$0xf]
  %v3481 = vunpack.c.l.b16 %v3461
  %v3482 = vunpack.c.l.b16 %v3462
  %v3483 = vunpack.c.l.b16 %v3463
  %v3484 = vunpack.c.l.b16 %v3464
  %v3485 = vunpack.c.l.b16 %v3465
  %v3486 = vunpack.c.l.b16 %v3466
  %v3487 = vunpack.c.l.b16 %v3467
  %v3488 = vunpack.c.l.b16 %v3468
  %v3489 = vunpack.c.l.b16 %v3469
  %v3490 = vunpack.c.l.b16 %v3470
  %v3491 = vpack.c.b16 %v3482, %v3481
  %v3492 = vpack.c.b16 %v3484, %v3483
  %v3493 = vpack.c.b16 %v3486, %v3485
  %v3494 = vpack.c.b16 %v3488, %v3487
  %v3495 = vpack.c.b16 %v3490, %v3489
  %v3502 = vsel %vm2926, %v3460, 0
  %3504 = vmatprep.subr.bf16.mxu0 0
  %3505 = vmatpush1.bf16.msra.mxu0 %v3491
  %3506 = vmatprep.subr.bf16.mxu0 0
  %3507 = vmatpush1.bf16.msra.mxu0 %v3492
  %3508 = vmatprep.subr.bf16.mxu0 0
  %3509 = vmatpush1.bf16.msra.mxu0 %v3493
  %3510 = vmatprep.subr.bf16.mxu0 0
  %3511 = vmatpush1.bf16.msra.mxu0 %v3494
  %3512 = vmatprep.subr.bf16.mxu0 0
  %3513 = vmatpush1.bf16.msra.mxu0 %v3495
  %3514 = vmatprep.subr.bf16.mxu0 0
  %3515 = vmatpush1.bf16.msra.mxu0 0
  %3516 = vmatprep.subr.bf16.mxu0 0
  %3517 = vmatpush1.bf16.msra.mxu0 0
  %3518 = vmatprep.subr.bf16.mxu0 0
  %3519 = vmatpush1.bf16.msra.mxu0 0
  %3520 = vmatprep.subr.bf16.mxu0 0
  %3521 = vmatpush1.bf16.msra.mxu0 0
  %3522 = vmatprep.subr.bf16.mxu0 0
  %3523 = vmatpush1.bf16.msra.mxu0 0
  %3524 = vmatprep.subr.bf16.mxu0 0
  %3525 = vmatpush1.bf16.msra.mxu0 0
  %3526 = vmatprep.subr.bf16.mxu0 0
  %3527 = vmatpush1.bf16.msra.mxu0 0
  %3528 = vmatprep.subr.bf16.mxu0 0
  %3529 = vmatpush1.bf16.msra.mxu0 0
  %3530 = vmatprep.subr.bf16.mxu0 0
  %3531 = vmatpush1.bf16.msra.mxu0 0
  %3532 = vmatprep.subr.bf16.mxu0 0
  %3533 = vmatpush1.bf16.msra.mxu0 0
  %3534 = vmatprep.subr.bf16.mxu0 0
  %3535 = vmatpush1.bf16.msra.mxu0 0
  %3536 = vmatprep.mubr.bf16.mxu0 0
  %3537 = vmatmul.mubr.bf16.gmra.mrb[0].mxu0 %v3502
  %v3538 = vpop.f32.mrb[0].mxu0
  %v3539 = vadd.f32 0.0, %v3538
  %v3540 = vpop.f32.mrb[0].mxu0
  %v3541 = vpop.f32.mrb[0].mxu0
  %v3542 = vpop.f32.mrb[0].mxu0
  %3543 = vdwg.mxu0
  %v3544 = vadd.f32 %v3455, %v3539
  %v3545 = vpack.c.bf16 %v3290, %v3290
  %v3546 = vld [vmem:[%s3 + $0x78] sm:$0xf]
  %v3547 = vld [vmem:[%s3 + $0x7c] sm:$0xf]
  %v3548 = vld [vmem:[%s3 + $0x80] sm:$0xf]
  %v3549 = vld [vmem:[%s3 + $0x84] sm:$0xf]
  %v3550 = vld [vmem:[%s3 + $0x88] sm:$0xf]
  %v3551 = vld [vmem:[%s3 + $0x8c] sm:$0xf]
  %v3552 = vld [vmem:[%s3 + $0x90] sm:$0xf]
  %v3553 = vld [vmem:[%s3 + $0x94] sm:$0xf]
  %v3554 = vld [vmem:[%s3 + $0x98] sm:$0xf]
  %v3555 = vld [vmem:[%s3 + $0x9c] sm:$0xf]
  %v3566 = vunpack.c.l.b16 %v3546
  %v3567 = vunpack.c.l.b16 %v3547
  %v3568 = vunpack.c.l.b16 %v3548
  %v3569 = vunpack.c.l.b16 %v3549
  %v3570 = vunpack.c.l.b16 %v3550
  %v3571 = vunpack.c.l.b16 %v3551
  %v3572 = vunpack.c.l.b16 %v3552
  %v3573 = vunpack.c.l.b16 %v3553
  %v3574 = vunpack.c.l.b16 %v3554
  %v3575 = vunpack.c.l.b16 %v3555
  %v3576 = vpack.c.b16 %v3567, %v3566
  %v3577 = vpack.c.b16 %v3569, %v3568
  %v3578 = vpack.c.b16 %v3571, %v3570
  %v3579 = vpack.c.b16 %v3573, %v3572
  %v3580 = vpack.c.b16 %v3575, %v3574
  %v3587 = vsel %vm2926, %v3545, 0
  %3589 = vmatprep.subr.bf16.mxu0 0
  %3590 = vmatpush1.bf16.msra.mxu0 %v3576
  %3591 = vmatprep.subr.bf16.mxu0 0
  %3592 = vmatpush1.bf16.msra.mxu0 %v3577
  %3593 = vmatprep.subr.bf16.mxu0 0
  %3594 = vmatpush1.bf16.msra.mxu0 %v3578
  %3595 = vmatprep.subr.bf16.mxu0 0
  %3596 = vmatpush1.bf16.msra.mxu0 %v3579
  %3597 = vmatprep.subr.bf16.mxu0 0
  %3598 = vmatpush1.bf16.msra.mxu0 %v3580
  %3599 = vmatprep.subr.bf16.mxu0 0
  %3600 = vmatpush1.bf16.msra.mxu0 0
  %3601 = vmatprep.subr.bf16.mxu0 0
  %3602 = vmatpush1.bf16.msra.mxu0 0
  %3603 = vmatprep.subr.bf16.mxu0 0
  %3604 = vmatpush1.bf16.msra.mxu0 0
  %3605 = vmatprep.subr.bf16.mxu0 0
  %3606 = vmatpush1.bf16.msra.mxu0 0
  %3607 = vmatprep.subr.bf16.mxu0 0
  %3608 = vmatpush1.bf16.msra.mxu0 0
  %3609 = vmatprep.subr.bf16.mxu0 0
  %3610 = vmatpush1.bf16.msra.mxu0 0
  %3611 = vmatprep.subr.bf16.mxu0 0
  %3612 = vmatpush1.bf16.msra.mxu0 0
  %3613 = vmatprep.subr.bf16.mxu0 0
  %3614 = vmatpush1.bf16.msra.mxu0 0
  %3615 = vmatprep.subr.bf16.mxu0 0
  %3616 = vmatpush1.bf16.msra.mxu0 0
  %3617 = vmatprep.subr.bf16.mxu0 0
  %3618 = vmatpush1.bf16.msra.mxu0 0
  %3619 = vmatprep.subr.bf16.mxu0 0
  %3620 = vmatpush1.bf16.msra.mxu0 0
  %3621 = vmatprep.mubr.bf16.mxu0 0
  %3622 = vmatmul.mubr.bf16.gmra.mrb[0].mxu0 %v3587
  %v3623 = vpop.f32.mrb[0].mxu0
  %v3624 = vadd.f32 0.0, %v3623
  %v3625 = vpop.f32.mrb[0].mxu0
  %v3626 = vpop.f32.mrb[0].mxu0
  %v3627 = vpop.f32.mrb[0].mxu0
  %3628 = vdwg.mxu0
  %v3629 = vadd.f32 %v3544, %v3624
  %v3630 = vpack.c.bf16 %v3291, %v3291
  %v3631 = vld [vmem:[%s3 + $0xa0] sm:$0xf]
  %v3632 = vld [vmem:[%s3 + $0xa4] sm:$0xf]
  %v3633 = vld [vmem:[%s3 + $0xa8] sm:$0xf]
  %v3634 = vld [vmem:[%s3 + $0xac] sm:$0xf]
  %v3635 = vld [vmem:[%s3 + $0xb0] sm:$0xf]
  %v3636 = vld [vmem:[%s3 + $0xb4] sm:$0xf]
  %v3637 = vld [vmem:[%s3 + $0xb8] sm:$0xf]
  %v3638 = vld [vmem:[%s3 + $0xbc] sm:$0xf]
  %v3639 = vld [vmem:[%s3 + $0xc0] sm:$0xf]
  %v3640 = vld [vmem:[%s3 + $0xc4] sm:$0xf]
  %v3651 = vunpack.c.l.b16 %v3631
  %v3652 = vunpack.c.l.b16 %v3632
  %v3653 = vunpack.c.l.b16 %v3633
  %v3654 = vunpack.c.l.b16 %v3634
  %v3655 = vunpack.c.l.b16 %v3635
  %v3656 = vunpack.c.l.b16 %v3636
  %v3657 = vunpack.c.l.b16 %v3637
  %v3658 = vunpack.c.l.b16 %v3638
  %v3659 = vunpack.c.l.b16 %v3639
  %v3660 = vunpack.c.l.b16 %v3640
  %v3661 = vpack.c.b16 %v3652, %v3651
  %v3662 = vpack.c.b16 %v3654, %v3653
  %v3663 = vpack.c.b16 %v3656, %v3655
  %v3664 = vpack.c.b16 %v3658, %v3657
  %v3665 = vpack.c.b16 %v3660, %v3659
  %v3672 = vsel %vm2926, %v3630, 0
  %3674 = vmatprep.subr.bf16.mxu0 0
  %3675 = vmatpush1.bf16.msra.mxu0 %v3661
  %3676 = vmatprep.subr.bf16.mxu0 0
  %3677 = vmatpush1.bf16.msra.mxu0 %v3662
  %3678 = vmatprep.subr.bf16.mxu0 0
  %3679 = vmatpush1.bf16.msra.mxu0 %v3663
  %3680 = vmatprep.subr.bf16.mxu0 0
  %3681 = vmatpush1.bf16.msra.mxu0 %v3664
  %3682 = vmatprep.subr.bf16.mxu0 0
  %3683 = vmatpush1.bf16.msra.mxu0 %v3665
  %3684 = vmatprep.subr.bf16.mxu0 0
  %3685 = vmatpush1.bf16.msra.mxu0 0
  %3686 = vmatprep.subr.bf16.mxu0 0
  %3687 = vmatpush1.bf16.msra.mxu0 0
  %3688 = vmatprep.subr.bf16.mxu0 0
  %3689 = vmatpush1.bf16.msra.mxu0 0
  %3690 = vmatprep.subr.bf16.mxu0 0
  %3691 = vmatpush1.bf16.msra.mxu0 0
  %3692 = vmatprep.subr.bf16.mxu0 0
  %3693 = vmatpush1.bf16.msra.mxu0 0
  %3694 = vmatprep.subr.bf16.mxu0 0
  %3695 = vmatpush1.bf16.msra.mxu0 0
  %3696 = vmatprep.subr.bf16.mxu0 0
  %3697 = vmatpush1.bf16.msra.mxu0 0
  %3698 = vmatprep.subr.bf16.mxu0 0
  %3699 = vmatpush1.bf16.msra.mxu0 0
  %3700 = vmatprep.subr.bf16.mxu0 0
  %3701 = vmatpush1.bf16.msra.mxu0 0
  %3702 = vmatprep.subr.bf16.mxu0 0
  %3703 = vmatpush1.bf16.msra.mxu0 0
  %3704 = vmatprep.subr.bf16.mxu0 0
  %3705 = vmatpush1.bf16.msra.mxu0 0
  %3706 = vmatprep.mubr.bf16.mxu0 0
  %3707 = vmatmul.mubr.bf16.gmra.mrb[0].mxu0 %v3672
  %v3708 = vpop.f32.mrb[0].mxu0
  %v3709 = vadd.f32 0.0, %v3708
  %v3710 = vpop.f32.mrb[0].mxu0
  %v3711 = vpop.f32.mrb[0].mxu0
  %v3712 = vpop.f32.mrb[0].mxu0
  %3713 = vdwg.mxu0
  %v3714 = vadd.f32 %v3629, %v3709
  %v3715 = vld [vmem:[%s2 + $0x3f0] sm:$0x1]
  %v3716 = vlaneseq
  %v3717 = vshrl.u32 %v3716, 7
  %v3718 = vsub.s32 0, %v3717
  %v3719 = vrot.slane %v3715, %v3718
  %v3720 = vadd.f32 %v3714, %v3719
  %v3721 = vmax.f32 %v3720, 0.0
  %v3722 = vpack.c.bf16 %v3721, %v3721
  %v3723 = vld [vmem:[%s3 + $0xc8] sm:$0xf]
  %v3724 = vld [vmem:[%s3 + $0xcc] sm:$0xf]
  %v3725 = vld [vmem:[%s3 + $0xd0] sm:$0xf]
  %v3726 = vld [vmem:[%s3 + $0xd4] sm:$0xf]
  %v3727 = vld [vmem:[%s3 + $0xd8] sm:$0xf]
  %v3728 = vld [vmem:[%s3 + $0xdc] sm:$0xf]
  %v3729 = vld [vmem:[%s3 + $0xe0] sm:$0xf]
  %v3730 = vld [vmem:[%s3 + $0xe4] sm:$0xf]
  %v3731 = vld [vmem:[%s3 + $0xe8] sm:$0xf]
  %v3732 = vld [vmem:[%s3 + $0xec] sm:$0xf]
  %v3733 = vld [vmem:[%s3 + $0xf0] sm:$0xf]
  %v3734 = vld [vmem:[%s3 + $0xf4] sm:$0xf]
  %v3735 = vld [vmem:[%s3 + $0xf8] sm:$0xf]
  %v3736 = vld [vmem:[%s3 + $0xfc] sm:$0xf]
  %v3737 = vld [vmem:[%s3 + $0x100] sm:$0xf]
  %v3738 = vld [vmem:[%s3 + $0x104] sm:$0xf]
  %v3739 = vld [vmem:[%s2 + $0x3f8] sm:$0x1]
  %v3740 = vlaneseq
  %v3741 = vshrl.u32 %v3740, 7
  %v3742 = vsub.s32 0, %v3741
  %v3743 = vrot.slane %v3739, %v3742
  %v3760 = vunpack.c.l.b16 %v3723
  %v3761 = vunpack.c.l.b16 %v3724
  %v3762 = vunpack.c.l.b16 %v3725
  %v3763 = vunpack.c.l.b16 %v3726
  %v3764 = vunpack.c.l.b16 %v3727
  %v3765 = vunpack.c.l.b16 %v3728
  %v3766 = vunpack.c.l.b16 %v3729
  %v3767 = vunpack.c.l.b16 %v3730
  %v3768 = vunpack.c.l.b16 %v3731
  %v3769 = vunpack.c.l.b16 %v3732
  %v3770 = vunpack.c.l.b16 %v3733
  %v3771 = vunpack.c.l.b16 %v3734
  %v3772 = vunpack.c.l.b16 %v3735
  %v3773 = vunpack.c.l.b16 %v3736
  %v3774 = vunpack.c.l.b16 %v3737
  %v3775 = vunpack.c.l.b16 %v3738
  %v3776 = vpack.c.b16 %v3761, %v3760
  %v3777 = vpack.c.b16 %v3763, %v3762
  %v3778 = vpack.c.b16 %v3765, %v3764
  %v3779 = vpack.c.b16 %v3767, %v3766
  %v3780 = vpack.c.b16 %v3769, %v3768
  %v3781 = vpack.c.b16 %v3771, %v3770
  %v3782 = vpack.c.b16 %v3773, %v3772
  %v3783 = vpack.c.b16 %v3775, %v3774
  %3792 = vmatprep.subr.bf16.mxu0 0
  %3793 = vmatpush1.bf16.msra.mxu0 %v3776
  %3794 = vmatprep.subr.bf16.mxu0 0
  %3795 = vmatpush1.bf16.msra.mxu0 %v3777
  %3796 = vmatprep.subr.bf16.mxu0 0
  %3797 = vmatpush1.bf16.msra.mxu0 %v3778
  %3798 = vmatprep.subr.bf16.mxu0 0
  %3799 = vmatpush1.bf16.msra.mxu0 %v3779
  %3800 = vmatprep.subr.bf16.mxu0 0
  %3801 = vmatpush1.bf16.msra.mxu0 %v3780
  %3802 = vmatprep.subr.bf16.mxu0 0
  %3803 = vmatpush1.bf16.msra.mxu0 %v3781
  %3804 = vmatprep.subr.bf16.mxu0 0
  %3805 = vmatpush1.bf16.msra.mxu0 %v3782
  %3806 = vmatprep.subr.bf16.mxu0 0
  %3807 = vmatpush1.bf16.msra.mxu0 %v3783
  %3808 = vmatprep.subr.bf16.mxu0 0
  %3809 = vmatpush1.bf16.msra.mxu0 0
  %3810 = vmatprep.subr.bf16.mxu0 0
  %3811 = vmatpush1.bf16.msra.mxu0 0
  %3812 = vmatprep.subr.bf16.mxu0 0
  %3813 = vmatpush1.bf16.msra.mxu0 0
  %3814 = vmatprep.subr.bf16.mxu0 0
  %3815 = vmatpush1.bf16.msra.mxu0 0
  %3816 = vmatprep.subr.bf16.mxu0 0
  %3817 = vmatpush1.bf16.msra.mxu0 0
  %3818 = vmatprep.subr.bf16.mxu0 0
  %3819 = vmatpush1.bf16.msra.mxu0 0
  %3820 = vmatprep.subr.bf16.mxu0 0
  %3821 = vmatpush1.bf16.msra.mxu0 0
  %3822 = vmatprep.subr.bf16.mxu0 0
  %3823 = vmatpush1.bf16.msra.mxu0 0
  %3824 = vmatprep.mubr.bf16.mxu0 0
  %3825 = vmatmul.mubr.bf16.gmra.mrb[0].mxu0 %v3722
  %v3826 = vpop.f32.mrb[0].mxu0
  %v3827 = vadd.f32 %v3743, %v3826
  %v3828 = vpop.f32.mrb[0].mxu0
  %v3829 = vpop.f32.mrb[0].mxu0
  %v3830 = vpop.f32.mrb[0].mxu0
  %3831 = vdwg.mxu0
  %v3832 = vmax.f32 %v3827, 0.0
  %v3833 = vpack.c.bf16 %v3832, %v3832
  %v3834 = vld [vmem:[%s4] sm:$0xff]
  %v3835 = vld [vmem:[%s4 + $0x8] sm:$0xff]
  %v3836 = vld [vmem:[%s4 + $0x10] sm:$0xff]
  %v3837 = vld [vmem:[%s4 + $0x18] sm:$0xff]
  %v3838 = vld [vmem:[%s4 + $0x20] sm:$0xff]
  %v3839 = vld [vmem:[%s4 + $0x28] sm:$0xff]
  %v3840 = vld [vmem:[%s4 + $0x30] sm:$0xff]
  %v3841 = vld [vmem:[%s4 + $0x38] sm:$0xff]
  %v3842 = vld [vmem:[%s4 + $0x40] sm:$0xff]
  %v3843 = vld [vmem:[%s4 + $0x48] sm:$0xff]
  %v3844 = vld [vmem:[%s4 + $0x50] sm:$0xff]
  %v3845 = vld [vmem:[%s4 + $0x58] sm:$0xff]
  %v3846 = vld [vmem:[%s4 + $0x60] sm:$0xff]
  %v3847 = vld [vmem:[%s4 + $0x68] sm:$0xff]
  %v3848 = vld [vmem:[%s4 + $0x70] sm:$0xff]
  %v3849 = vld [vmem:[%s4 + $0x78] sm:$0xff]
  %v3850 = vld [vmem:[%s4 + $0x80] sm:$0xff]
  %v3851 = vld [vmem:[%s4 + $0x88] sm:$0xff]
  %v3852 = vld [vmem:[%s4 + $0x90] sm:$0xff]
  %v3853 = vld [vmem:[%s4 + $0x98] sm:$0xff]
  %v3854 = vld [vmem:[%s4 + $0xa0] sm:$0xff]
  %v3855 = vld [vmem:[%s4 + $0xa8] sm:$0xff]
  %v3856 = vld [vmem:[%s4 + $0xb0] sm:$0xff]
  %v3857 = vld [vmem:[%s4 + $0xb8] sm:$0xff]
  %v3858 = vld [vmem:[%s4 + $0xc0] sm:$0xff]
  %v3859 = vld [vmem:[%s4 + $0xc8] sm:$0xff]
  %v3860 = vld [vmem:[%s4 + $0xd0] sm:$0xff]
  %v3861 = vld [vmem:[%s4 + $0xd8] sm:$0xff]
  %v3862 = vld [vmem:[%s4 + $0xe0] sm:$0xff]
  %v3863 = vld [vmem:[%s4 + $0xe8] sm:$0xff]
  %v3864 = vld [vmem:[%s4 + $0xf0] sm:$0xff]
  %v3865 = vld [vmem:[%s4 + $0xf8] sm:$0xff]
  %v3866 = vld [vmem:[%s4 + $0x100] sm:$0xff]
  %v3867 = vld [vmem:[%s4 + $0x108] sm:$0xff]
  %v3868 = vld [vmem:[%s4 + $0x110] sm:$0xff]
  %v3869 = vld [vmem:[%s4 + $0x118] sm:$0xff]
  %v3870 = vld [vmem:[%s4 + $0x120] sm:$0xff]
  %v3871 = vld [vmem:[%s4 + $0x128] sm:$0xff]
  %v3872 = vld [vmem:[%s4 + $0x130] sm:$0xff]
  %v3873 = vld [vmem:[%s4 + $0x138] sm:$0xff]
  %v3874 = vld [vmem:[%s4 + $0x140] sm:$0xff]
  %v3875 = vld [vmem:[%s4 + $0x148] sm:$0xff]
  %v3876 = vld [vmem:[%s4 + $0x150] sm:$0xff]
  %v3877 = vld [vmem:[%s4 + $0x158] sm:$0xff]
  %v3878 = vld [vmem:[%s4 + $0x160] sm:$0xff]
  %v3879 = vld [vmem:[%s4 + $0x168] sm:$0xff]
  %v3880 = vld [vmem:[%s4 + $0x170] sm:$0xff]
  %v3881 = vld [vmem:[%s4 + $0x178] sm:$0xff]
  %v3882 = vld [vmem:[%s4 + $0x180] sm:$0xff]
  %v3883 = vld [vmem:[%s4 + $0x188] sm:$0xff]
  %v3884 = vld [vmem:[%s4 + $0x190] sm:$0xff]
  %v3885 = vld [vmem:[%s4 + $0x198] sm:$0xff]
  %v3886 = vld [vmem:[%s4 + $0x1a0] sm:$0xff]
  %v3887 = vld [vmem:[%s4 + $0x1a8] sm:$0xff]
  %v3888 = vld [vmem:[%s4 + $0x1b0] sm:$0xff]
  %v3889 = vld [vmem:[%s4 + $0x1b8] sm:$0xff]
  %v3890 = vld [vmem:[%s4 + $0x1c0] sm:$0xff]
  %v3891 = vld [vmem:[%s4 + $0x1c8] sm:$0xff]
  %v3892 = vld [vmem:[%s4 + $0x1d0] sm:$0xff]
  %v3893 = vld [vmem:[%s4 + $0x1d8] sm:$0xff]
  %v3894 = vld [vmem:[%s4 + $0x1e0] sm:$0xff]
  %v3895 = vld [vmem:[%s4 + $0x1e8] sm:$0xff]
  %v3896 = vld [vmem:[%s4 + $0x1f0] sm:$0xff]
  %v3897 = vld [vmem:[%s4 + $0x1f8] sm:$0xff]
  %v3898 = vld [vmem:[%s4 + $0x200] sm:$0x11]
  %v3899 = vld [vmem:[%s4 + $0x208] sm:$0x11]
  %v3900 = vld [vmem:[%s4 + $0x210] sm:$0x11]
  %v3901 = vld [vmem:[%s4 + $0x218] sm:$0x11]
  %v3902 = vunpack.c.l.bf16 %v3898
  %v3903 = vunpack.c.h.bf16 %v3898
  %v3904 = vunpack.c.l.bf16 %v3899
  %v3905 = vunpack.c.h.bf16 %v3899
  %v3906 = vunpack.c.l.bf16 %v3900
  %v3907 = vunpack.c.h.bf16 %v3900
  %v3908 = vunpack.c.l.bf16 %v3901
  %v3909 = vunpack.c.h.bf16 %v3901
  %v3910 = vlaneseq
  %v3911 = vshrl.u32 %v3910, 7
  %v3912 = vsub.s32 0, %v3911
  %v3913 = vrot.slane %v3902, %v3912
  %v3914 = vlaneseq
  %v3915 = vshrl.u32 %v3914, 7
  %v3916 = vsub.s32 0, %v3915
  %v3917 = vrot.slane %v3903, %v3916
  %v3918 = vlaneseq
  %v3919 = vshrl.u32 %v3918, 7
  %v3920 = vsub.s32 0, %v3919
  %v3921 = vrot.slane %v3904, %v3920
  %v3922 = vlaneseq
  %v3923 = vshrl.u32 %v3922, 7
  %v3924 = vsub.s32 0, %v3923
  %v3925 = vrot.slane %v3905, %v3924
  %v3926 = vlaneseq
  %v3927 = vshrl.u32 %v3926, 7
  %v3928 = vsub.s32 0, %v3927
  %v3929 = vrot.slane %v3906, %v3928
  %v3930 = vlaneseq
  %v3931 = vshrl.u32 %v3930, 7
  %v3932 = vsub.s32 0, %v3931
  %v3933 = vrot.slane %v3907, %v3932
  %v3934 = vlaneseq
  %v3935 = vshrl.u32 %v3934, 7
  %v3936 = vsub.s32 0, %v3935
  %v3937 = vrot.slane %v3908, %v3936
  %v3938 = vlaneseq
  %v3939 = vshrl.u32 %v3938, 7
  %v3940 = vsub.s32 0, %v3939
  %v3941 = vrot.slane %v3909, %v3940
  %v4006 = vunpack.c.l.b16 %v3834
  %v4007 = vunpack.c.h.b16 %v3834
  %v4008 = vunpack.c.l.b16 %v3835
  %v4009 = vunpack.c.h.b16 %v3835
  %v4010 = vunpack.c.l.b16 %v3836
  %v4011 = vunpack.c.h.b16 %v3836
  %v4012 = vunpack.c.l.b16 %v3837
  %v4013 = vunpack.c.h.b16 %v3837
  %v4014 = vunpack.c.l.b16 %v3838
  %v4015 = vunpack.c.h.b16 %v3838
  %v4016 = vunpack.c.l.b16 %v3839
  %v4017 = vunpack.c.h.b16 %v3839
  %v4018 = vunpack.c.l.b16 %v3840
  %v4019 = vunpack.c.h.b16 %v3840
  %v4020 = vunpack.c.l.b16 %v3841
  %v4021 = vunpack.c.h.b16 %v3841
  %v4022 = vunpack.c.l.b16 %v3842
  %v4023 = vunpack.c.h.b16 %v3842
  %v4024 = vunpack.c.l.b16 %v3843
  %v4025 = vunpack.c.h.b16 %v3843
  %v4026 = vunpack.c.l.b16 %v3844
  %v4027 = vunpack.c.h.b16 %v3844
  %v4028 = vunpack.c.l.b16 %v3845
  %v4029 = vunpack.c.h.b16 %v3845
  %v4030 = vunpack.c.l.b16 %v3846
  %v4031 = vunpack.c.h.b16 %v3846
  %v4032 = vunpack.c.l.b16 %v3847
  %v4033 = vunpack.c.h.b16 %v3847
  %v4034 = vunpack.c.l.b16 %v3848
  %v4035 = vunpack.c.h.b16 %v3848
  %v4036 = vunpack.c.l.b16 %v3849
  %v4037 = vunpack.c.h.b16 %v3849
  %v4038 = vunpack.c.l.b16 %v3850
  %v4039 = vunpack.c.h.b16 %v3850
  %v4040 = vunpack.c.l.b16 %v3851
  %v4041 = vunpack.c.h.b16 %v3851
  %v4042 = vunpack.c.l.b16 %v3852
  %v4043 = vunpack.c.h.b16 %v3852
  %v4044 = vunpack.c.l.b16 %v3853
  %v4045 = vunpack.c.h.b16 %v3853
  %v4046 = vunpack.c.l.b16 %v3854
  %v4047 = vunpack.c.h.b16 %v3854
  %v4048 = vunpack.c.l.b16 %v3855
  %v4049 = vunpack.c.h.b16 %v3855
  %v4050 = vunpack.c.l.b16 %v3856
  %v4051 = vunpack.c.h.b16 %v3856
  %v4052 = vunpack.c.l.b16 %v3857
  %v4053 = vunpack.c.h.b16 %v3857
  %v4054 = vunpack.c.l.b16 %v3858
  %v4055 = vunpack.c.h.b16 %v3858
  %v4056 = vunpack.c.l.b16 %v3859
  %v4057 = vunpack.c.h.b16 %v3859
  %v4058 = vunpack.c.l.b16 %v3860
  %v4059 = vunpack.c.h.b16 %v3860
  %v4060 = vunpack.c.l.b16 %v3861
  %v4061 = vunpack.c.h.b16 %v3861
  %v4062 = vunpack.c.l.b16 %v3862
  %v4063 = vunpack.c.h.b16 %v3862
  %v4064 = vunpack.c.l.b16 %v3863
  %v4065 = vunpack.c.h.b16 %v3863
  %v4066 = vunpack.c.l.b16 %v3864
  %v4067 = vunpack.c.h.b16 %v3864
  %v4068 = vunpack.c.l.b16 %v3865
  %v4069 = vunpack.c.h.b16 %v3865
  %v4070 = vunpack.c.l.b16 %v3866
  %v4071 = vunpack.c.h.b16 %v3866
  %v4072 = vunpack.c.l.b16 %v3867
  %v4073 = vunpack.c.h.b16 %v3867
  %v4074 = vunpack.c.l.b16 %v3868
  %v4075 = vunpack.c.h.b16 %v3868
  %v4076 = vunpack.c.l.b16 %v3869
  %v4077 = vunpack.c.h.b16 %v3869
  %v4078 = vunpack.c.l.b16 %v3870
  %v4079 = vunpack.c.h.b16 %v3870
  %v4080 = vunpack.c.l.b16 %v3871
  %v4081 = vunpack.c.h.b16 %v3871
  %v4082 = vunpack.c.l.b16 %v3872
  %v4083 = vunpack.c.h.b16 %v3872
  %v4084 = vunpack.c.l.b16 %v3873
  %v4085 = vunpack.c.h.b16 %v3873
  %v4086 = vunpack.c.l.b16 %v3874
  %v4087 = vunpack.c.h.b16 %v3874
  %v4088 = vunpack.c.l.b16 %v3875
  %v4089 = vunpack.c.h.b16 %v3875
  %v4090 = vunpack.c.l.b16 %v3876
  %v4091 = vunpack.c.h.b16 %v3876
  %v4092 = vunpack.c.l.b16 %v3877
  %v4093 = vunpack.c.h.b16 %v3877
  %v4094 = vunpack.c.l.b16 %v3878
  %v4095 = vunpack.c.h.b16 %v3878
  %v4096 = vunpack.c.l.b16 %v3879
  %v4097 = vunpack.c.h.b16 %v3879
  %v4098 = vunpack.c.l.b16 %v3880
  %v4099 = vunpack.c.h.b16 %v3880
  %v4100 = vunpack.c.l.b16 %v3881
  %v4101 = vunpack.c.h.b16 %v3881
  %v4102 = vunpack.c.l.b16 %v3882
  %v4103 = vunpack.c.h.b16 %v3882
  %v4104 = vunpack.c.l.b16 %v3883
  %v4105 = vunpack.c.h.b16 %v3883
  %v4106 = vunpack.c.l.b16 %v3884
  %v4107 = vunpack.c.h.b16 %v3884
  %v4108 = vunpack.c.l.b16 %v3885
  %v4109 = vunpack.c.h.b16 %v3885
  %v4110 = vunpack.c.l.b16 %v3886
  %v4111 = vunpack.c.h.b16 %v3886
  %v4112 = vunpack.c.l.b16 %v3887
  %v4113 = vunpack.c.h.b16 %v3887
  %v4114 = vunpack.c.l.b16 %v3888
  %v4115 = vunpack.c.h.b16 %v3888
  %v4116 = vunpack.c.l.b16 %v3889
  %v4117 = vunpack.c.h.b16 %v3889
  %v4118 = vunpack.c.l.b16 %v3890
  %v4119 = vunpack.c.h.b16 %v3890
  %v4120 = vunpack.c.l.b16 %v3891
  %v4121 = vunpack.c.h.b16 %v3891
  %v4122 = vunpack.c.l.b16 %v3892
  %v4123 = vunpack.c.h.b16 %v3892
  %v4124 = vunpack.c.l.b16 %v3893
  %v4125 = vunpack.c.h.b16 %v3893
  %v4126 = vunpack.c.l.b16 %v3894
  %v4127 = vunpack.c.h.b16 %v3894
  %v4128 = vunpack.c.l.b16 %v3895
  %v4129 = vunpack.c.h.b16 %v3895
  %v4130 = vunpack.c.l.b16 %v3896
  %v4131 = vunpack.c.h.b16 %v3896
  %v4132 = vunpack.c.l.b16 %v3897
  %v4133 = vunpack.c.h.b16 %v3897
  %v4134 = vpack.c.b16 %v4014, %v4006
  %v4135 = vpack.c.b16 %v4015, %v4007
  %v4136 = vpack.c.b16 %v4016, %v4008
  %v4137 = vpack.c.b16 %v4017, %v4009
  %v4138 = vpack.c.b16 %v4018, %v4010
  %v4139 = vpack.c.b16 %v4019, %v4011
  %v4140 = vpack.c.b16 %v4020, %v4012
  %v4141 = vpack.c.b16 %v4021, %v4013
  %v4142 = vpack.c.b16 %v4030, %v4022
  %v4143 = vpack.c.b16 %v4031, %v4023
  %v4144 = vpack.c.b16 %v4032, %v4024
  %v4145 = vpack.c.b16 %v4033, %v4025
  %v4146 = vpack.c.b16 %v4034, %v4026
  %v4147 = vpack.c.b16 %v4035, %v4027
  %v4148 = vpack.c.b16 %v4036, %v4028
  %v4149 = vpack.c.b16 %v4037, %v4029
  %v4150 = vpack.c.b16 %v4046, %v4038
  %v4151 = vpack.c.b16 %v4047, %v4039
  %v4152 = vpack.c.b16 %v4048, %v4040
  %v4153 = vpack.c.b16 %v4049, %v4041
  %v4154 = vpack.c.b16 %v4050, %v4042
  %v4155 = vpack.c.b16 %v4051, %v4043
  %v4156 = vpack.c.b16 %v4052, %v4044
  %v4157 = vpack.c.b16 %v4053, %v4045
  %v4158 = vpack.c.b16 %v4062, %v4054
  %v4159 = vpack.c.b16 %v4063, %v4055
  %v4160 = vpack.c.b16 %v4064, %v4056
  %v4161 = vpack.c.b16 %v4065, %v4057
  %v4162 = vpack.c.b16 %v4066, %v4058
  %v4163 = vpack.c.b16 %v4067, %v4059
  %v4164 = vpack.c.b16 %v4068, %v4060
  %v4165 = vpack.c.b16 %v4069, %v4061
  %v4166 = vpack.c.b16 %v4078, %v4070
  %v4167 = vpack.c.b16 %v4079, %v4071
  %v4168 = vpack.c.b16 %v4080, %v4072
  %v4169 = vpack.c.b16 %v4081, %v4073
  %v4170 = vpack.c.b16 %v4082, %v4074
  %v4171 = vpack.c.b16 %v4083, %v4075
  %v4172 = vpack.c.b16 %v4084, %v4076
  %v4173 = vpack.c.b16 %v4085, %v4077
  %v4174 = vpack.c.b16 %v4094, %v4086
  %v4175 = vpack.c.b16 %v4095, %v4087
  %v4176 = vpack.c.b16 %v4096, %v4088
  %v4177 = vpack.c.b16 %v4097, %v4089
  %v4178 = vpack.c.b16 %v4098, %v4090
  %v4179 = vpack.c.b16 %v4099, %v4091
  %v4180 = vpack.c.b16 %v4100, %v4092
  %v4181 = vpack.c.b16 %v4101, %v4093
  %v4182 = vpack.c.b16 %v4110, %v4102
  %v4183 = vpack.c.b16 %v4111, %v4103
  %v4184 = vpack.c.b16 %v4112, %v4104
  %v4185 = vpack.c.b16 %v4113, %v4105
  %v4186 = vpack.c.b16 %v4114, %v4106
  %v4187 = vpack.c.b16 %v4115, %v4107
  %v4188 = vpack.c.b16 %v4116, %v4108
  %v4189 = vpack.c.b16 %v4117, %v4109
  %v4190 = vpack.c.b16 %v4126, %v4118
  %v4191 = vpack.c.b16 %v4127, %v4119
  %v4192 = vpack.c.b16 %v4128, %v4120
  %v4193 = vpack.c.b16 %v4129, %v4121
  %v4194 = vpack.c.b16 %v4130, %v4122
  %v4195 = vpack.c.b16 %v4131, %v4123
  %v4196 = vpack.c.b16 %v4132, %v4124
  %v4197 = vpack.c.b16 %v4133, %v4125
  %4262 = vmatprep.subr.bf16.mxu0 %v4135
  %4263 = vmatpush1.bf16.msra.mxu0 %v4134
  %4264 = vmatprep.subr.bf16.mxu0 %v4143
  %4265 = vmatpush1.bf16.msra.mxu0 %v4142
  %4266 = vmatprep.subr.bf16.mxu0 %v4151
  %4267 = vmatpush1.bf16.msra.mxu0 %v4150
  %4268 = vmatprep.subr.bf16.mxu0 %v4159
  %4269 = vmatpush1.bf16.msra.mxu0 %v4158
  %4270 = vmatprep.subr.bf16.mxu0 %v4167
  %4271 = vmatpush1.bf16.msra.mxu0 %v4166
  %4272 = vmatprep.subr.bf16.mxu0 %v4175
  %4273 = vmatpush1.bf16.msra.mxu0 %v4174
  %4274 = vmatprep.subr.bf16.mxu0 %v4183
  %4275 = vmatpush1.bf16.msra.mxu0 %v4182
  %4276 = vmatprep.subr.bf16.mxu0 %v4191
  %4277 = vmatpush1.bf16.msra.mxu0 %v4190
  %4278 = vmatprep.subr.bf16.mxu0 0
  %4279 = vmatpush1.bf16.msra.mxu0 0
  %4280 = vmatprep.subr.bf16.mxu0 0
  %4281 = vmatpush1.bf16.msra.mxu0 0
  %4282 = vmatprep.subr.bf16.mxu0 0
  %4283 = vmatpush1.bf16.msra.mxu0 0
  %4284 = vmatprep.subr.bf16.mxu0 0
  %4285 = vmatpush1.bf16.msra.mxu0 0
  %4286 = vmatprep.subr.bf16.mxu0 0
  %4287 = vmatpush1.bf16.msra.mxu0 0
  %4288 = vmatprep.subr.bf16.mxu0 0
  %4289 = vmatpush1.bf16.msra.mxu0 0
  %4290 = vmatprep.subr.bf16.mxu0 0
  %4291 = vmatpush1.bf16.msra.mxu0 0
  %4292 = vmatprep.subr.bf16.mxu0 0
  %4293 = vmatpush1.bf16.msra.mxu0 0
  %4294 = vmatprep.mubr.bf16.mxu0 0
  %4295 = vmatmul.mubr.bf16.gmra.mrb[0].mxu0 %v3833
  %v4296 = vpop.f32.mrb[0].mxu0
  %v4297 = vadd.f32 %v3913, %v4296
  %v4298 = vpop.f32.mrb[0].mxu0
  %v4299 = vadd.f32 %v3917, %v4298
  %v4300 = vpop.f32.mrb[0].mxu0
  %v4301 = vpop.f32.mrb[0].mxu0
  %4302 = vdwg.mxu0
  %4303 = vmatprep.subr.bf16.mxu0 %v4137
  %4304 = vmatpush1.bf16.msra.mxu0 %v4136
  %4305 = vmatprep.subr.bf16.mxu0 %v4145
  %4306 = vmatpush1.bf16.msra.mxu0 %v4144
  %4307 = vmatprep.subr.bf16.mxu0 %v4153
  %4308 = vmatpush1.bf16.msra.mxu0 %v4152
  %4309 = vmatprep.subr.bf16.mxu0 %v4161
  %4310 = vmatpush1.bf16.msra.mxu0 %v4160
  %4311 = vmatprep.subr.bf16.mxu0 %v4169
  %4312 = vmatpush1.bf16.msra.mxu0 %v4168
  %4313 = vmatprep.subr.bf16.mxu0 %v4177
  %4314 = vmatpush1.bf16.msra.mxu0 %v4176
  %4315 = vmatprep.subr.bf16.mxu0 %v4185
  %4316 = vmatpush1.bf16.msra.mxu0 %v4184
  %4317 = vmatprep.subr.bf16.mxu0 %v4193
  %4318 = vmatpush1.bf16.msra.mxu0 %v4192
  %4319 = vmatprep.subr.bf16.mxu0 0
  %4320 = vmatpush1.bf16.msra.mxu0 0
  %4321 = vmatprep.subr.bf16.mxu0 0
  %4322 = vmatpush1.bf16.msra.mxu0 0
  %4323 = vmatprep.subr.bf16.mxu0 0
  %4324 = vmatpush1.bf16.msra.mxu0 0
  %4325 = vmatprep.subr.bf16.mxu0 0
  %4326 = vmatpush1.bf16.msra.mxu0 0
  %4327 = vmatprep.subr.bf16.mxu0 0
  %4328 = vmatpush1.bf16.msra.mxu0 0
  %4329 = vmatprep.subr.bf16.mxu0 0
  %4330 = vmatpush1.bf16.msra.mxu0 0
  %4331 = vmatprep.subr.bf16.mxu0 0
  %4332 = vmatpush1.bf16.msra.mxu0 0
  %4333 = vmatprep.subr.bf16.mxu0 0
  %4334 = vmatpush1.bf16.msra.mxu0 0
  %4335 = vmatprep.mubr.bf16.mxu0 0
  %4336 = vmatmul.mubr.bf16.gmra.mrb[0].mxu0 %v3833
  %v4337 = vpop.f32.mrb[0].mxu0
  %v4338 = vadd.f32 %v3921, %v4337
  %v4339 = vpop.f32.mrb[0].mxu0
  %v4340 = vadd.f32 %v3925, %v4339
  %v4341 = vpop.f32.mrb[0].mxu0
  %v4342 = vpop.f32.mrb[0].mxu0
  %4343 = vdwg.mxu0
  %4344 = vmatprep.subr.bf16.mxu0 %v4139
  %4345 = vmatpush1.bf16.msra.mxu0 %v4138
  %4346 = vmatprep.subr.bf16.mxu0 %v4147
  %4347 = vmatpush1.bf16.msra.mxu0 %v4146
  %4348 = vmatprep.subr.bf16.mxu0 %v4155
  %4349 = vmatpush1.bf16.msra.mxu0 %v4154
  %4350 = vmatprep.subr.bf16.mxu0 %v4163
  %4351 = vmatpush1.bf16.msra.mxu0 %v4162
  %4352 = vmatprep.subr.bf16.mxu0 %v4171
  %4353 = vmatpush1.bf16.msra.mxu0 %v4170
  %4354 = vmatprep.subr.bf16.mxu0 %v4179
  %4355 = vmatpush1.bf16.msra.mxu0 %v4178
  %4356 = vmatprep.subr.bf16.mxu0 %v4187
  %4357 = vmatpush1.bf16.msra.mxu0 %v4186
  %4358 = vmatprep.subr.bf16.mxu0 %v4195
  %4359 = vmatpush1.bf16.msra.mxu0 %v4194
  %4360 = vmatprep.subr.bf16.mxu0 0
  %4361 = vmatpush1.bf16.msra.mxu0 0
  %4362 = vmatprep.subr.bf16.mxu0 0
  %4363 = vmatpush1.bf16.msra.mxu0 0
  %4364 = vmatprep.subr.bf16.mxu0 0
  %4365 = vmatpush1.bf16.msra.mxu0 0
  %4366 = vmatprep.subr.bf16.mxu0 0
  %4367 = vmatpush1.bf16.msra.mxu0 0
  %4368 = vmatprep.subr.bf16.mxu0 0
  %4369 = vmatpush1.bf16.msra.mxu0 0
  %4370 = vmatprep.subr.bf16.mxu0 0
  %4371 = vmatpush1.bf16.msra.mxu0 0
  %4372 = vmatprep.subr.bf16.mxu0 0
  %4373 = vmatpush1.bf16.msra.mxu0 0
  %4374 = vmatprep.subr.bf16.mxu0 0
  %4375 = vmatpush1.bf16.msra.mxu0 0
  %4376 = vmatprep.mubr.bf16.mxu0 0
  %4377 = vmatmul.mubr.bf16.gmra.mrb[0].mxu0 %v3833
  %v4378 = vpop.f32.mrb[0].mxu0
  %v4379 = vadd.f32 %v3929, %v4378
  %v4380 = vpop.f32.mrb[0].mxu0
  %v4381 = vadd.f32 %v3933, %v4380
  %v4382 = vpop.f32.mrb[0].mxu0
  %v4383 = vpop.f32.mrb[0].mxu0
  %4384 = vdwg.mxu0
  %4385 = vmatprep.subr.bf16.mxu0 %v4141
  %4386 = vmatpush1.bf16.msra.mxu0 %v4140
  %4387 = vmatprep.subr.bf16.mxu0 %v4149
  %4388 = vmatpush1.bf16.msra.mxu0 %v4148
  %4389 = vmatprep.subr.bf16.mxu0 %v4157
  %4390 = vmatpush1.bf16.msra.mxu0 %v4156
  %4391 = vmatprep.subr.bf16.mxu0 %v4165
  %4392 = vmatpush1.bf16.msra.mxu0 %v4164
  %4393 = vmatprep.subr.bf16.mxu0 %v4173
  %4394 = vmatpush1.bf16.msra.mxu0 %v4172
  %4395 = vmatprep.subr.bf16.mxu0 %v4181
  %4396 = vmatpush1.bf16.msra.mxu0 %v4180
  %4397 = vmatprep.subr.bf16.mxu0 %v4189
  %4398 = vmatpush1.bf16.msra.mxu0 %v4188
  %4399 = vmatprep.subr.bf16.mxu0 %v4197
  %4400 = vmatpush1.bf16.msra.mxu0 %v4196
  %4401 = vmatprep.subr.bf16.mxu0 0
  %4402 = vmatpush1.bf16.msra.mxu0 0
  %4403 = vmatprep.subr.bf16.mxu0 0
  %4404 = vmatpush1.bf16.msra.mxu0 0
  %4405 = vmatprep.subr.bf16.mxu0 0
  %4406 = vmatpush1.bf16.msra.mxu0 0
  %4407 = vmatprep.subr.bf16.mxu0 0
  %4408 = vmatpush1.bf16.msra.mxu0 0
  %4409 = vmatprep.subr.bf16.mxu0 0
  %4410 = vmatpush1.bf16.msra.mxu0 0
  %4411 = vmatprep.subr.bf16.mxu0 0
  %4412 = vmatpush1.bf16.msra.mxu0 0
  %4413 = vmatprep.subr.bf16.mxu0 0
  %4414 = vmatpush1.bf16.msra.mxu0 0
  %4415 = vmatprep.subr.bf16.mxu0 0
  %4416 = vmatpush1.bf16.msra.mxu0 0
  %4417 = vmatprep.mubr.bf16.mxu0 0
  %4418 = vmatmul.mubr.bf16.gmra.mrb[0].mxu0 %v3833
  %v4419 = vpop.f32.mrb[0].mxu0
  %v4420 = vadd.f32 %v3937, %v4419
  %v4421 = vpop.f32.mrb[0].mxu0
  %v4422 = vadd.f32 %v3941, %v4421
  %v4423 = vpop.f32.mrb[0].mxu0
  %v4424 = vpop.f32.mrb[0].mxu0
  %4425 = vdwg.mxu0
  %4426 = vst [vmem:[%s5] sm:$0xff] %v4297
  %4427 = vst [vmem:[%s5 + $0x8] sm:$0xff] %v4299
  %4428 = vst [vmem:[%s5 + $0x10] sm:$0xff] %v4338
  %4429 = vst [vmem:[%s5 + $0x18] sm:$0xff] %v4340
  %4430 = vst [vmem:[%s5 + $0x20] sm:$0xff] %v4379
  %4431 = vst [vmem:[%s5 + $0x28] sm:$0xff] %v4381
  %4432 = vst [vmem:[%s5 + $0x30] sm:$0xff] %v4420
  %4433 = vst [vmem:[%s5 + $0x38] sm:$0xff] %v4422
  // Predicated region
  $region22: #{forward.1} parent=0 // pred_check
    _
  $region23: #{forward.1} parent=0 // pred_check_branch
    %4435 = sbr.rel (0) target = $region25
  $region24: #{forward.1} parent=0 // pred_region
    _
  $region25: #{forward.1} parent=0 // pred_fallthru
    _
  // Predicated region
  $region26: #{forward.1} parent=0 // pred_check
    _
  $region27: #{forward.1} parent=0 // pred_check_branch
    %4437 = sbr.rel (0) target = $region29
  $region28: #{forward.1} parent=0 // pred_region
    _
  $region29: #{forward.1} parent=0 // pred_fallthru
    _

</llo_original>
